<compile_context>
chip_gen: v7x
topology: tpu7x:2x2x1
jax: 0.10.0
libtpu: 0.0.40
codegen_flags: <defaults>
</compile_context>

<pallas_src>
import functools

import jax
import jax.numpy as jnp
from jax.experimental import pallas as pl
from jax.experimental.pallas import tpu as pltpu


# ----------------------------- small helpers --------------------------------
def _apply_act(y, act):
    if act == "none":
        return y
    if act == "relu":
        return jnp.maximum(y, 0.0)
    if act == "hs":                       # HS(): x * clamp(x + 3, 0, 6) / 6
        return y * (jnp.clip(y + 3.0, 0.0, 6.0) * (1.0 / 6.0))
    raise ValueError(act)


def fold_bn(p, eps=1e-5):
    """Inference-mode BatchNorm -> per-channel (scale, bias)."""
    s = p["gamma"] / jnp.sqrt(p["var"] + eps)
    return s, p["beta"] - p["mean"] * s


def _instance_norm_rows(y, eps=1e-5):
    """InstanceNorm over the spatial (row) axis of a [M, C] tile
    (affine=False, biased variance) -- nn.InstanceNorm2d defaults."""
    mu = jnp.mean(y, axis=0, keepdims=True)
    var = jnp.mean((y - mu) ** 2, axis=0, keepdims=True)
    return (y - mu) * jax.lax.rsqrt(var + eps)


# --------------------------- in-kernel depthwise -----------------------------
def _dwconv(x3d, w_taps, scr, *, K, pad, stride):
    """Depthwise KxK 'same' conv on a VMEM-resident [H, W, C] tile.

    Zero padding is realized by writing the interior of a pre-zeroed VMEM
    scratch.  For stride == 2 the input is expected in (even|odd, even|odd)
    polyphase spatial order, so every tap is a contiguous static slice and only
    the decimated output grid is computed."""
    H, W, C = x3d.shape
    if stride == 1:
        Hp, Wp = H + 2 * pad, W + 2 * pad
        Ho, Wo = H, W
        scr[...] = jnp.zeros((Hp, Wp, C), jnp.float32)
        scr[pad:pad + H, pad:pad + W, :] = x3d
        acc = jnp.zeros((Ho, Wo, C), jnp.float32)
        for i in range(K):
            for j in range(K):
                t = i * K + j
                acc = acc + scr[i:i + Ho, j:j + Wo, :] * w_taps[t:t + 1, :]
        return acc

    # stride == 2  (rows/cols arrive as [evens | odds])
    H2, W2 = H // 2, W // 2
    ph = (pad + 1) // 2
    Hq, Wq = H2 + 2 * ph, W2 + 2 * ph
    Ho, Wo = H2, W2
    scr[...] = jnp.zeros((2, Hq, 2, Wq, C), jnp.float32)
    for p in range(2):
        for q in range(2):
            scr[p, ph:ph + H2, q, ph:ph + W2, :] = \
                x3d[p * H2:(p + 1) * H2, q * W2:(q + 1) * W2, :]
    acc = jnp.zeros((Ho, Wo, C), jnp.float32)
    for i in range(K):
        ri = i - pad
        pi, ai = ri % 2, (ri - ri % 2) // 2
        for j in range(K):
            rj = j - pad
            qj, bj = rj % 2, (rj - rj % 2) // 2
            t = i * K + j
            tap = scr[pi, ph + ai:ph + ai + Ho, qj, ph + bj:ph + bj + Wo, :]
            acc = acc + tap * w_taps[t:t + 1, :]
    return acc


# ----------------------------- fused block kernel ----------------------------
def _make_block_kernel(cfg, dims):
    mode, ibn, use_se = cfg["mode"], cfg["ibn"], cfg["useSE"]
    K, stride = cfg["ksize"], cfg["stride"]
    pad = K // 2
    act = "relu" if cfg["activation"] == "ReLU" else "hs"
    H, W = dims["H"], dims["W"]
    ci, mid = dims["ci"], dims["mid"]
    M = H * W
    M2 = dims["Ho"] * dims["Wo"]

    def kernel(*refs):
        it = iter(refs)
        xproj_ref = next(it) if mode == 1 else None
        x_ref = next(it)
        w1_ref, b1_ref = next(it), next(it)
        wdw_ref, b2_ref = next(it), next(it)
        w3_ref, b3_ref = next(it), next(it)
        if use_se:
            sw1_ref, sb1_ref, sw2_ref = next(it), next(it), next(it)
        if mode == 2:
            wpdw_ref, bp1_ref, wp1_ref, bp2_ref = (next(it), next(it),
                                                   next(it), next(it))
        out_a_ref, out_b_ref = next(it), next(it)
        scr_main = next(it)
        scr_proj = next(it) if mode == 2 else None

        x3d = x_ref[0]                                           # [H, W, ci]

        # ------------------------- branch_main --------------------------
        y = jnp.dot(x3d.reshape(M, ci), w1_ref[...],
                    preferred_element_type=jnp.float32) + b1_ref[...]
        y = _apply_act(y, act)                                   # 1x1 + BN1 + act
        y = _dwconv(y.reshape(H, W, mid), wdw_ref[...], scr_main,
                    K=K, pad=pad, stride=stride)                 # dw KxK (* BN2 scale)
        y = y.reshape(M2, mid) + b2_ref[...]                     # + BN2 bias
        y = jnp.dot(y, w3_ref[...],
                    preferred_element_type=jnp.float32) + b3_ref[...]
        if ibn:                                                  # IN or folded BN3
            y = _instance_norm_rows(y)
        y = _apply_act(y, act)
        if use_se:                                               # SELayer (MXU dots)
            pooled = jnp.mean(y, axis=0, keepdims=True)          # [1, co]
            h = jnp.dot(pooled, sw1_ref[...],
                        preferred_element_type=jnp.float32) + sb1_ref[...]
            h = jnp.maximum(h, 0.0)
            a = jnp.dot(h, sw2_ref[...], preferred_element_type=jnp.float32)
            y = y * (jnp.clip(a + 3.0, 0.0, 6.0) * (1.0 / 6.0))
        out_b_ref[0] = y

        # ------------------- branch_proj / pass-through ------------------
        if mode == 1:
            out_a_ref[0] = xproj_ref[0].reshape(M2, ci)
        else:
            z = _dwconv(x3d, wpdw_ref[...], scr_proj, K=K, pad=pad, stride=stride)
            z = z.reshape(M2, ci) + bp1_ref[...]
            z = jnp.dot(z, wp1_ref[...],
                        preferred_element_type=jnp.float32) + bp2_ref[...]
            if ibn:
                z = _instance_norm_rows(z)
            out_a_ref[0] = _apply_act(z, act)

    return kernel


# ----------------------------- wrapper ---------------------------------------
def _to_kernel_layout(x_nchw, stride):
    """NCHW -> NHWC; for stride == 2 additionally split H and W into
    (even | odd) polyphase halves (single XLA layout pass) so the in-kernel
    stride-2 depthwise conv only needs contiguous slices."""
    N, C, H, W = x_nchw.shape
    if stride == 1:
        return jnp.transpose(x_nchw, (0, 2, 3, 1))
    assert H % 2 == 0 and W % 2 == 0
    xr = x_nchw.reshape(N, C, H // 2, 2, W // 2, 2)
    xr = jnp.transpose(xr, (0, 3, 2, 5, 4, 1))        # [N, hp, hu, wp, wu, C]
    return xr.reshape(N, H, W, C)


def ibn_shufflenet_forward(x_nchw, params, cfg):
    mode, ibn, use_se = cfg["mode"], cfg["ibn"], cfg["useSE"]
    K, stride = cfg["ksize"], cfg["stride"]
    assert cfg["dilation"] == 1  # TODO(synk): dilation > 1 not implemented
    assert stride in (1, 2)
    if mode == 1:
        assert stride == 1       # pass-through branch keeps spatial dims
    pad = K // 2

    N, c_total, H, W = x_nchw.shape
    ci = c_total // 2 if mode == 1 else c_total
    mid = params["w1"].shape[0]
    co = params["w3"].shape[0]
    Ho = (H + 2 * pad - K) // stride + 1
    Wo = (W + 2 * pad - K) // stride + 1
    M2 = Ho * Wo

    # ---- fold eval-mode BatchNorms into the conv weights (wrapper side) ----
    s1, b1 = fold_bn(params["bn1"])
    w1f = jnp.transpose(params["w1"][:, :, 0, 0]) * s1[None, :]               # [ci, mid]
    s2, b2 = fold_bn(params["bn2"])
    wdwf = jnp.transpose(params["wdw"][:, 0].reshape(mid, K * K)) * s2[None, :]  # [K*K, mid]
    if ibn:
        w3f = jnp.transpose(params["w3"][:, :, 0, 0])
        b3 = jnp.zeros((co,), jnp.float32)
    else:
        s3, b3 = fold_bn(params["bn3"])
        w3f = jnp.transpose(params["w3"][:, :, 0, 0]) * s3[None, :]

    inputs, in_specs = [], []

    def add_tile(a, spec):
        inputs.append(a)
        in_specs.append(spec)

    def add_full(a):
        add_tile(a, pl.BlockSpec(a.shape, lambda n, nd=a.ndim: (0,) * nd))

    img_spec = pl.BlockSpec((1, H, W, ci), lambda n: (n, 0, 0, 0))
    if mode == 1:
        # channel_shuffle: even channels -> pass-through, odd channels -> main
        xs = x_nchw.reshape(N, ci, 2, H, W)
        add_tile(_to_kernel_layout(xs[:, :, 0], stride), img_spec)
        add_tile(_to_kernel_layout(xs[:, :, 1], stride), img_spec)
    else:
        add_tile(_to_kernel_layout(x_nchw, stride), img_spec)

    add_full(w1f)
    add_full(b1.reshape(1, mid))
    add_full(wdwf)
    add_full(b2.reshape(1, mid))
    add_full(w3f)
    add_full(b3.reshape(1, co))
    if use_se:
        cse = params["se_w1"].shape[0]
        sse, bse = fold_bn(params["se_bn"])
        add_full(jnp.transpose(params["se_w1"][:, :, 0, 0]) * sse[None, :])   # [co, cse]
        add_full(bse.reshape(1, cse))
        add_full(jnp.transpose(params["se_w2"][:, :, 0, 0]))                  # [cse, co]
    if mode == 2:
        sp1, bp1 = fold_bn(params["bnp1"])
        wpdwf = jnp.transpose(params["wp_dw"][:, 0].reshape(ci, K * K)) * sp1[None, :]
        if ibn:
            wp1f = jnp.transpose(params["wp1"][:, :, 0, 0])
            bp2 = jnp.zeros((ci,), jnp.float32)
        else:
            sp2, bp2 = fold_bn(params["bnp2"])
            wp1f = jnp.transpose(params["wp1"][:, :, 0, 0]) * sp2[None, :]
        add_full(wpdwf)
        add_full(bp1.reshape(1, ci))
        add_full(wp1f)
        add_full(bp2.reshape(1, ci))

    def dw_scratch(c):
        if stride == 1:
            return pltpu.VMEM((H + 2 * pad, W + 2 * pad, c), jnp.float32)
        ph = (pad + 1) // 2
        return pltpu.VMEM((2, H // 2 + 2 * ph, 2, W // 2 + 2 * ph, c), jnp.float32)

    scratch_shapes = [dw_scratch(mid)]
    if mode == 2:
        scratch_shapes.append(dw_scratch(ci))

    kernel = _make_block_kernel(
        cfg, dict(H=H, W=W, Ho=Ho, Wo=Wo, ci=ci, mid=mid, co=co))

    out_a, out_b = pl.pallas_call(
        kernel,
        out_shape=(jax.ShapeDtypeStruct((N, M2, ci), jnp.float32),
                   jax.ShapeDtypeStruct((N, M2, co), jnp.float32)),
        grid=(N,),
        in_specs=in_specs,
        out_specs=(pl.BlockSpec((1, M2, ci), lambda n: (n, 0, 0)),
                   pl.BlockSpec((1, M2, co), lambda n: (n, 0, 0))),
        scratch_shapes=scratch_shapes,
        compiler_params=pltpu.CompilerParams(
            dimension_semantics=("parallel",),
            vmem_limit_bytes=32 * 1024 * 1024),
    )(*inputs)

    # single concat in NHWC, then one transpose back to NCHW.
    out = jnp.concatenate([out_a, out_b], axis=-1)               # [N, Ho*Wo, oup]
    return jnp.transpose(out.reshape(N, Ho, Wo, ci + co), (0, 3, 1, 2))


# ----------------------------- parameters -----------------------------------
def _bn_init(key, c):
    k1, k2, k3, k4 = jax.random.split(key, 4)
    return {
        "gamma": 0.5 + jax.random.uniform(k1, (c,), jnp.float32),
        "beta": 0.1 * jax.random.normal(k2, (c,), jnp.float32),
        "mean": 0.1 * jax.random.normal(k3, (c,), jnp.float32),
        "var": 0.5 + jax.random.uniform(k4, (c,), jnp.float32),
    }


def init_params(key, cfg):
    inp, oup, mid, K = cfg["inp"], cfg["oup"], cfg["base_mid_channels"], cfg["ksize"]
    assert cfg["base_mid_channels"] == oup // 2
    outputs = oup - inp
    ks = iter(jax.random.split(key, 20))
    w = lambda shape: 0.2 * jax.random.normal(next(ks), shape, jnp.float32)
    p = {
        "w1": w((mid, inp, 1, 1)),     "bn1": _bn_init(next(ks), mid),
        "wdw": w((mid, 1, K, K)),      "bn2": _bn_init(next(ks), mid),
        "w3": w((outputs, mid, 1, 1)), "bn3": _bn_init(next(ks), outputs),
    }
    if cfg["useSE"]:
        p["se_w1"] = w((outputs // 4, outputs, 1, 1))
        p["se_bn"] = _bn_init(next(ks), outputs // 4)
        p["se_w2"] = w((outputs, outputs // 4, 1, 1))
    if cfg["mode"] == 2:
        p["wp_dw"] = w((inp, 1, K, K))
        p["bnp1"] = _bn_init(next(ks), inp)
        p["wp1"] = w((inp, inp, 1, 1))
        p["bnp2"] = _bn_init(next(ks), inp)
    return p


# ----------------------------- pure-JAX reference ---------------------------
def ref_forward(x, params, cfg):
    """Plain-JAX NCHW reference mirroring the PyTorch module (BN in eval mode)."""
    K, stride, pad = cfg["ksize"], cfg["stride"], cfg["ksize"] // 2
    hp = jax.lax.Precision.HIGHEST

    def act(y):
        if cfg["activation"] == "ReLU":
            return jnp.maximum(y, 0.0)
        return y * jnp.clip(y + 3.0, 0.0, 6.0) / 6.0

    def conv1x1(y, w):
        return jnp.einsum("nihw,oi->nohw", y, w[:, :, 0, 0], precision=hp)

    def bn(y, p):
        s, b = fold_bn(p)
        return y * s[None, :, None, None] + b[None, :, None, None]

    def dwconv(y, w):
        N, C, H, W = y.shape
        yp = jnp.pad(y, ((0, 0), (0, 0), (pad, pad), (pad, pad)))
        Ho = (H + 2 * pad - K) // stride + 1
        Wo = (W + 2 * pad - K) // stride + 1
        out = jnp.zeros((N, C, Ho, Wo), jnp.float32)
        for i in range(K):
            for j in range(K):
                out = out + w[:, 0, i, j][None, :, None, None] * \
                    yp[:, :, i:i + Ho * stride:stride, j:j + Wo * stride:stride]
        return out

    def instnorm(y):
        m = y.mean(axis=(2, 3), keepdims=True)
        v = ((y - m) ** 2).mean(axis=(2, 3), keepdims=True)
        return (y - m) / jnp.sqrt(v + 1e-5)

    def branch_main(y):
        y = act(bn(conv1x1(y, params["w1"]), params["bn1"]))
        y = bn(dwconv(y, params["wdw"]), params["bn2"])
        y = conv1x1(y, params["w3"])
        y = act(instnorm(y)) if cfg["ibn"] else act(bn(y, params["bn3"]))
        if cfg["useSE"]:
            pooled = y.mean(axis=(2, 3), keepdims=True)
            h = jnp.maximum(bn(conv1x1(pooled, params["se_w1"]), params["se_bn"]), 0.0)
            a = conv1x1(h, params["se_w2"])
            y = y * (jnp.clip(a + 3.0, 0.0, 6.0) / 6.0)
        return y

    def branch_proj(y):
        y = bn(dwconv(y, params["wp_dw"]), params["bnp1"])
        y = conv1x1(y, params["wp1"])
        return act(instnorm(y)) if cfg["ibn"] else act(bn(y, params["bnp2"]))

    if cfg["mode"] == 1:
        return jnp.concatenate([x[:, 0::2], branch_main(x[:, 1::2])], axis=1)
    return jnp.concatenate([branch_proj(x), branch_main(x)], axis=1)


# ----------------------------- main ------------------------------------------
if __name__ == "__main__":
    key = jax.random.PRNGKey(0)

    configs = [
        # mode 1: channel-shuffle unit, HS + SE + InstanceNorm (ibn), stride 1
        dict(inp=8, oup=16, base_mid_channels=8, ksize=3, stride=1,
             activation="HS", useSE=True, mode=1, ibn=True, dilation=1),
        # mode 2: downsample unit with projection branch, ReLU + BatchNorm, stride 2
        dict(inp=8, oup=16, base_mid_channels=8, ksize=3, stride=2,
             activation="ReLU", useSE=False, mode=2, ibn=False, dilation=1),
    ]
    N, H, W = 2, 16, 16
    for idx, cfg in enumerate(configs):
        kx, kp = jax.random.split(jax.random.fold_in(key, idx))
        cin = 2 * cfg["inp"] if cfg["mode"] == 1 else cfg["inp"]
        x = jax.random.normal(kx, (N, cin, H, W), jnp.float32)
        params = init_params(kp, cfg)

        fwd = jax.jit(functools.partial(ibn_shufflenet_forward, cfg=cfg))
        out = jax.block_until_ready(fwd(x, params))

        ho = (H + 2 * (cfg["ksize"] // 2) - cfg["ksize"]) // cfg["stride"] + 1
        assert out.shape == (N, cfg["oup"], ho, ho), out.shape
        ref = ref_forward(x, params, cfg)
        max_err = float(jnp.max(jnp.abs(out - ref)))
        assert max_err < 2e-2, f"config {idx}: max abs err {max_err}"

    print("KERNEL_OK")
</pallas_src>

<mosaic_0001>
module attributes {stable_mosaic.version = 11 : i64} {
  func.func @kernel(%arg0: i32, %arg1: memref<1x16x16x8xf32, #tpu.memory_space<vmem>>, %arg2: memref<1x16x16x8xf32, #tpu.memory_space<vmem>>, %arg3: memref<8x8xf32, #tpu.memory_space<vmem>>, %arg4: memref<1x8xf32, #tpu.memory_space<vmem>>, %arg5: memref<9x8xf32, #tpu.memory_space<vmem>>, %arg6: memref<1x8xf32, #tpu.memory_space<vmem>>, %arg7: memref<8x8xf32, #tpu.memory_space<vmem>>, %arg8: memref<1x8xf32, #tpu.memory_space<vmem>>, %arg9: memref<8x2xf32, #tpu.memory_space<vmem>>, %arg10: memref<1x2xf32, #tpu.memory_space<vmem>>, %arg11: memref<2x8xf32, #tpu.memory_space<vmem>>, %arg12: memref<1x256x8xf32, #tpu.memory_space<vmem>>, %arg13: memref<1x256x8xf32, #tpu.memory_space<vmem>>, %arg14: memref<18x18x8xf32, #tpu.memory_space<vmem>>) attributes {dimension_semantics = [#tpu.dimension_semantics<parallel>], iteration_bounds = array<i64: 2>, scalar_prefetch = 0 : i64, scratch_operands = 1 : i64, tpu.core_type = #tpu.core_type<tc>, window_params = [{transform_indices = @transform_0, window_bounds = array<i64: 1, 16, 16, 8>}, {transform_indices = @transform_1, window_bounds = array<i64: 1, 16, 16, 8>}, {pipeline_mode = #tpu.pipeline_mode<synchronous>, transform_indices = @transform_2, window_bounds = array<i64: 8, 8>}, {pipeline_mode = #tpu.pipeline_mode<synchronous>, transform_indices = @transform_3, window_bounds = array<i64: 1, 8>}, {pipeline_mode = #tpu.pipeline_mode<synchronous>, transform_indices = @transform_4, window_bounds = array<i64: 9, 8>}, {pipeline_mode = #tpu.pipeline_mode<synchronous>, transform_indices = @transform_5, window_bounds = array<i64: 1, 8>}, {pipeline_mode = #tpu.pipeline_mode<synchronous>, transform_indices = @transform_6, window_bounds = array<i64: 8, 8>}, {pipeline_mode = #tpu.pipeline_mode<synchronous>, transform_indices = @transform_7, window_bounds = array<i64: 1, 8>}, {pipeline_mode = #tpu.pipeline_mode<synchronous>, transform_indices = @transform_8, window_bounds = array<i64: 8, 2>}, {pipeline_mode = #tpu.pipeline_mode<synchronous>, transform_indices = @transform_9, window_bounds = array<i64: 1, 2>}, {pipeline_mode = #tpu.pipeline_mode<synchronous>, transform_indices = @transform_10, window_bounds = array<i64: 2, 8>}, {transform_indices = @transform_11, window_bounds = array<i64: 1, 256, 8>}, {transform_indices = @transform_12, window_bounds = array<i64: 1, 256, 8>}]} {
    %c0 = arith.constant 0 : index
    %c0_0 = arith.constant 0 : index
    %c0_1 = arith.constant 0 : index
    %c0_2 = arith.constant 0 : index
    %0 = vector.load %arg2[%c0, %c0_0, %c0_1, %c0_2] : memref<1x16x16x8xf32, #tpu.memory_space<vmem>>, vector<1x16x16x8xf32>
    %1 = vector.shape_cast %0 : vector<1x16x16x8xf32> to vector<16x16x8xf32>
    %2 = vector.shape_cast %1 : vector<16x16x8xf32> to vector<256x8xf32>
    %c0_3 = arith.constant 0 : index
    %c0_4 = arith.constant 0 : index
    %3 = vector.load %arg3[%c0_3, %c0_4] : memref<8x8xf32, #tpu.memory_space<vmem>>, vector<8x8xf32>
    %cst = arith.constant dense<0.000000e+00> : vector<256x8xf32>
    %4 = tpu.matmul %2, %3, %cst {dimension_numbers = #tpu.dot_dimension_numbers<[1], [0], [0], [1], [0, 0, 1, 1], [], []>} : vector<256x8xf32>, vector<8x8xf32>, vector<256x8xf32> -> vector<256x8xf32>
    %c0_5 = arith.constant 0 : index
    %c0_6 = arith.constant 0 : index
    %5 = vector.load %arg4[%c0_5, %c0_6] : memref<1x8xf32, #tpu.memory_space<vmem>>, vector<1x8xf32>
    %6 = vector.broadcast %5 : vector<1x8xf32> to vector<256x8xf32>
    %7 = arith.addf %4, %6 : vector<256x8xf32>
    %cst_7 = arith.constant 3.000000e+00 : f32
    %8 = vector.broadcast %cst_7 : f32 to vector<256x8xf32>
    %9 = arith.addf %7, %8 : vector<256x8xf32>
    %cst_8 = arith.constant 0.000000e+00 : f32
    %cst_9 = arith.constant 6.000000e+00 : f32
    %10 = vector.broadcast %cst_8 : f32 to vector<256x8xf32>
    %11 = arith.maximumf %10, %9 : vector<256x8xf32>
    %12 = vector.broadcast %cst_9 : f32 to vector<256x8xf32>
    %13 = arith.minimumf %12, %11 : vector<256x8xf32>
    %cst_10 = arith.constant 0.166666672 : f32
    %14 = vector.broadcast %cst_10 : f32 to vector<256x8xf32>
    %15 = arith.mulf %13, %14 : vector<256x8xf32>
    %16 = arith.mulf %7, %15 : vector<256x8xf32>
    %17 = vector.shape_cast %16 : vector<256x8xf32> to vector<16x16x8xf32>
    %c0_11 = arith.constant 0 : index
    %c0_12 = arith.constant 0 : index
    %18 = vector.load %arg5[%c0_11, %c0_12] : memref<9x8xf32, #tpu.memory_space<vmem>>, vector<9x8xf32>
    %cst_13 = arith.constant 0.000000e+00 : f32
    %19 = vector.broadcast %cst_13 : f32 to vector<18x18x8xf32>
    %c0_14 = arith.constant 0 : index
    %c0_15 = arith.constant 0 : index
    %c0_16 = arith.constant 0 : index
    %20 = vector.load %arg14[%c0_14, %c0_15, %c0_16] : memref<18x18x8xf32, #tpu.memory_space<vmem>>, vector<18x18x8xf32>
    tpu.vector_store %arg14[%c0_14, %c0_15, %c0_16], %19 {strides = array<i32>} : memref<18x18x8xf32, #tpu.memory_space<vmem>>, vector<18x18x8xf32>,
    %c1 = arith.constant 1 : index
    %c1_17 = arith.constant 1 : index
    %c0_18 = arith.constant 0 : index
    %21 = vector.load %arg14[%c1, %c1_17, %c0_18] : memref<18x18x8xf32, #tpu.memory_space<vmem>>, vector<16x16x8xf32>
    tpu.vector_store %arg14[%c1, %c1_17, %c0_18], %17 {strides = array<i32>} : memref<18x18x8xf32, #tpu.memory_space<vmem>>, vector<16x16x8xf32>,
    %cst_19 = arith.constant 0.000000e+00 : f32
    %22 = vector.broadcast %cst_19 : f32 to vector<16x16x8xf32>
    %c0_20 = arith.constant 0 : index
    %c0_21 = arith.constant 0 : index
    %c0_22 = arith.constant 0 : index
    %23 = vector.load %arg14[%c0_20, %c0_21, %c0_22] : memref<18x18x8xf32, #tpu.memory_space<vmem>>, vector<16x16x8xf32>
    %24 = vector.extract_strided_slice %18 {offsets = [0, 0], sizes = [1, 8], strides = [1, 1]} : vector<9x8xf32> to vector<1x8xf32>
    %25 = vector.shape_cast %24 : vector<1x8xf32> to vector<1x1x8xf32>
    %26 = vector.broadcast %25 : vector<1x1x8xf32> to vector<16x16x8xf32>
    %27 = arith.mulf %23, %26 : vector<16x16x8xf32>
    %28 = arith.addf %22, %27 : vector<16x16x8xf32>
    %c0_23 = arith.constant 0 : index
    %c1_24 = arith.constant 1 : index
    %c0_25 = arith.constant 0 : index
    %29 = vector.load %arg14[%c0_23, %c1_24, %c0_25] : memref<18x18x8xf32, #tpu.memory_space<vmem>>, vector<16x16x8xf32>
    %30 = vector.extract_strided_slice %18 {offsets = [1, 0], sizes = [1, 8], strides = [1, 1]} : vector<9x8xf32> to vector<1x8xf32>
    %31 = vector.shape_cast %30 : vector<1x8xf32> to vector<1x1x8xf32>
    %32 = vector.broadcast %31 : vector<1x1x8xf32> to vector<16x16x8xf32>
    %33 = arith.mulf %29, %32 : vector<16x16x8xf32>
    %34 = arith.addf %28, %33 : vector<16x16x8xf32>
    %c0_26 = arith.constant 0 : index
    %c2 = arith.constant 2 : index
    %c0_27 = arith.constant 0 : index
    %35 = vector.load %arg14[%c0_26, %c2, %c0_27] : memref<18x18x8xf32, #tpu.memory_space<vmem>>, vector<16x16x8xf32>
    %36 = vector.extract_strided_slice %18 {offsets = [2, 0], sizes = [1, 8], strides = [1, 1]} : vector<9x8xf32> to vector<1x8xf32>
    %37 = vector.shape_cast %36 : vector<1x8xf32> to vector<1x1x8xf32>
    %38 = vector.broadcast %37 : vector<1x1x8xf32> to vector<16x16x8xf32>
    %39 = arith.mulf %35, %38 : vector<16x16x8xf32>
    %40 = arith.addf %34, %39 : vector<16x16x8xf32>
    %c1_28 = arith.constant 1 : index
    %c0_29 = arith.constant 0 : index
    %c0_30 = arith.constant 0 : index
    %41 = vector.load %arg14[%c1_28, %c0_29, %c0_30] : memref<18x18x8xf32, #tpu.memory_space<vmem>>, vector<16x16x8xf32>
    %42 = vector.extract_strided_slice %18 {offsets = [3, 0], sizes = [1, 8], strides = [1, 1]} : vector<9x8xf32> to vector<1x8xf32>
    %43 = vector.shape_cast %42 : vector<1x8xf32> to vector<1x1x8xf32>
    %44 = vector.broadcast %43 : vector<1x1x8xf32> to vector<16x16x8xf32>
    %45 = arith.mulf %41, %44 : vector<16x16x8xf32>
    %46 = arith.addf %40, %45 : vector<16x16x8xf32>
    %c1_31 = arith.constant 1 : index
    %c1_32 = arith.constant 1 : index
    %c0_33 = arith.constant 0 : index
    %47 = vector.load %arg14[%c1_31, %c1_32, %c0_33] : memref<18x18x8xf32, #tpu.memory_space<vmem>>, vector<16x16x8xf32>
    %48 = vector.extract_strided_slice %18 {offsets = [4, 0], sizes = [1, 8], strides = [1, 1]} : vector<9x8xf32> to vector<1x8xf32>
    %49 = vector.shape_cast %48 : vector<1x8xf32> to vector<1x1x8xf32>
    %50 = vector.broadcast %49 : vector<1x1x8xf32> to vector<16x16x8xf32>
    %51 = arith.mulf %47, %50 : vector<16x16x8xf32>
    %52 = arith.addf %46, %51 : vector<16x16x8xf32>
    %c1_34 = arith.constant 1 : index
    %c2_35 = arith.constant 2 : index
    %c0_36 = arith.constant 0 : index
    %53 = vector.load %arg14[%c1_34, %c2_35, %c0_36] : memref<18x18x8xf32, #tpu.memory_space<vmem>>, vector<16x16x8xf32>
    %54 = vector.extract_strided_slice %18 {offsets = [5, 0], sizes = [1, 8], strides = [1, 1]} : vector<9x8xf32> to vector<1x8xf32>
    %55 = vector.shape_cast %54 : vector<1x8xf32> to vector<1x1x8xf32>
    %56 = vector.broadcast %55 : vector<1x1x8xf32> to vector<16x16x8xf32>
    %57 = arith.mulf %53, %56 : vector<16x16x8xf32>
    %58 = arith.addf %52, %57 : vector<16x16x8xf32>
    %c2_37 = arith.constant 2 : index
    %c0_38 = arith.constant 0 : index
    %c0_39 = arith.constant 0 : index
    %59 = vector.load %arg14[%c2_37, %c0_38, %c0_39] : memref<18x18x8xf32, #tpu.memory_space<vmem>>, vector<16x16x8xf32>
    %60 = vector.extract_strided_slice %18 {offsets = [6, 0], sizes = [1, 8], strides = [1, 1]} : vector<9x8xf32> to vector<1x8xf32>
    %61 = vector.shape_cast %60 : vector<1x8xf32> to vector<1x1x8xf32>
    %62 = vector.broadcast %61 : vector<1x1x8xf32> to vector<16x16x8xf32>
    %63 = arith.mulf %59, %62 : vector<16x16x8xf32>
    %64 = arith.addf %58, %63 : vector<16x16x8xf32>
    %c2_40 = arith.constant 2 : index
    %c1_41 = arith.constant 1 : index
    %c0_42 = arith.constant 0 : index
    %65 = vector.load %arg14[%c2_40, %c1_41, %c0_42] : memref<18x18x8xf32, #tpu.memory_space<vmem>>, vector<16x16x8xf32>
    %66 = vector.extract_strided_slice %18 {offsets = [7, 0], sizes = [1, 8], strides = [1, 1]} : vector<9x8xf32> to vector<1x8xf32>
    %67 = vector.shape_cast %66 : vector<1x8xf32> to vector<1x1x8xf32>
    %68 = vector.broadcast %67 : vector<1x1x8xf32> to vector<16x16x8xf32>
    %69 = arith.mulf %65, %68 : vector<16x16x8xf32>
    %70 = arith.addf %64, %69 : vector<16x16x8xf32>
    %c2_43 = arith.constant 2 : index
    %c2_44 = arith.constant 2 : index
    %c0_45 = arith.constant 0 : index
    %71 = vector.load %arg14[%c2_43, %c2_44, %c0_45] : memref<18x18x8xf32, #tpu.memory_space<vmem>>, vector<16x16x8xf32>
    %72 = vector.extract_strided_slice %18 {offsets = [8, 0], sizes = [1, 8], strides = [1, 1]} : vector<9x8xf32> to vector<1x8xf32>
    %73 = vector.shape_cast %72 : vector<1x8xf32> to vector<1x1x8xf32>
    %74 = vector.broadcast %73 : vector<1x1x8xf32> to vector<16x16x8xf32>
    %75 = arith.mulf %71, %74 : vector<16x16x8xf32>
    %76 = arith.addf %70, %75 : vector<16x16x8xf32>
    %77 = vector.shape_cast %76 : vector<16x16x8xf32> to vector<256x8xf32>
    %c0_46 = arith.constant 0 : index
    %c0_47 = arith.constant 0 : index
    %78 = vector.load %arg6[%c0_46, %c0_47] : memref<1x8xf32, #tpu.memory_space<vmem>>, vector<1x8xf32>
    %79 = vector.broadcast %78 : vector<1x8xf32> to vector<256x8xf32>
    %80 = arith.addf %77, %79 : vector<256x8xf32>
    %c0_48 = arith.constant 0 : index
    %c0_49 = arith.constant 0 : index
    %81 = vector.load %arg7[%c0_48, %c0_49] : memref<8x8xf32, #tpu.memory_space<vmem>>, vector<8x8xf32>
    %cst_50 = arith.constant dense<0.000000e+00> : vector<256x8xf32>
    %82 = tpu.matmul %80, %81, %cst_50 {dimension_numbers = #tpu.dot_dimension_numbers<[1], [0], [0], [1], [0, 0, 1, 1], [], []>} : vector<256x8xf32>, vector<8x8xf32>, vector<256x8xf32> -> vector<256x8xf32>
    %c0_51 = arith.constant 0 : index
    %c0_52 = arith.constant 0 : index
    %83 = vector.load %arg8[%c0_51, %c0_52] : memref<1x8xf32, #tpu.memory_space<vmem>>, vector<1x8xf32>
    %84 = vector.broadcast %83 : vector<1x8xf32> to vector<256x8xf32>
    %85 = arith.addf %82, %84 : vector<256x8xf32>
    %cst_53 = arith.constant dense<0.000000e+00> : vector<8xf32>
    %86 = vector.multi_reduction <add>, %85, %cst_53 [0] : vector<256x8xf32> to vector<8xf32>
    %87 = vector.shape_cast %86 : vector<8xf32> to vector<1x8xf32>
    %cst_54 = arith.constant 2.560000e+02 : f32
    %88 = vector.broadcast %cst_54 : f32 to vector<1x8xf32>
    %89 = arith.divf %87, %88 : vector<1x8xf32>
    %90 = vector.broadcast %89 : vector<1x8xf32> to vector<256x8xf32>
    %91 = arith.subf %85, %90 : vector<256x8xf32>
    %92 = arith.mulf %91, %91 : vector<256x8xf32>
    %cst_55 = arith.constant dense<0.000000e+00> : vector<8xf32>
    %93 = vector.multi_reduction <add>, %92, %cst_55 [0] : vector<256x8xf32> to vector<8xf32>
    %94 = vector.shape_cast %93 : vector<8xf32> to vector<1x8xf32>
    %cst_56 = arith.constant 2.560000e+02 : f32
    %95 = vector.broadcast %cst_56 : f32 to vector<1x8xf32>
    %96 = arith.divf %94, %95 : vector<1x8xf32>
    %97 = vector.broadcast %89 : vector<1x8xf32> to vector<256x8xf32>
    %98 = arith.subf %85, %97 : vector<256x8xf32>
    %cst_57 = arith.constant 9.99999974E-6 : f32
    %99 = vector.broadcast %cst_57 : f32 to vector<1x8xf32>
    %100 = arith.addf %96, %99 : vector<1x8xf32>
    %101 = math.rsqrt %100 : vector<1x8xf32>
    %102 = vector.broadcast %101 : vector<1x8xf32> to vector<256x8xf32>
    %103 = arith.mulf %98, %102 : vector<256x8xf32>
    %cst_58 = arith.constant 3.000000e+00 : f32
    %104 = vector.broadcast %cst_58 : f32 to vector<256x8xf32>
    %105 = arith.addf %103, %104 : vector<256x8xf32>
    %cst_59 = arith.constant 0.000000e+00 : f32
    %cst_60 = arith.constant 6.000000e+00 : f32
    %106 = vector.broadcast %cst_59 : f32 to vector<256x8xf32>
    %107 = arith.maximumf %106, %105 : vector<256x8xf32>
    %108 = vector.broadcast %cst_60 : f32 to vector<256x8xf32>
    %109 = arith.minimumf %108, %107 : vector<256x8xf32>
    %cst_61 = arith.constant 0.166666672 : f32
    %110 = vector.broadcast %cst_61 : f32 to vector<256x8xf32>
    %111 = arith.mulf %109, %110 : vector<256x8xf32>
    %112 = arith.mulf %103, %111 : vector<256x8xf32>
    %cst_62 = arith.constant dense<0.000000e+00> : vector<8xf32>
    %113 = vector.multi_reduction <add>, %112, %cst_62 [0] : vector<256x8xf32> to vector<8xf32>
    %114 = vector.shape_cast %113 : vector<8xf32> to vector<1x8xf32>
    %cst_63 = arith.constant 2.560000e+02 : f32
    %115 = vector.broadcast %cst_63 : f32 to vector<1x8xf32>
    %116 = arith.divf %114, %115 : vector<1x8xf32>
    %c0_64 = arith.constant 0 : index
    %c0_65 = arith.constant 0 : index
    %117 = vector.load %arg9[%c0_64, %c0_65] : memref<8x2xf32, #tpu.memory_space<vmem>>, vector<8x2xf32>
    %cst_66 = arith.constant dense<0.000000e+00> : vector<1x2xf32>
    %118 = tpu.matmul %116, %117, %cst_66 {dimension_numbers = #tpu.dot_dimension_numbers<[1], [0], [0], [1], [0, 0, 1, 1], [], []>} : vector<1x8xf32>, vector<8x2xf32>, vector<1x2xf32> -> vector<1x2xf32>
    %c0_67 = arith.constant 0 : index
    %c0_68 = arith.constant 0 : index
    %119 = vector.load %arg10[%c0_67, %c0_68] : memref<1x2xf32, #tpu.memory_space<vmem>>, vector<1x2xf32>
    %120 = arith.addf %118, %119 : vector<1x2xf32>
    %cst_69 = arith.constant 0.000000e+00 : f32
    %121 = vector.broadcast %cst_69 : f32 to vector<1x2xf32>
    %122 = arith.maximumf %120, %121 : vector<1x2xf32>
    %c0_70 = arith.constant 0 : index
    %c0_71 = arith.constant 0 : index
    %123 = vector.load %arg11[%c0_70, %c0_71] : memref<2x8xf32, #tpu.memory_space<vmem>>, vector<2x8xf32>
    %cst_72 = arith.constant dense<0.000000e+00> : vector<1x8xf32>
    %124 = tpu.matmul %122, %123, %cst_72 {dimension_numbers = #tpu.dot_dimension_numbers<[1], [0], [0], [1], [0, 0, 1, 1], [], []>} : vector<1x2xf32>, vector<2x8xf32>, vector<1x8xf32> -> vector<1x8xf32>
    %cst_73 = arith.constant 3.000000e+00 : f32
    %125 = vector.broadcast %cst_73 : f32 to vector<1x8xf32>
    %126 = arith.addf %124, %125 : vector<1x8xf32>
    %cst_74 = arith.constant 0.000000e+00 : f32
    %cst_75 = arith.constant 6.000000e+00 : f32
    %127 = vector.broadcast %cst_74 : f32 to vector<1x8xf32>
    %128 = arith.maximumf %127, %126 : vector<1x8xf32>
    %129 = vector.broadcast %cst_75 : f32 to vector<1x8xf32>
    %130 = arith.minimumf %129, %128 : vector<1x8xf32>
    %cst_76 = arith.constant 0.166666672 : f32
    %131 = vector.broadcast %cst_76 : f32 to vector<1x8xf32>
    %132 = arith.mulf %130, %131 : vector<1x8xf32>
    %133 = vector.broadcast %132 : vector<1x8xf32> to vector<256x8xf32>
    %134 = arith.mulf %112, %133 : vector<256x8xf32>
    %c0_77 = arith.constant 0 : index
    %c0_78 = arith.constant 0 : index
    %c0_79 = arith.constant 0 : index
    %135 = vector.load %arg13[%c0_77, %c0_78, %c0_79] : memref<1x256x8xf32, #tpu.memory_space<vmem>>, vector<1x256x8xf32>
    %136 = vector.shape_cast %135 : vector<1x256x8xf32> to vector<256x8xf32>
    %137 = vector.shape_cast %134 : vector<256x8xf32> to vector<1x256x8xf32>
    tpu.vector_store %arg13[%c0_77, %c0_78, %c0_79], %137 {strides = array<i32>} : memref<1x256x8xf32, #tpu.memory_space<vmem>>, vector<1x256x8xf32>,
    %c0_80 = arith.constant 0 : index
    %c0_81 = arith.constant 0 : index
    %c0_82 = arith.constant 0 : index
    %c0_83 = arith.constant 0 : index
    %138 = vector.load %arg1[%c0_80, %c0_81, %c0_82, %c0_83] : memref<1x16x16x8xf32, #tpu.memory_space<vmem>>, vector<1x16x16x8xf32>
    %139 = vector.shape_cast %138 : vector<1x16x16x8xf32> to vector<16x16x8xf32>
    %140 = vector.shape_cast %139 : vector<16x16x8xf32> to vector<256x8xf32>
    %c0_84 = arith.constant 0 : index
    %c0_85 = arith.constant 0 : index
    %c0_86 = arith.constant 0 : index
    %141 = vector.load %arg12[%c0_84, %c0_85, %c0_86] : memref<1x256x8xf32, #tpu.memory_space<vmem>>, vector<1x256x8xf32>
    %142 = vector.shape_cast %141 : vector<1x256x8xf32> to vector<256x8xf32>
    %143 = vector.shape_cast %140 : vector<256x8xf32> to vector<1x256x8xf32>
    tpu.vector_store %arg12[%c0_84, %c0_85, %c0_86], %143 {strides = array<i32>} : memref<1x256x8xf32, #tpu.memory_space<vmem>>, vector<1x256x8xf32>,
    return
  }
  func.func @transform_0(%arg0: i32) -> (i32, i32, i32, i32) {
    %c0_i32 = arith.constant 0 : i32
    %c0_i32_0 = arith.constant 0 : i32
    %c0_i32_1 = arith.constant 0 : i32
    %c0_i32_2 = arith.constant 0 : i32
    return %arg0, %c0_i32, %c0_i32_0, %c0_i32_1 : i32, i32, i32, i32
  }
  func.func @transform_1(%arg0: i32) -> (i32, i32, i32, i32) {
    %c0_i32 = arith.constant 0 : i32
    %c0_i32_0 = arith.constant 0 : i32
    %c0_i32_1 = arith.constant 0 : i32
    %c0_i32_2 = arith.constant 0 : i32
    return %arg0, %c0_i32, %c0_i32_0, %c0_i32_1 : i32, i32, i32, i32
  }
  func.func @transform_2(%arg0: i32) -> (i32, i32) {
    %c0_i32 = arith.constant 0 : i32
    %c0_i32_0 = arith.constant 0 : i32
    %c0_i32_1 = arith.constant 0 : i32
    return %c0_i32, %c0_i32_0 : i32, i32
  }
  func.func @transform_3(%arg0: i32) -> (i32, i32) {
    %c0_i32 = arith.constant 0 : i32
    %c0_i32_0 = arith.constant 0 : i32
    %c0_i32_1 = arith.constant 0 : i32
    return %c0_i32, %c0_i32_0 : i32, i32
  }
  func.func @transform_4(%arg0: i32) -> (i32, i32) {
    %c0_i32 = arith.constant 0 : i32
    %c0_i32_0 = arith.constant 0 : i32
    %c0_i32_1 = arith.constant 0 : i32
    return %c0_i32, %c0_i32_0 : i32, i32
  }
  func.func @transform_5(%arg0: i32) -> (i32, i32) {
    %c0_i32 = arith.constant 0 : i32
    %c0_i32_0 = arith.constant 0 : i32
    %c0_i32_1 = arith.constant 0 : i32
    return %c0_i32, %c0_i32_0 : i32, i32
  }
  func.func @transform_6(%arg0: i32) -> (i32, i32) {
    %c0_i32 = arith.constant 0 : i32
    %c0_i32_0 = arith.constant 0 : i32
    %c0_i32_1 = arith.constant 0 : i32
    return %c0_i32, %c0_i32_0 : i32, i32
  }
  func.func @transform_7(%arg0: i32) -> (i32, i32) {
    %c0_i32 = arith.constant 0 : i32
    %c0_i32_0 = arith.constant 0 : i32
    %c0_i32_1 = arith.constant 0 : i32
    return %c0_i32, %c0_i32_0 : i32, i32
  }
  func.func @transform_8(%arg0: i32) -> (i32, i32) {
    %c0_i32 = arith.constant 0 : i32
    %c0_i32_0 = arith.constant 0 : i32
    %c0_i32_1 = arith.constant 0 : i32
    return %c0_i32, %c0_i32_0 : i32, i32
  }
  func.func @transform_9(%arg0: i32) -> (i32, i32) {
    %c0_i32 = arith.constant 0 : i32
    %c0_i32_0 = arith.constant 0 : i32
    %c0_i32_1 = arith.constant 0 : i32
    return %c0_i32, %c0_i32_0 : i32, i32
  }
  func.func @transform_10(%arg0: i32) -> (i32, i32) {
    %c0_i32 = arith.constant 0 : i32
    %c0_i32_0 = arith.constant 0 : i32
    %c0_i32_1 = arith.constant 0 : i32
    return %c0_i32, %c0_i32_0 : i32, i32
  }
  func.func @transform_11(%arg0: i32) -> (i32, i32, i32) {
    %c0_i32 = arith.constant 0 : i32
    %c0_i32_0 = arith.constant 0 : i32
    %c0_i32_1 = arith.constant 0 : i32
    return %arg0, %c0_i32, %c0_i32_0 : i32, i32, i32
  }
  func.func @transform_12(%arg0: i32) -> (i32, i32, i32) {
    %c0_i32 = arith.constant 0 : i32
    %c0_i32_0 = arith.constant 0 : i32
    %c0_i32_1 = arith.constant 0 : i32
    return %arg0, %c0_i32, %c0_i32_0 : i32, i32, i32
  }
}

</mosaic_0001>

<llo_original>
// kernel: squeeze.8
$region0: #{squeeze.8}
  %s0 = inlined_call_operand.vmem [shape: f32[8,3,3], index: 0, kind: input, shape index: {}]
  %s1 = inlined_call_operand.vmem [shape: f32[8,9], index: 1, kind: output, shape index: {}]
  $region1: #{squeeze.8} parent=0
    #allocation0 [shape = 'u8[12288]{0}', space=vmem, size = 0x3000, scoped, tag = 'scoped mem for input reshape']
    %s3 = sshllo.u32 0, 4
    %s4 = smul.addr 4, 2
    %s5 = scalar_lea.vmem %s0, %s4
    %v6 = vld [vmem:[%s5] sm:%s3]
    %s7 = scalar_lea.vmem [#allocation0], 16
    %8 = vst [vmem:[%s7] sm:%s3] %v6
    %s9 = scalar_lea.vmem %s0, 4
    %v10 = vld [vmem:[%s9] sm:%s3]
    %s11 = scalar_lea.vmem [#allocation0], 8
    %12 = vst [vmem:[%s11] sm:%s3] %v10
    %v13 = vld [vmem:[%s0] sm:%s3]
    %14 = vst [vmem:[#allocation0] sm:%s3] %v13
    %v15 = vld [vmem:[#allocation0] sm:$0x7]
    %vm16 = vcmask 64512
    %17 = vst.msk [vmem:[%s1] sm:$0x7] %vm16, %v15
    %s18 = scalar_lea.vmem [#allocation0], 8
    %v19 = vld [vmem:[%s18] sm:$0x7]
    %vm20 = vcmask 64512
    %s21 = scalar_lea.vmem %s1, 3
    %22 = vst.msk [vmem:[%s21] sm:$0x7] %vm20, %v19
    %s23 = scalar_lea.vmem [#allocation0], 16
    %v24 = vld [vmem:[%s23] sm:$0x7]
    %vm25 = vcmask 64512
    %s26 = scalar_lea.vmem %s1, 6
    %27 = vst.msk [vmem:[%s26] sm:$0x7] %vm25, %v24

// kernel: ibn_shufflenet_forward.1
$region0: #{ibn_shufflenet_forward.1}
  #allocation0 [shape = 'u32[]', space=smem, size = 0x4, offset = 0x4, fixed_abs, tag = 'smem constant byte address 0x4 - core index']
  #allocation1 [shape = 'u32[144,128]{1,0:T(1,128)}', space=vmem, size = 0x12000, scoped, tag = 'internal scratch']
  #allocation2 [shape = 'f32[18,18,8]{2,1,0:T(8,128)}', space=vmem, size = 0x36000, scoped, tag = 'scratch operand']
  %s0 = inlined_call_operand.vmem [shape: f32[2,16,16,8], index: 0, kind: input, shape index: {}]
  %s1 = inlined_call_operand.vmem [shape: f32[2,16,16,8], index: 1, kind: input, shape index: {}]
  %s2 = inlined_call_operand.vmem [shape: f32[8,8], index: 2, kind: input, shape index: {}]
  %s3 = inlined_call_operand.vmem [shape: f32[1,8], index: 3, kind: input, shape index: {}]
  %s4 = inlined_call_operand.vmem [shape: f32[9,8], index: 4, kind: input, shape index: {}]
  %s5 = inlined_call_operand.vmem [shape: f32[1,8], index: 5, kind: input, shape index: {}]
  %s6 = inlined_call_operand.vmem [shape: f32[8,8], index: 6, kind: input, shape index: {}]
  %s7 = inlined_call_operand.vmem [shape: f32[1,8], index: 7, kind: input, shape index: {}]
  %s8 = inlined_call_operand.vmem [shape: f32[8,2], index: 8, kind: input, shape index: {}]
  %s9 = inlined_call_operand.vmem [shape: f32[1,2], index: 9, kind: input, shape index: {}]
  %s10 = inlined_call_operand.vmem [shape: f32[2,8], index: 10, kind: input, shape index: {}]
  %s11 = inlined_call_operand.vmem [shape: f32[2,256,8], index: 11, kind: output, shape index: {0}]
  %s12 = inlined_call_operand.vmem [shape: f32[2,256,8], index: 12, kind: output, shape index: {1}]
  %13 = xla_tuple %s11, %s12
  %s14 = sld [smem:[#allocation0]]
  $region85: #{ibn_shufflenet_forward.1} parent=0
    _
  %s16 = ssub.s32 1, %s14
  %s17 = scalar_select 0, %s16, %s14
  loop: start=0, step=1, limit=4
  $region2: #{ibn_shufflenet_forward.1} parent=0 // loop_pre_header
    _
  $region3: #{ibn_shufflenet_forward.1} parent=0 // loop_header
    %s19 = sphi 0, %s23
    %p20 = scmp.ge.s32.totalorder %s19, 4
    %s29 = sphi 0, %s31
    %s32 = sphi 0, %s29
    %s33 = sphi 0, %s32
    %s49 = sphi 0, %s33
    %s55 = sphi 0, %s57
    %s58 = sphi 0, %s55
    %s59 = sphi 0, %s58
    %s75 = sphi 0, %s59
    %s79 = sphi 0, %s79
    %s81 = sphi 0, %s79
    %s82 = sphi 0, %s81
    %s96 = sphi 0, %s82
    %s100 = sphi 0, %s100
    %s102 = sphi 0, %s100
    %s103 = sphi 0, %s102
    %s117 = sphi 0, %s103
    %s121 = sphi 0, %s121
    %s123 = sphi 0, %s121
    %s124 = sphi 0, %s123
    %s138 = sphi 0, %s124
    %s142 = sphi 0, %s142
    %s144 = sphi 0, %s142
    %s145 = sphi 0, %s144
    %s159 = sphi 0, %s145
    %s163 = sphi 0, %s163
    %s165 = sphi 0, %s163
    %s166 = sphi 0, %s165
    %s180 = sphi 0, %s166
    %s184 = sphi 0, %s184
    %s186 = sphi 0, %s184
    %s187 = sphi 0, %s186
    %s201 = sphi 0, %s187
    %s205 = sphi 0, %s205
    %s207 = sphi 0, %s205
    %s208 = sphi 0, %s207
    %s222 = sphi 0, %s208
    %s226 = sphi 0, %s226
    %s228 = sphi 0, %s226
    %s229 = sphi 0, %s228
    %s243 = sphi 0, %s229
    %s247 = sphi 0, %s247
    %s249 = sphi 0, %s247
    %s250 = sphi 0, %s249
    %s264 = sphi 0, %s250
    %s270 = sphi 0, %s272
    %s273 = sphi 0, %s270
    %s274 = sphi 0, %s273
    %s290 = sphi 0, %s274
    %s296 = sphi 0, %s298
    %s299 = sphi 0, %s296
    %s300 = sphi 0, %s299
    %s316 = sphi 0, %s300
  $region4: #{ibn_shufflenet_forward.1} parent=0 // loop_header_branch
    %22 = sbr.rel (%p20) target = $region8
  $region5: #{ibn_shufflenet_forward.1} parent=0 // loop_body
    %s24 = ssub.s32 %s19, 1
    %s25 = ssub.s32 %s19, 2
    %s26 = sadd.s32 %s19, 1
    %s27 = ssub.s32 %s19, %s26
    %p28 = scmp.eq.s32.totalorder %s27, 0
    %s30 = sadd.s32 %s29, 1
    %s31 = scalar_select %p28, %s29, %s30
    %p34 = pneg %p28
    %p35 = scmp.eq.s32.totalorder %s19, 1
    %p36 = por %p34, %p35
    %p37 = scmp.ne.s32.totalorder %s29, %s32
    %p38 = scmp.eq.s32.totalorder %s19, 0
    %p39 = por %p37, %p38
    %p40 = scmp.ne.s32.totalorder %s29, %s32
    %p41 = scmp.eq.s32.totalorder %s24, 1
    %p42 = por %p40, %p41
    %p43 = scmp.ne.s32.totalorder %s32, %s33
    %p44 = scmp.eq.s32.totalorder %s24, 0
    %p45 = por %p43, %p44
    %p46 = scmp.ne.s32.totalorder %s32, %s33
    %p47 = scmp.eq.s32.totalorder %s25, 1
    %p48 = por %p46, %p47
    %p50 = scmp.ne.s32.totalorder %s33, %s49
    %p51 = scmp.eq.s32.totalorder %s25, 0
    %p52 = por %p50, %p51
    %s53 = ssub.s32 %s19, %s26
    %p54 = scmp.eq.s32.totalorder %s53, 0
    %s56 = sadd.s32 %s55, 1
    %s57 = scalar_select %p54, %s55, %s56
    %p60 = pneg %p54
    %p61 = scmp.eq.s32.totalorder %s19, 1
    %p62 = por %p60, %p61
    %p63 = scmp.ne.s32.totalorder %s55, %s58
    %p64 = scmp.eq.s32.totalorder %s19, 0
    %p65 = por %p63, %p64
    %p66 = scmp.ne.s32.totalorder %s55, %s58
    %p67 = scmp.eq.s32.totalorder %s24, 1
    %p68 = por %p66, %p67
    %p69 = scmp.ne.s32.totalorder %s58, %s59
    %p70 = scmp.eq.s32.totalorder %s24, 0
    %p71 = por %p69, %p70
    %p72 = scmp.ne.s32.totalorder %s58, %s59
    %p73 = scmp.eq.s32.totalorder %s25, 1
    %p74 = por %p72, %p73
    %p76 = scmp.ne.s32.totalorder %s59, %s75
    %p77 = scmp.eq.s32.totalorder %s25, 0
    %p78 = por %p76, %p77
    %s80 = sadd.s32 %s79, 1
    %p83 = scmp.eq.s32.totalorder %s19, 1
    %p84 = scmp.ne.s32.totalorder %s79, %s81
    %p85 = scmp.eq.s32.totalorder %s19, 0
    %p86 = por %p84, %p85
    %p87 = scmp.ne.s32.totalorder %s79, %s81
    %p88 = scmp.eq.s32.totalorder %s24, 1
    %p89 = por %p87, %p88
    %p90 = scmp.ne.s32.totalorder %s81, %s82
    %p91 = scmp.eq.s32.totalorder %s24, 0
    %p92 = por %p90, %p91
    %p93 = scmp.ne.s32.totalorder %s81, %s82
    %p94 = scmp.eq.s32.totalorder %s25, 1
    %p95 = por %p93, %p94
    %p97 = scmp.ne.s32.totalorder %s82, %s96
    %p98 = scmp.eq.s32.totalorder %s25, 0
    %p99 = por %p97, %p98
    %s101 = sadd.s32 %s100, 1
    %p104 = scmp.eq.s32.totalorder %s19, 1
    %p105 = scmp.ne.s32.totalorder %s100, %s102
    %p106 = scmp.eq.s32.totalorder %s19, 0
    %p107 = por %p105, %p106
    %p108 = scmp.ne.s32.totalorder %s100, %s102
    %p109 = scmp.eq.s32.totalorder %s24, 1
    %p110 = por %p108, %p109
    %p111 = scmp.ne.s32.totalorder %s102, %s103
    %p112 = scmp.eq.s32.totalorder %s24, 0
    %p113 = por %p111, %p112
    %p114 = scmp.ne.s32.totalorder %s102, %s103
    %p115 = scmp.eq.s32.totalorder %s25, 1
    %p116 = por %p114, %p115
    %p118 = scmp.ne.s32.totalorder %s103, %s117
    %p119 = scmp.eq.s32.totalorder %s25, 0
    %p120 = por %p118, %p119
    %s122 = sadd.s32 %s121, 1
    %p125 = scmp.eq.s32.totalorder %s19, 1
    %p126 = scmp.ne.s32.totalorder %s121, %s123
    %p127 = scmp.eq.s32.totalorder %s19, 0
    %p128 = por %p126, %p127
    %p129 = scmp.ne.s32.totalorder %s121, %s123
    %p130 = scmp.eq.s32.totalorder %s24, 1
    %p131 = por %p129, %p130
    %p132 = scmp.ne.s32.totalorder %s123, %s124
    %p133 = scmp.eq.s32.totalorder %s24, 0
    %p134 = por %p132, %p133
    %p135 = scmp.ne.s32.totalorder %s123, %s124
    %p136 = scmp.eq.s32.totalorder %s25, 1
    %p137 = por %p135, %p136
    %p139 = scmp.ne.s32.totalorder %s124, %s138
    %p140 = scmp.eq.s32.totalorder %s25, 0
    %p141 = por %p139, %p140
    %s143 = sadd.s32 %s142, 1
    %p146 = scmp.eq.s32.totalorder %s19, 1
    %p147 = scmp.ne.s32.totalorder %s142, %s144
    %p148 = scmp.eq.s32.totalorder %s19, 0
    %p149 = por %p147, %p148
    %p150 = scmp.ne.s32.totalorder %s142, %s144
    %p151 = scmp.eq.s32.totalorder %s24, 1
    %p152 = por %p150, %p151
    %p153 = scmp.ne.s32.totalorder %s144, %s145
    %p154 = scmp.eq.s32.totalorder %s24, 0
    %p155 = por %p153, %p154
    %p156 = scmp.ne.s32.totalorder %s144, %s145
    %p157 = scmp.eq.s32.totalorder %s25, 1
    %p158 = por %p156, %p157
    %p160 = scmp.ne.s32.totalorder %s145, %s159
    %p161 = scmp.eq.s32.totalorder %s25, 0
    %p162 = por %p160, %p161
    %s164 = sadd.s32 %s163, 1
    %p167 = scmp.eq.s32.totalorder %s19, 1
    %p168 = scmp.ne.s32.totalorder %s163, %s165
    %p169 = scmp.eq.s32.totalorder %s19, 0
    %p170 = por %p168, %p169
    %p171 = scmp.ne.s32.totalorder %s163, %s165
    %p172 = scmp.eq.s32.totalorder %s24, 1
    %p173 = por %p171, %p172
    %p174 = scmp.ne.s32.totalorder %s165, %s166
    %p175 = scmp.eq.s32.totalorder %s24, 0
    %p176 = por %p174, %p175
    %p177 = scmp.ne.s32.totalorder %s165, %s166
    %p178 = scmp.eq.s32.totalorder %s25, 1
    %p179 = por %p177, %p178
    %p181 = scmp.ne.s32.totalorder %s166, %s180
    %p182 = scmp.eq.s32.totalorder %s25, 0
    %p183 = por %p181, %p182
    %s185 = sadd.s32 %s184, 1
    %p188 = scmp.eq.s32.totalorder %s19, 1
    %p189 = scmp.ne.s32.totalorder %s184, %s186
    %p190 = scmp.eq.s32.totalorder %s19, 0
    %p191 = por %p189, %p190
    %p192 = scmp.ne.s32.totalorder %s184, %s186
    %p193 = scmp.eq.s32.totalorder %s24, 1
    %p194 = por %p192, %p193
    %p195 = scmp.ne.s32.totalorder %s186, %s187
    %p196 = scmp.eq.s32.totalorder %s24, 0
    %p197 = por %p195, %p196
    %p198 = scmp.ne.s32.totalorder %s186, %s187
    %p199 = scmp.eq.s32.totalorder %s25, 1
    %p200 = por %p198, %p199
    %p202 = scmp.ne.s32.totalorder %s187, %s201
    %p203 = scmp.eq.s32.totalorder %s25, 0
    %p204 = por %p202, %p203
    %s206 = sadd.s32 %s205, 1
    %p209 = scmp.eq.s32.totalorder %s19, 1
    %p210 = scmp.ne.s32.totalorder %s205, %s207
    %p211 = scmp.eq.s32.totalorder %s19, 0
    %p212 = por %p210, %p211
    %p213 = scmp.ne.s32.totalorder %s205, %s207
    %p214 = scmp.eq.s32.totalorder %s24, 1
    %p215 = por %p213, %p214
    %p216 = scmp.ne.s32.totalorder %s207, %s208
    %p217 = scmp.eq.s32.totalorder %s24, 0
    %p218 = por %p216, %p217
    %p219 = scmp.ne.s32.totalorder %s207, %s208
    %p220 = scmp.eq.s32.totalorder %s25, 1
    %p221 = por %p219, %p220
    %p223 = scmp.ne.s32.totalorder %s208, %s222
    %p224 = scmp.eq.s32.totalorder %s25, 0
    %p225 = por %p223, %p224
    %s227 = sadd.s32 %s226, 1
    %p230 = scmp.eq.s32.totalorder %s19, 1
    %p231 = scmp.ne.s32.totalorder %s226, %s228
    %p232 = scmp.eq.s32.totalorder %s19, 0
    %p233 = por %p231, %p232
    %p234 = scmp.ne.s32.totalorder %s226, %s228
    %p235 = scmp.eq.s32.totalorder %s24, 1
    %p236 = por %p234, %p235
    %p237 = scmp.ne.s32.totalorder %s228, %s229
    %p238 = scmp.eq.s32.totalorder %s24, 0
    %p239 = por %p237, %p238
    %p240 = scmp.ne.s32.totalorder %s228, %s229
    %p241 = scmp.eq.s32.totalorder %s25, 1
    %p242 = por %p240, %p241
    %p244 = scmp.ne.s32.totalorder %s229, %s243
    %p245 = scmp.eq.s32.totalorder %s25, 0
    %p246 = por %p244, %p245
    %s248 = sadd.s32 %s247, 1
    %p251 = scmp.eq.s32.totalorder %s19, 1
    %p252 = scmp.ne.s32.totalorder %s247, %s249
    %p253 = scmp.eq.s32.totalorder %s19, 0
    %p254 = por %p252, %p253
    %p255 = scmp.ne.s32.totalorder %s247, %s249
    %p256 = scmp.eq.s32.totalorder %s24, 1
    %p257 = por %p255, %p256
    %p258 = scmp.ne.s32.totalorder %s249, %s250
    %p259 = scmp.eq.s32.totalorder %s24, 0
    %p260 = por %p258, %p259
    %p261 = scmp.ne.s32.totalorder %s249, %s250
    %p262 = scmp.eq.s32.totalorder %s25, 1
    %p263 = por %p261, %p262
    %p265 = scmp.ne.s32.totalorder %s250, %s264
    %p266 = scmp.eq.s32.totalorder %s25, 0
    %p267 = por %p265, %p266
    %s268 = ssub.s32 %s19, %s26
    %p269 = scmp.eq.s32.totalorder %s268, 0
    %s271 = sadd.s32 %s270, 1
    %s272 = scalar_select %p269, %s270, %s271
    %p275 = pneg %p269
    %p276 = scmp.eq.s32.totalorder %s19, 1
    %p277 = por %p275, %p276
    %p278 = scmp.ne.s32.totalorder %s270, %s273
    %p279 = scmp.eq.s32.totalorder %s19, 0
    %p280 = por %p278, %p279
    %p281 = scmp.ne.s32.totalorder %s270, %s273
    %p282 = scmp.eq.s32.totalorder %s24, 1
    %p283 = por %p281, %p282
    %p284 = scmp.ne.s32.totalorder %s273, %s274
    %p285 = scmp.eq.s32.totalorder %s24, 0
    %p286 = por %p284, %p285
    %p287 = scmp.ne.s32.totalorder %s273, %s274
    %p288 = scmp.eq.s32.totalorder %s25, 1
    %p289 = por %p287, %p288
    %p291 = scmp.ne.s32.totalorder %s274, %s290
    %p292 = scmp.eq.s32.totalorder %s25, 0
    %p293 = por %p291, %p292
    %s294 = ssub.s32 %s19, %s26
    %p295 = scmp.eq.s32.totalorder %s294, 0
    %s297 = sadd.s32 %s296, 1
    %s298 = scalar_select %p295, %s296, %s297
    %p301 = pneg %p295
    %p302 = scmp.eq.s32.totalorder %s19, 1
    %p303 = por %p301, %p302
    %p304 = scmp.ne.s32.totalorder %s296, %s299
    %p305 = scmp.eq.s32.totalorder %s19, 0
    %p306 = por %p304, %p305
    %p307 = scmp.ne.s32.totalorder %s296, %s299
    %p308 = scmp.eq.s32.totalorder %s24, 1
    %p309 = por %p307, %p308
    %p310 = scmp.ne.s32.totalorder %s299, %s300
    %p311 = scmp.eq.s32.totalorder %s24, 0
    %p312 = por %p310, %p311
    %p313 = scmp.ne.s32.totalorder %s299, %s300
    %p314 = scmp.eq.s32.totalorder %s25, 1
    %p315 = por %p313, %p314
    %p317 = scmp.ne.s32.totalorder %s300, %s316
    %p318 = scmp.eq.s32.totalorder %s25, 0
    %p319 = por %p317, %p318
    %p320 = scmp.le.s32.totalorder 1, %s19
    %p321 = scmp.lt.s32.totalorder %s19, 3
    %p322 = pnand %p320, %p321
    %p323 = pneg %p322
    // Predicated region
    $region9: #{ibn_shufflenet_forward.1} parent=5 // pred_check
      _
    $region10: #{ibn_shufflenet_forward.1} parent=5 // pred_check_branch
      %325 = sbr.rel (%p322) target = $region12
    $region11: #{ibn_shufflenet_forward.1} parent=5 // pred_region
      %s326 = ssub.s32 %s19, 1
      // Predicated region
      $region13: #{ibn_shufflenet_forward.1} parent=11 // pred_check
        %p327 = pneg %p92
      $region14: #{ibn_shufflenet_forward.1} parent=11 // pred_check_branch
        %329 = sbr.rel (%p327) target = $region16
      $region15: #{ibn_shufflenet_forward.1} parent=11 // pred_region
        _
      $region16: #{ibn_shufflenet_forward.1} parent=11 // pred_fallthru
        _
      // Predicated region
      $region17: #{ibn_shufflenet_forward.1} parent=11 // pred_check
        %p330 = pneg %p113
      $region18: #{ibn_shufflenet_forward.1} parent=11 // pred_check_branch
        %332 = sbr.rel (%p330) target = $region20
      $region19: #{ibn_shufflenet_forward.1} parent=11 // pred_region
        _
      $region20: #{ibn_shufflenet_forward.1} parent=11 // pred_fallthru
        _
      // Predicated region
      $region21: #{ibn_shufflenet_forward.1} parent=11 // pred_check
        %p333 = pneg %p134
      $region22: #{ibn_shufflenet_forward.1} parent=11 // pred_check_branch
        %335 = sbr.rel (%p333) target = $region24
      $region23: #{ibn_shufflenet_forward.1} parent=11 // pred_region
        _
      $region24: #{ibn_shufflenet_forward.1} parent=11 // pred_fallthru
        _
      // Predicated region
      $region25: #{ibn_shufflenet_forward.1} parent=11 // pred_check
        %p336 = pneg %p155
      $region26: #{ibn_shufflenet_forward.1} parent=11 // pred_check_branch
        %338 = sbr.rel (%p336) target = $region28
      $region27: #{ibn_shufflenet_forward.1} parent=11 // pred_region
        _
      $region28: #{ibn_shufflenet_forward.1} parent=11 // pred_fallthru
        _
      // Predicated region
      $region29: #{ibn_shufflenet_forward.1} parent=11 // pred_check
        %p339 = pneg %p176
      $region30: #{ibn_shufflenet_forward.1} parent=11 // pred_check_branch
        %341 = sbr.rel (%p339) target = $region32
      $region31: #{ibn_shufflenet_forward.1} parent=11 // pred_region
        _
      $region32: #{ibn_shufflenet_forward.1} parent=11 // pred_fallthru
        _
      // Predicated region
      $region33: #{ibn_shufflenet_forward.1} parent=11 // pred_check
        %p342 = pneg %p197
      $region34: #{ibn_shufflenet_forward.1} parent=11 // pred_check_branch
        %344 = sbr.rel (%p342) target = $region36
      $region35: #{ibn_shufflenet_forward.1} parent=11 // pred_region
        _
      $region36: #{ibn_shufflenet_forward.1} parent=11 // pred_fallthru
        _
      // Predicated region
      $region37: #{ibn_shufflenet_forward.1} parent=11 // pred_check
        %p345 = pneg %p218
      $region38: #{ibn_shufflenet_forward.1} parent=11 // pred_check_branch
        %347 = sbr.rel (%p345) target = $region40
      $region39: #{ibn_shufflenet_forward.1} parent=11 // pred_region
        _
      $region40: #{ibn_shufflenet_forward.1} parent=11 // pred_fallthru
        _
      // Predicated region
      $region41: #{ibn_shufflenet_forward.1} parent=11 // pred_check
        %p348 = pneg %p239
      $region42: #{ibn_shufflenet_forward.1} parent=11 // pred_check_branch
        %350 = sbr.rel (%p348) target = $region44
      $region43: #{ibn_shufflenet_forward.1} parent=11 // pred_region
        _
      $region44: #{ibn_shufflenet_forward.1} parent=11 // pred_fallthru
        _
      // Predicated region
      $region45: #{ibn_shufflenet_forward.1} parent=11 // pred_check
        %p351 = pneg %p260
      $region46: #{ibn_shufflenet_forward.1} parent=11 // pred_check_branch
        %353 = sbr.rel (%p351) target = $region48
      $region47: #{ibn_shufflenet_forward.1} parent=11 // pred_region
        _
      $region48: #{ibn_shufflenet_forward.1} parent=11 // pred_fallthru
        _
    $region12: #{ibn_shufflenet_forward.1} parent=5 // pred_fallthru
      _
    %p354 = scmp.lt.s32.totalorder %s19, 2
    // Predicated region
    $region49: #{ibn_shufflenet_forward.1} parent=5 // pred_check
      %p355 = pneg %p354
    $region50: #{ibn_shufflenet_forward.1} parent=5 // pred_check_branch
      %357 = sbr.rel (%p355) target = $region52
    $region51: #{ibn_shufflenet_forward.1} parent=5 // pred_region
      // Predicated region
      $region53: #{ibn_shufflenet_forward.1} parent=51 // pred_check
        %p358 = pneg %p39
      $region54: #{ibn_shufflenet_forward.1} parent=51 // pred_check_branch
        %360 = sbr.rel (%p358) target = $region56
      $region55: #{ibn_shufflenet_forward.1} parent=51 // pred_region
        %p361 = scmp.lt.s32.totalorder %s19, 1
        %s362 = scalar_select %p361, %s19, 1
        %s363 = smul.addr %s362, 32
        %s364 = smul.addr %s363, 8
        %s365 = scalar_lea.vmem %s0, %s364
      $region56: #{ibn_shufflenet_forward.1} parent=51 // pred_fallthru
        _
      // Predicated region
      $region57: #{ibn_shufflenet_forward.1} parent=51 // pred_check
        %p366 = pneg %p65
      $region58: #{ibn_shufflenet_forward.1} parent=51 // pred_check_branch
        %368 = sbr.rel (%p366) target = $region60
      $region59: #{ibn_shufflenet_forward.1} parent=51 // pred_region
        %p369 = scmp.lt.s32.totalorder %s19, 1
        %s370 = scalar_select %p369, %s19, 1
        %s371 = smul.addr %s370, 32
        %s372 = smul.addr %s371, 8
        %s373 = scalar_lea.vmem %s1, %s372
      $region60: #{ibn_shufflenet_forward.1} parent=51 // pred_fallthru
        _
    $region52: #{ibn_shufflenet_forward.1} parent=5 // pred_fallthru
      _
    %p374 = scmp.le.s32.totalorder 1, %s19
    %p375 = scmp.lt.s32.totalorder %s19, 3
    %p376 = pnand %p374, %p375
    %p377 = pneg %p376
    // Predicated region
    $region61: #{ibn_shufflenet_forward.1} parent=5 // pred_check
      _
    $region62: #{ibn_shufflenet_forward.1} parent=5 // pred_check_branch
      %379 = sbr.rel (%p376) target = $region64
    $region63: #{ibn_shufflenet_forward.1} parent=5 // pred_region
      %s380 = ssub.s32 %s19, 1
      %p381 = scmp.lt.s32.totalorder %s24, 1
      %s382 = scalar_select %p381, %s24, 1
      %s383 = smul.addr %s382, 32
      %s384 = smul.addr %s383, 8
      %s385 = scalar_lea.vmem %s0, %s384
      %p386 = pneg %p45
      %p387 = pneg %p42
      %p388 = scmp.lt.s32.totalorder %s24, 1
      %s389 = scalar_select %p388, %s24, 1
      %s390 = smul.addr %s389, 32
      %s391 = smul.addr %s390, 8
      %s392 = scalar_lea.vmem %s1, %s391
      %p393 = pneg %p71
      %p394 = pneg %p68
      %p395 = pneg %p92
      %p396 = pneg %p89
      %p397 = pneg %p113
      %p398 = pneg %p110
      %p399 = pneg %p134
      %p400 = pneg %p131
      %p401 = pneg %p155
      %p402 = pneg %p152
      %p403 = pneg %p176
      %p404 = pneg %p173
      %p405 = pneg %p197
      %p406 = pneg %p194
      %p407 = pneg %p218
      %p408 = pneg %p215
      %p409 = pneg %p239
      %p410 = pneg %p236
      %p411 = pneg %p260
      %p412 = pneg %p257
      %p413 = pneg %p286
      %p414 = pneg %p283
      %p415 = scmp.lt.s32.totalorder %s24, 1
      %s416 = scalar_select %p415, %s24, 1
      %s417 = smul.addr %s416, 32
      %s418 = smul.addr %s417, 8
      %s419 = scalar_lea.vmem %s11, %s418
      %p420 = pneg %p312
      %p421 = pneg %p309
      %p422 = scmp.lt.s32.totalorder %s24, 1
      %s423 = scalar_select %p422, %s24, 1
      %s424 = smul.addr %s423, 32
      %s425 = smul.addr %s424, 8
      %s426 = scalar_lea.vmem %s12, %s425
      %p427 = scmp.lt.s32.totalorder %s24, 1
      %s428 = scalar_select %p427, %s24, 1
      %s429 = smul.addr %s428, 32
      %s430 = smul.addr %s429, 8
      %s431 = scalar_lea.vmem %s0, %s430
      %p432 = scmp.lt.s32.totalorder %s24, 1
      %s433 = scalar_select %p432, %s24, 1
      %s434 = smul.addr %s433, 32
      %s435 = smul.addr %s434, 8
      %s436 = scalar_lea.vmem %s1, %s435
      %p437 = scmp.lt.s32.totalorder %s24, 1
      %s438 = scalar_select %p437, %s24, 1
      %s439 = smul.addr %s438, 32
      %s440 = smul.addr %s439, 8
      %s441 = scalar_lea.vmem %s11, %s440
      %p442 = scmp.lt.s32.totalorder %s24, 1
      %s443 = scalar_select %p442, %s24, 1
      %s444 = smul.addr %s443, 32
      %s445 = smul.addr %s444, 8
      %s446 = scalar_lea.vmem %s12, %s445
      %v447 = vld [vmem:[%s436] sm:$0xff]
      %v448 = vld [vmem:[%s436 + $0x8] sm:$0xff]
      %v449 = vld [vmem:[%s436 + $0x10] sm:$0xff]
      %v450 = vld [vmem:[%s436 + $0x18] sm:$0xff]
      %v451 = vld [vmem:[%s436 + $0x20] sm:$0xff]
      %v452 = vld [vmem:[%s436 + $0x28] sm:$0xff]
      %v453 = vld [vmem:[%s436 + $0x30] sm:$0xff]
      %v454 = vld [vmem:[%s436 + $0x38] sm:$0xff]
      %v455 = vld [vmem:[%s436 + $0x40] sm:$0xff]
      %v456 = vld [vmem:[%s436 + $0x48] sm:$0xff]
      %v457 = vld [vmem:[%s436 + $0x50] sm:$0xff]
      %v458 = vld [vmem:[%s436 + $0x58] sm:$0xff]
      %v459 = vld [vmem:[%s436 + $0x60] sm:$0xff]
      %v460 = vld [vmem:[%s436 + $0x68] sm:$0xff]
      %v461 = vld [vmem:[%s436 + $0x70] sm:$0xff]
      %v462 = vld [vmem:[%s436 + $0x78] sm:$0xff]
      %v463 = vld [vmem:[%s436 + $0x80] sm:$0xff]
      %v464 = vld [vmem:[%s436 + $0x88] sm:$0xff]
      %v465 = vld [vmem:[%s436 + $0x90] sm:$0xff]
      %v466 = vld [vmem:[%s436 + $0x98] sm:$0xff]
      %v467 = vld [vmem:[%s436 + $0xa0] sm:$0xff]
      %v468 = vld [vmem:[%s436 + $0xa8] sm:$0xff]
      %v469 = vld [vmem:[%s436 + $0xb0] sm:$0xff]
      %v470 = vld [vmem:[%s436 + $0xb8] sm:$0xff]
      %v471 = vld [vmem:[%s436 + $0xc0] sm:$0xff]
      %v472 = vld [vmem:[%s436 + $0xc8] sm:$0xff]
      %v473 = vld [vmem:[%s436 + $0xd0] sm:$0xff]
      %v474 = vld [vmem:[%s436 + $0xd8] sm:$0xff]
      %v475 = vld [vmem:[%s436 + $0xe0] sm:$0xff]
      %v476 = vld [vmem:[%s436 + $0xe8] sm:$0xff]
      %v477 = vld [vmem:[%s436 + $0xf0] sm:$0xff]
      %v478 = vld [vmem:[%s436 + $0xf8] sm:$0xff]
      %v479 = vld [vmem:[%s2] sm:$0xff]
      %v480 = vld [vmem:[%s3] sm:$0x1]
      %v482 = vlaneseq
      %v483 = vshrl.u32 %v482, 7
      %v484 = vsub.s32 0, %v483
      %v485 = vrot.slane %v480, %v484
      %vm487 = vcmask 64512
      %v489 = vsel %vm487, %v447, 0
      %v492 = vsel %vm487, %v448, 0
      %v495 = vsel %vm487, %v449, 0
      %v498 = vsel %vm487, %v450, 0
      %v501 = vsel %vm487, %v451, 0
      %v504 = vsel %vm487, %v452, 0
      %v507 = vsel %vm487, %v453, 0
      %v510 = vsel %vm487, %v454, 0
      %v513 = vsel %vm487, %v455, 0
      %v516 = vsel %vm487, %v456, 0
      %v519 = vsel %vm487, %v457, 0
      %v522 = vsel %vm487, %v458, 0
      %v525 = vsel %vm487, %v459, 0
      %v528 = vsel %vm487, %v460, 0
      %v531 = vsel %vm487, %v461, 0
      %v534 = vsel %vm487, %v462, 0
      %v537 = vsel %vm487, %v463, 0
      %v540 = vsel %vm487, %v464, 0
      %v543 = vsel %vm487, %v465, 0
      %v546 = vsel %vm487, %v466, 0
      %v549 = vsel %vm487, %v467, 0
      %v552 = vsel %vm487, %v468, 0
      %v555 = vsel %vm487, %v469, 0
      %v558 = vsel %vm487, %v470, 0
      %v561 = vsel %vm487, %v471, 0
      %v564 = vsel %vm487, %v472, 0
      %v567 = vsel %vm487, %v473, 0
      %v570 = vsel %vm487, %v474, 0
      %v573 = vsel %vm487, %v475, 0
      %v576 = vsel %vm487, %v476, 0
      %v579 = vsel %vm487, %v477, 0
      %v582 = vsel %vm487, %v478, 0
      %584 = vmatprep.subr.mxu0 0.0
      %585 = vmatpush1.msra.mxu0 %v479
      %586 = vmatprep.subr.mxu0 0.0
      %587 = vmatpush1.msra.mxu0 0.0
      %588 = vmatprep.subr.mxu0 0.0
      %589 = vmatpush1.msra.mxu0 0.0
      %590 = vmatprep.subr.mxu0 0.0
      %591 = vmatpush1.msra.mxu0 0.0
      %592 = vmatprep.subr.mxu0 0.0
      %593 = vmatpush1.msra.mxu0 0.0
      %594 = vmatprep.subr.mxu0 0.0
      %595 = vmatpush1.msra.mxu0 0.0
      %596 = vmatprep.subr.mxu0 0.0
      %597 = vmatpush1.msra.mxu0 0.0
      %598 = vmatprep.subr.mxu0 0.0
      %599 = vmatpush1.msra.mxu0 0.0
      %600 = vmatprep.subr.mxu0 0.0
      %601 = vmatpush1.msra.mxu0 0.0
      %602 = vmatprep.subr.mxu0 0.0
      %603 = vmatpush1.msra.mxu0 0.0
      %604 = vmatprep.subr.mxu0 0.0
      %605 = vmatpush1.msra.mxu0 0.0
      %606 = vmatprep.subr.mxu0 0.0
      %607 = vmatpush1.msra.mxu0 0.0
      %608 = vmatprep.subr.mxu0 0.0
      %609 = vmatpush1.msra.mxu0 0.0
      %610 = vmatprep.subr.mxu0 0.0
      %611 = vmatpush1.msra.mxu0 0.0
      %612 = vmatprep.subr.mxu0 0.0
      %613 = vmatpush1.msra.mxu0 0.0
      %614 = vmatprep.subr.mxu0 0.0
      %615 = vmatpush1.msra.mxu0 0.0
      %616 = vmatprep.subr.mxu0 0.0
      %617 = vmatpush1.msra.mxu0 0.0
      %618 = vmatprep.subr.mxu0 0.0
      %619 = vmatpush1.msra.mxu0 0.0
      %620 = vmatprep.subr.mxu0 0.0
      %621 = vmatpush1.msra.mxu0 0.0
      %622 = vmatprep.subr.mxu0 0.0
      %623 = vmatpush1.msra.mxu0 0.0
      %624 = vmatprep.subr.mxu0 0.0
      %625 = vmatpush1.msra.mxu0 0.0
      %626 = vmatprep.subr.mxu0 0.0
      %627 = vmatpush1.msra.mxu0 0.0
      %628 = vmatprep.subr.mxu0 0.0
      %629 = vmatpush1.msra.mxu0 0.0
      %630 = vmatprep.subr.mxu0 0.0
      %631 = vmatpush1.msra.mxu0 0.0
      %632 = vmatprep.subr.mxu0 0.0
      %633 = vmatpush1.msra.mxu0 0.0
      %634 = vmatprep.subr.mxu0 0.0
      %635 = vmatpush1.msra.mxu0 0.0
      %636 = vmatprep.subr.mxu0 0.0
      %637 = vmatpush1.msra.mxu0 0.0
      %638 = vmatprep.subr.mxu0 0.0
      %639 = vmatpush1.msra.mxu0 0.0
      %640 = vmatprep.subr.mxu0 0.0
      %641 = vmatpush1.msra.mxu0 0.0
      %642 = vmatprep.subr.mxu0 0.0
      %643 = vmatpush1.msra.mxu0 0.0
      %644 = vmatprep.subr.mxu0 0.0
      %645 = vmatpush1.msra.mxu0 0.0
      %646 = vmatprep.subr.mxu0 0.0
      %647 = vmatpush1.msra.mxu0 0.0
      %648 = vmatprep.mubr.f32.mxu0 0.0
      %649 = vmatmul.mubr.f32.gmra.mrb[0].mxu0 %v489
      %v650 = vpop.f32.mrb[0].mxu0
      %v651 = vadd.f32 %v485, %v650
      %v652 = vpop.f32.mrb[0].mxu0
      %653 = vmatprep.mubr.f32.mxu0 0.0
      %654 = vmatmul.mubr.f32.gmra.mrb[0].mxu0 %v492
      %v655 = vpop.f32.mrb[0].mxu0
      %v656 = vadd.f32 %v485, %v655
      %v657 = vpop.f32.mrb[0].mxu0
      %658 = vmatprep.mubr.f32.mxu0 0.0
      %659 = vmatmul.mubr.f32.gmra.mrb[0].mxu0 %v495
      %v660 = vpop.f32.mrb[0].mxu0
      %v661 = vadd.f32 %v485, %v660
      %v662 = vpop.f32.mrb[0].mxu0
      %663 = vmatprep.mubr.f32.mxu0 0.0
      %664 = vmatmul.mubr.f32.gmra.mrb[0].mxu0 %v498
      %v665 = vpop.f32.mrb[0].mxu0
      %v666 = vadd.f32 %v485, %v665
      %v667 = vpop.f32.mrb[0].mxu0
      %668 = vmatprep.mubr.f32.mxu0 0.0
      %669 = vmatmul.mubr.f32.gmra.mrb[0].mxu0 %v501
      %v670 = vpop.f32.mrb[0].mxu0
      %v671 = vadd.f32 %v485, %v670
      %v672 = vpop.f32.mrb[0].mxu0
      %673 = vmatprep.mubr.f32.mxu0 0.0
      %674 = vmatmul.mubr.f32.gmra.mrb[0].mxu0 %v504
      %v675 = vpop.f32.mrb[0].mxu0
      %v676 = vadd.f32 %v485, %v675
      %v677 = vpop.f32.mrb[0].mxu0
      %678 = vmatprep.mubr.f32.mxu0 0.0
      %679 = vmatmul.mubr.f32.gmra.mrb[0].mxu0 %v507
      %v680 = vpop.f32.mrb[0].mxu0
      %v681 = vadd.f32 %v485, %v680
      %v682 = vpop.f32.mrb[0].mxu0
      %683 = vmatprep.mubr.f32.mxu0 0.0
      %684 = vmatmul.mubr.f32.gmra.mrb[0].mxu0 %v510
      %v685 = vpop.f32.mrb[0].mxu0
      %v686 = vadd.f32 %v485, %v685
      %v687 = vpop.f32.mrb[0].mxu0
      %688 = vmatprep.mubr.f32.mxu0 0.0
      %689 = vmatmul.mubr.f32.gmra.mrb[0].mxu0 %v513
      %v690 = vpop.f32.mrb[0].mxu0
      %v691 = vadd.f32 %v485, %v690
      %v692 = vpop.f32.mrb[0].mxu0
      %693 = vmatprep.mubr.f32.mxu0 0.0
      %694 = vmatmul.mubr.f32.gmra.mrb[0].mxu0 %v516
      %v695 = vpop.f32.mrb[0].mxu0
      %v696 = vadd.f32 %v485, %v695
      %v697 = vpop.f32.mrb[0].mxu0
      %698 = vmatprep.mubr.f32.mxu0 0.0
      %699 = vmatmul.mubr.f32.gmra.mrb[0].mxu0 %v519
      %v700 = vpop.f32.mrb[0].mxu0
      %v701 = vadd.f32 %v485, %v700
      %v702 = vpop.f32.mrb[0].mxu0
      %703 = vmatprep.mubr.f32.mxu0 0.0
      %704 = vmatmul.mubr.f32.gmra.mrb[0].mxu0 %v522
      %v705 = vpop.f32.mrb[0].mxu0
      %v706 = vadd.f32 %v485, %v705
      %v707 = vpop.f32.mrb[0].mxu0
      %708 = vmatprep.mubr.f32.mxu0 0.0
      %709 = vmatmul.mubr.f32.gmra.mrb[0].mxu0 %v525
      %v710 = vpop.f32.mrb[0].mxu0
      %v711 = vadd.f32 %v485, %v710
      %v712 = vpop.f32.mrb[0].mxu0
      %713 = vmatprep.mubr.f32.mxu0 0.0
      %714 = vmatmul.mubr.f32.gmra.mrb[0].mxu0 %v528
      %v715 = vpop.f32.mrb[0].mxu0
      %v716 = vadd.f32 %v485, %v715
      %v717 = vpop.f32.mrb[0].mxu0
      %718 = vmatprep.mubr.f32.mxu0 0.0
      %719 = vmatmul.mubr.f32.gmra.mrb[0].mxu0 %v531
      %v720 = vpop.f32.mrb[0].mxu0
      %v721 = vadd.f32 %v485, %v720
      %v722 = vpop.f32.mrb[0].mxu0
      %723 = vmatprep.mubr.f32.mxu0 0.0
      %724 = vmatmul.mubr.f32.gmra.mrb[0].mxu0 %v534
      %v725 = vpop.f32.mrb[0].mxu0
      %v726 = vadd.f32 %v485, %v725
      %v727 = vpop.f32.mrb[0].mxu0
      %728 = vmatprep.mubr.f32.mxu0 0.0
      %729 = vmatmul.mubr.f32.gmra.mrb[0].mxu0 %v537
      %v730 = vpop.f32.mrb[0].mxu0
      %v731 = vadd.f32 %v485, %v730
      %v732 = vpop.f32.mrb[0].mxu0
      %733 = vmatprep.mubr.f32.mxu0 0.0
      %734 = vmatmul.mubr.f32.gmra.mrb[0].mxu0 %v540
      %v735 = vpop.f32.mrb[0].mxu0
      %v736 = vadd.f32 %v485, %v735
      %v737 = vpop.f32.mrb[0].mxu0
      %738 = vmatprep.mubr.f32.mxu0 0.0
      %739 = vmatmul.mubr.f32.gmra.mrb[0].mxu0 %v543
      %v740 = vpop.f32.mrb[0].mxu0
      %v741 = vadd.f32 %v485, %v740
      %v742 = vpop.f32.mrb[0].mxu0
      %743 = vmatprep.mubr.f32.mxu0 0.0
      %744 = vmatmul.mubr.f32.gmra.mrb[0].mxu0 %v546
      %v745 = vpop.f32.mrb[0].mxu0
      %v746 = vadd.f32 %v485, %v745
      %v747 = vpop.f32.mrb[0].mxu0
      %748 = vmatprep.mubr.f32.mxu0 0.0
      %749 = vmatmul.mubr.f32.gmra.mrb[0].mxu0 %v549
      %v750 = vpop.f32.mrb[0].mxu0
      %v751 = vadd.f32 %v485, %v750
      %v752 = vpop.f32.mrb[0].mxu0
      %753 = vmatprep.mubr.f32.mxu0 0.0
      %754 = vmatmul.mubr.f32.gmra.mrb[0].mxu0 %v552
      %v755 = vpop.f32.mrb[0].mxu0
      %v756 = vadd.f32 %v485, %v755
      %v757 = vpop.f32.mrb[0].mxu0
      %758 = vmatprep.mubr.f32.mxu0 0.0
      %759 = vmatmul.mubr.f32.gmra.mrb[0].mxu0 %v555
      %v760 = vpop.f32.mrb[0].mxu0
      %v761 = vadd.f32 %v485, %v760
      %v762 = vpop.f32.mrb[0].mxu0
      %763 = vmatprep.mubr.f32.mxu0 0.0
      %764 = vmatmul.mubr.f32.gmra.mrb[0].mxu0 %v558
      %v765 = vpop.f32.mrb[0].mxu0
      %v766 = vadd.f32 %v485, %v765
      %v767 = vpop.f32.mrb[0].mxu0
      %768 = vmatprep.mubr.f32.mxu0 0.0
      %769 = vmatmul.mubr.f32.gmra.mrb[0].mxu0 %v561
      %v770 = vpop.f32.mrb[0].mxu0
      %v771 = vadd.f32 %v485, %v770
      %v772 = vpop.f32.mrb[0].mxu0
      %773 = vmatprep.mubr.f32.mxu0 0.0
      %774 = vmatmul.mubr.f32.gmra.mrb[0].mxu0 %v564
      %v775 = vpop.f32.mrb[0].mxu0
      %v776 = vadd.f32 %v485, %v775
      %v777 = vpop.f32.mrb[0].mxu0
      %778 = vmatprep.mubr.f32.mxu0 0.0
      %779 = vmatmul.mubr.f32.gmra.mrb[0].mxu0 %v567
      %v780 = vpop.f32.mrb[0].mxu0
      %v781 = vadd.f32 %v485, %v780
      %v782 = vpop.f32.mrb[0].mxu0
      %783 = vmatprep.mubr.f32.mxu0 0.0
      %784 = vmatmul.mubr.f32.gmra.mrb[0].mxu0 %v570
      %v785 = vpop.f32.mrb[0].mxu0
      %v786 = vadd.f32 %v485, %v785
      %v787 = vpop.f32.mrb[0].mxu0
      %788 = vmatprep.mubr.f32.mxu0 0.0
      %789 = vmatmul.mubr.f32.gmra.mrb[0].mxu0 %v573
      %v790 = vpop.f32.mrb[0].mxu0
      %v791 = vadd.f32 %v485, %v790
      %v792 = vpop.f32.mrb[0].mxu0
      %793 = vmatprep.mubr.f32.mxu0 0.0
      %794 = vmatmul.mubr.f32.gmra.mrb[0].mxu0 %v576
      %v795 = vpop.f32.mrb[0].mxu0
      %v796 = vadd.f32 %v485, %v795
      %v797 = vpop.f32.mrb[0].mxu0
      %798 = vmatprep.mubr.f32.mxu0 0.0
      %799 = vmatmul.mubr.f32.gmra.mrb[0].mxu0 %v579
      %v800 = vpop.f32.mrb[0].mxu0
      %v801 = vadd.f32 %v485, %v800
      %v802 = vpop.f32.mrb[0].mxu0
      %803 = vmatprep.mubr.f32.mxu0 0.0
      %804 = vmatmul.mubr.f32.gmra.mrb[0].mxu0 %v582
      %v805 = vpop.f32.mrb[0].mxu0
      %v806 = vadd.f32 %v485, %v805
      %v807 = vpop.f32.mrb[0].mxu0
      %808 = vdwg.mxu0
      %v809 = vadd.f32 %v651, 3.0
      %v810 = vadd.f32 %v656, 3.0
      %v811 = vadd.f32 %v661, 3.0
      %v812 = vadd.f32 %v666, 3.0
      %v813 = vadd.f32 %v671, 3.0
      %v814 = vadd.f32 %v676, 3.0
      %v815 = vadd.f32 %v681, 3.0
      %v816 = vadd.f32 %v686, 3.0
      %v817 = vadd.f32 %v691, 3.0
      %v818 = vadd.f32 %v696, 3.0
      %v819 = vadd.f32 %v701, 3.0
      %v820 = vadd.f32 %v706, 3.0
      %v821 = vadd.f32 %v711, 3.0
      %v822 = vadd.f32 %v716, 3.0
      %v823 = vadd.f32 %v721, 3.0
      %v824 = vadd.f32 %v726, 3.0
      %v825 = vadd.f32 %v731, 3.0
      %v826 = vadd.f32 %v736, 3.0
      %v827 = vadd.f32 %v741, 3.0
      %v828 = vadd.f32 %v746, 3.0
      %v829 = vadd.f32 %v751, 3.0
      %v830 = vadd.f32 %v756, 3.0
      %v831 = vadd.f32 %v761, 3.0
      %v832 = vadd.f32 %v766, 3.0
      %v833 = vadd.f32 %v771, 3.0
      %v834 = vadd.f32 %v776, 3.0
      %v835 = vadd.f32 %v781, 3.0
      %v836 = vadd.f32 %v786, 3.0
      %v837 = vadd.f32 %v791, 3.0
      %v838 = vadd.f32 %v796, 3.0
      %v839 = vadd.f32 %v801, 3.0
      %v840 = vadd.f32 %v806, 3.0
      %v841 = vmax.f32 %v809, 0.0
      %v842 = vmax.f32 %v810, 0.0
      %v843 = vmax.f32 %v811, 0.0
      %v844 = vmax.f32 %v812, 0.0
      %v845 = vmax.f32 %v813, 0.0
      %v846 = vmax.f32 %v814, 0.0
      %v847 = vmax.f32 %v815, 0.0
      %v848 = vmax.f32 %v816, 0.0
      %v849 = vmax.f32 %v817, 0.0
      %v850 = vmax.f32 %v818, 0.0
      %v851 = vmax.f32 %v819, 0.0
      %v852 = vmax.f32 %v820, 0.0
      %v853 = vmax.f32 %v821, 0.0
      %v854 = vmax.f32 %v822, 0.0
      %v855 = vmax.f32 %v823, 0.0
      %v856 = vmax.f32 %v824, 0.0
      %v857 = vmax.f32 %v825, 0.0
      %v858 = vmax.f32 %v826, 0.0
      %v859 = vmax.f32 %v827, 0.0
      %v860 = vmax.f32 %v828, 0.0
      %v861 = vmax.f32 %v829, 0.0
      %v862 = vmax.f32 %v830, 0.0
      %v863 = vmax.f32 %v831, 0.0
      %v864 = vmax.f32 %v832, 0.0
      %v865 = vmax.f32 %v833, 0.0
      %v866 = vmax.f32 %v834, 0.0
      %v867 = vmax.f32 %v835, 0.0
      %v868 = vmax.f32 %v836, 0.0
      %v869 = vmax.f32 %v837, 0.0
      %v870 = vmax.f32 %v838, 0.0
      %v871 = vmax.f32 %v839, 0.0
      %v872 = vmax.f32 %v840, 0.0
      %v873 = vmin.f32 %v841, 6.0
      %v874 = vmin.f32 %v842, 6.0
      %v875 = vmin.f32 %v843, 6.0
      %v876 = vmin.f32 %v844, 6.0
      %v877 = vmin.f32 %v845, 6.0
      %v878 = vmin.f32 %v846, 6.0
      %v879 = vmin.f32 %v847, 6.0
      %v880 = vmin.f32 %v848, 6.0
      %v881 = vmin.f32 %v849, 6.0
      %v882 = vmin.f32 %v850, 6.0
      %v883 = vmin.f32 %v851, 6.0
      %v884 = vmin.f32 %v852, 6.0
      %v885 = vmin.f32 %v853, 6.0
      %v886 = vmin.f32 %v854, 6.0
      %v887 = vmin.f32 %v855, 6.0
      %v888 = vmin.f32 %v856, 6.0
      %v889 = vmin.f32 %v857, 6.0
      %v890 = vmin.f32 %v858, 6.0
      %v891 = vmin.f32 %v859, 6.0
      %v892 = vmin.f32 %v860, 6.0
      %v893 = vmin.f32 %v861, 6.0
      %v894 = vmin.f32 %v862, 6.0
      %v895 = vmin.f32 %v863, 6.0
      %v896 = vmin.f32 %v864, 6.0
      %v897 = vmin.f32 %v865, 6.0
      %v898 = vmin.f32 %v866, 6.0
      %v899 = vmin.f32 %v867, 6.0
      %v900 = vmin.f32 %v868, 6.0
      %v901 = vmin.f32 %v869, 6.0
      %v902 = vmin.f32 %v870, 6.0
      %v903 = vmin.f32 %v871, 6.0
      %v904 = vmin.f32 %v872, 6.0
      %v905 = vmul.f32 %v873, 0.16666667
      %v906 = vmul.f32 %v874, 0.16666667
      %v907 = vmul.f32 %v875, 0.16666667
      %v908 = vmul.f32 %v876, 0.16666667
      %v909 = vmul.f32 %v877, 0.16666667
      %v910 = vmul.f32 %v878, 0.16666667
      %v911 = vmul.f32 %v879, 0.16666667
      %v912 = vmul.f32 %v880, 0.16666667
      %v913 = vmul.f32 %v881, 0.16666667
      %v914 = vmul.f32 %v882, 0.16666667
      %v915 = vmul.f32 %v883, 0.16666667
      %v916 = vmul.f32 %v884, 0.16666667
      %v917 = vmul.f32 %v885, 0.16666667
      %v918 = vmul.f32 %v886, 0.16666667
      %v919 = vmul.f32 %v887, 0.16666667
      %v920 = vmul.f32 %v888, 0.16666667
      %v921 = vmul.f32 %v889, 0.16666667
      %v922 = vmul.f32 %v890, 0.16666667
      %v923 = vmul.f32 %v891, 0.16666667
      %v924 = vmul.f32 %v892, 0.16666667
      %v925 = vmul.f32 %v893, 0.16666667
      %v926 = vmul.f32 %v894, 0.16666667
      %v927 = vmul.f32 %v895, 0.16666667
      %v928 = vmul.f32 %v896, 0.16666667
      %v929 = vmul.f32 %v897, 0.16666667
      %v930 = vmul.f32 %v898, 0.16666667
      %v931 = vmul.f32 %v899, 0.16666667
      %v932 = vmul.f32 %v900, 0.16666667
      %v933 = vmul.f32 %v901, 0.16666667
      %v934 = vmul.f32 %v902, 0.16666667
      %v935 = vmul.f32 %v903, 0.16666667
      %v936 = vmul.f32 %v904, 0.16666667
      %v937 = vmul.f32 %v651, %v905
      %v938 = vmul.f32 %v656, %v906
      %v939 = vmul.f32 %v661, %v907
      %v940 = vmul.f32 %v666, %v908
      %v941 = vmul.f32 %v671, %v909
      %v942 = vmul.f32 %v676, %v910
      %v943 = vmul.f32 %v681, %v911
      %v944 = vmul.f32 %v686, %v912
      %v945 = vmul.f32 %v691, %v913
      %v946 = vmul.f32 %v696, %v914
      %v947 = vmul.f32 %v701, %v915
      %v948 = vmul.f32 %v706, %v916
      %v949 = vmul.f32 %v711, %v917
      %v950 = vmul.f32 %v716, %v918
      %v951 = vmul.f32 %v721, %v919
      %v952 = vmul.f32 %v726, %v920
      %v953 = vmul.f32 %v731, %v921
      %v954 = vmul.f32 %v736, %v922
      %v955 = vmul.f32 %v741, %v923
      %v956 = vmul.f32 %v746, %v924
      %v957 = vmul.f32 %v751, %v925
      %v958 = vmul.f32 %v756, %v926
      %v959 = vmul.f32 %v761, %v927
      %v960 = vmul.f32 %v766, %v928
      %v961 = vmul.f32 %v771, %v929
      %v962 = vmul.f32 %v776, %v930
      %v963 = vmul.f32 %v781, %v931
      %v964 = vmul.f32 %v786, %v932
      %v965 = vmul.f32 %v791, %v933
      %v966 = vmul.f32 %v796, %v934
      %v967 = vmul.f32 %v801, %v935
      %v968 = vmul.f32 %v806, %v936
      %v969 = vld [vmem:[%s4] sm:$0xff]
      %v970 = vld [vmem:[%s4 + $0x8] sm:$0x1]
      %971 = vst.msk [vmem:[#allocation2] sm:$0xff] %vm487, 0.0
      %972 = vst.msk [vmem:[#allocation2 + $0x8] sm:$0xff] %vm487, 0.0
      %vm973 = vcmask 58368
      %974 = vst.msk [vmem:[#allocation2 + $0x10] sm:$0x3] %vm973, 0.0
      %975 = vst.msk [vmem:[#allocation2 + $0x18] sm:$0xff] %vm487, 0.0
      %976 = vst.msk [vmem:[#allocation2 + $0x20] sm:$0xff] %vm487, 0.0
      %977 = vst.msk [vmem:[#allocation2 + $0x28] sm:$0x3] %vm973, 0.0
      %978 = vst.msk [vmem:[#allocation2 + $0x30] sm:$0xff] %vm487, 0.0
      %979 = vst.msk [vmem:[#allocation2 + $0x38] sm:$0xff] %vm487, 0.0
      %980 = vst.msk [vmem:[#allocation2 + $0x40] sm:$0x3] %vm973, 0.0
      %981 = vst.msk [vmem:[#allocation2 + $0x48] sm:$0xff] %vm487, 0.0
      %982 = vst.msk [vmem:[#allocation2 + $0x50] sm:$0xff] %vm487, 0.0
      %983 = vst.msk [vmem:[#allocation2 + $0x58] sm:$0x3] %vm973, 0.0
      %984 = vst.msk [vmem:[#allocation2 + $0x60] sm:$0xff] %vm487, 0.0
      %985 = vst.msk [vmem:[#allocation2 + $0x68] sm:$0xff] %vm487, 0.0
      %986 = vst.msk [vmem:[#allocation2 + $0x70] sm:$0x3] %vm973, 0.0
      %987 = vst.msk [vmem:[#allocation2 + $0x78] sm:$0xff] %vm487, 0.0
      %988 = vst.msk [vmem:[#allocation2 + $0x80] sm:$0xff] %vm487, 0.0
      %989 = vst.msk [vmem:[#allocation2 + $0x88] sm:$0x3] %vm973, 0.0
      %990 = vst.msk [vmem:[#allocation2 + $0x90] sm:$0xff] %vm487, 0.0
      %991 = vst.msk [vmem:[#allocation2 + $0x98] sm:$0xff] %vm487, 0.0
      %992 = vst.msk [vmem:[#allocation2 + $0xa0] sm:$0x3] %vm973, 0.0
      %993 = vst.msk [vmem:[#allocation2 + $0xa8] sm:$0xff] %vm487, 0.0
      %994 = vst.msk [vmem:[#allocation2 + $0xb0] sm:$0xff] %vm487, 0.0
      %995 = vst.msk [vmem:[#allocation2 + $0xb8] sm:$0x3] %vm973, 0.0
      %996 = vst.msk [vmem:[#allocation2 + $0xc0] sm:$0xff] %vm487, 0.0
      %997 = vst.msk [vmem:[#allocation2 + $0xc8] sm:$0xff] %vm487, 0.0
      %998 = vst.msk [vmem:[#allocation2 + $0xd0] sm:$0x3] %vm973, 0.0
      %999 = vst.msk [vmem:[#allocation2 + $0xd8] sm:$0xff] %vm487, 0.0
      %1000 = vst.msk [vmem:[#allocation2 + $0xe0] sm:$0xff] %vm487, 0.0
      %1001 = vst.msk [vmem:[#allocation2 + $0xe8] sm:$0x3] %vm973, 0.0
      %1002 = vst.msk [vmem:[#allocation2 + $0xf0] sm:$0xff] %vm487, 0.0
      %1003 = vst.msk [vmem:[#allocation2 + $0xf8] sm:$0xff] %vm487, 0.0
      %1004 = vst.msk [vmem:[#allocation2 + $0x100] sm:$0x3] %vm973, 0.0
      %1005 = vst.msk [vmem:[#allocation2 + $0x108] sm:$0xff] %vm487, 0.0
      %1006 = vst.msk [vmem:[#allocation2 + $0x110] sm:$0xff] %vm487, 0.0
      %1007 = vst.msk [vmem:[#allocation2 + $0x118] sm:$0x3] %vm973, 0.0
      %1008 = vst.msk [vmem:[#allocation2 + $0x120] sm:$0xff] %vm487, 0.0
      %1009 = vst.msk [vmem:[#allocation2 + $0x128] sm:$0xff] %vm487, 0.0
      %1010 = vst.msk [vmem:[#allocation2 + $0x130] sm:$0x3] %vm973, 0.0
      %1011 = vst.msk [vmem:[#allocation2 + $0x138] sm:$0xff] %vm487, 0.0
      %1012 = vst.msk [vmem:[#allocation2 + $0x140] sm:$0xff] %vm487, 0.0
      %1013 = vst.msk [vmem:[#allocation2 + $0x148] sm:$0x3] %vm973, 0.0
      %1014 = vst.msk [vmem:[#allocation2 + $0x150] sm:$0xff] %vm487, 0.0
      %1015 = vst.msk [vmem:[#allocation2 + $0x158] sm:$0xff] %vm487, 0.0
      %1016 = vst.msk [vmem:[#allocation2 + $0x160] sm:$0x3] %vm973, 0.0
      %1017 = vst.msk [vmem:[#allocation2 + $0x168] sm:$0xff] %vm487, 0.0
      %1018 = vst.msk [vmem:[#allocation2 + $0x170] sm:$0xff] %vm487, 0.0
      %1019 = vst.msk [vmem:[#allocation2 + $0x178] sm:$0x3] %vm973, 0.0
      %1020 = vst.msk [vmem:[#allocation2 + $0x180] sm:$0xff] %vm487, 0.0
      %1021 = vst.msk [vmem:[#allocation2 + $0x188] sm:$0xff] %vm487, 0.0
      %1022 = vst.msk [vmem:[#allocation2 + $0x190] sm:$0x3] %vm973, 0.0
      %1023 = vst.msk [vmem:[#allocation2 + $0x198] sm:$0xff] %vm487, 0.0
      %1024 = vst.msk [vmem:[#allocation2 + $0x1a0] sm:$0xff] %vm487, 0.0
      %1025 = vst.msk [vmem:[#allocation2 + $0x1a8] sm:$0x3] %vm973, 0.0
      %s1026 = scalar_lea.vmem [#allocation2], 24
      %1027 = vst.msk [vmem:[%s1026 + $0x1] sm:$0xff] %vm487, %v937
      %1028 = vst.msk [vmem:[%s1026 + $0x9] sm:$0xff] %vm487, %v938
      %1029 = vst.msk [vmem:[%s1026 + $0x19] sm:$0xff] %vm487, %v939
      %1030 = vst.msk [vmem:[%s1026 + $0x21] sm:$0xff] %vm487, %v940
      %1031 = vst.msk [vmem:[%s1026 + $0x31] sm:$0xff] %vm487, %v941
      %1032 = vst.msk [vmem:[%s1026 + $0x39] sm:$0xff] %vm487, %v942
      %1033 = vst.msk [vmem:[%s1026 + $0x49] sm:$0xff] %vm487, %v943
      %1034 = vst.msk [vmem:[%s1026 + $0x51] sm:$0xff] %vm487, %v944
      %1035 = vst.msk [vmem:[%s1026 + $0x61] sm:$0xff] %vm487, %v945
      %1036 = vst.msk [vmem:[%s1026 + $0x69] sm:$0xff] %vm487, %v946
      %1037 = vst.msk [vmem:[%s1026 + $0x79] sm:$0xff] %vm487, %v947
      %1038 = vst.msk [vmem:[%s1026 + $0x81] sm:$0xff] %vm487, %v948
      %1039 = vst.msk [vmem:[%s1026 + $0x91] sm:$0xff] %vm487, %v949
      %1040 = vst.msk [vmem:[%s1026 + $0x99] sm:$0xff] %vm487, %v950
      %1041 = vst.msk [vmem:[%s1026 + $0xa9] sm:$0xff] %vm487, %v951
      %1042 = vst.msk [vmem:[%s1026 + $0xb1] sm:$0xff] %vm487, %v952
      %1043 = vst.msk [vmem:[%s1026 + $0xc1] sm:$0xff] %vm487, %v953
      %1044 = vst.msk [vmem:[%s1026 + $0xc9] sm:$0xff] %vm487, %v954
      %1045 = vst.msk [vmem:[%s1026 + $0xd9] sm:$0xff] %vm487, %v955
      %1046 = vst.msk [vmem:[%s1026 + $0xe1] sm:$0xff] %vm487, %v956
      %1047 = vst.msk [vmem:[%s1026 + $0xf1] sm:$0xff] %vm487, %v957
      %1048 = vst.msk [vmem:[%s1026 + $0xf9] sm:$0xff] %vm487, %v958
      %1049 = vst.msk [vmem:[%s1026 + $0x109] sm:$0xff] %vm487, %v959
      %1050 = vst.msk [vmem:[%s1026 + $0x111] sm:$0xff] %vm487, %v960
      %1051 = vst.msk [vmem:[%s1026 + $0x121] sm:$0xff] %vm487, %v961
      %1052 = vst.msk [vmem:[%s1026 + $0x129] sm:$0xff] %vm487, %v962
      %1053 = vst.msk [vmem:[%s1026 + $0x139] sm:$0xff] %vm487, %v963
      %1054 = vst.msk [vmem:[%s1026 + $0x141] sm:$0xff] %vm487, %v964
      %1055 = vst.msk [vmem:[%s1026 + $0x151] sm:$0xff] %vm487, %v965
      %1056 = vst.msk [vmem:[%s1026 + $0x159] sm:$0xff] %vm487, %v966
      %1057 = vst.msk [vmem:[%s1026 + $0x169] sm:$0xff] %vm487, %v967
      %1058 = vst.msk [vmem:[%s1026 + $0x171] sm:$0xff] %vm487, %v968
      %v1059 = vld [vmem:[#allocation2] sm:$0xff]
      %v1060 = vld [vmem:[#allocation2 + $0x8] sm:$0xff]
      %v1061 = vld [vmem:[#allocation2 + $0x18] sm:$0xff]
      %v1062 = vld [vmem:[#allocation2 + $0x20] sm:$0xff]
      %v1063 = vld [vmem:[#allocation2 + $0x30] sm:$0xff]
      %v1064 = vld [vmem:[#allocation2 + $0x38] sm:$0xff]
      %v1065 = vld [vmem:[#allocation2 + $0x48] sm:$0xff]
      %v1066 = vld [vmem:[#allocation2 + $0x50] sm:$0xff]
      %v1067 = vld [vmem:[#allocation2 + $0x60] sm:$0xff]
      %v1068 = vld [vmem:[#allocation2 + $0x68] sm:$0xff]
      %v1069 = vld [vmem:[#allocation2 + $0x78] sm:$0xff]
      %v1070 = vld [vmem:[#allocation2 + $0x80] sm:$0xff]
      %v1071 = vld [vmem:[#allocation2 + $0x90] sm:$0xff]
      %v1072 = vld [vmem:[#allocation2 + $0x98] sm:$0xff]
      %v1073 = vld [vmem:[#allocation2 + $0xa8] sm:$0xff]
      %v1074 = vld [vmem:[#allocation2 + $0xb0] sm:$0xff]
      %v1075 = vld [vmem:[#allocation2 + $0xc0] sm:$0xff]
      %v1076 = vld [vmem:[#allocation2 + $0xc8] sm:$0xff]
      %v1077 = vld [vmem:[#allocation2 + $0xd8] sm:$0xff]
      %v1078 = vld [vmem:[#allocation2 + $0xe0] sm:$0xff]
      %v1079 = vld [vmem:[#allocation2 + $0xf0] sm:$0xff]
      %v1080 = vld [vmem:[#allocation2 + $0xf8] sm:$0xff]
      %v1081 = vld [vmem:[#allocation2 + $0x108] sm:$0xff]
      %v1082 = vld [vmem:[#allocation2 + $0x110] sm:$0xff]
      %v1083 = vld [vmem:[#allocation2 + $0x120] sm:$0xff]
      %v1084 = vld [vmem:[#allocation2 + $0x128] sm:$0xff]
      %v1085 = vld [vmem:[#allocation2 + $0x138] sm:$0xff]
      %v1086 = vld [vmem:[#allocation2 + $0x140] sm:$0xff]
      %v1087 = vld [vmem:[#allocation2 + $0x150] sm:$0xff]
      %v1088 = vld [vmem:[#allocation2 + $0x158] sm:$0xff]
      %v1089 = vld [vmem:[#allocation2 + $0x168] sm:$0xff]
      %v1090 = vld [vmem:[#allocation2 + $0x170] sm:$0xff]
      %v1091 = vlaneseq
      %v1092 = vshrl.u32 %v1091, 7
      %v1093 = vsub.s32 0, %v1092
      %v1094 = vrot.slane %v969, %v1093
      %v1095 = vmul.f32 %v1059, %v1094
      %v1096 = vmul.f32 %v1060, %v1094
      %v1097 = vmul.f32 %v1061, %v1094
      %v1098 = vmul.f32 %v1062, %v1094
      %v1099 = vmul.f32 %v1063, %v1094
      %v1100 = vmul.f32 %v1064, %v1094
      %v1101 = vmul.f32 %v1065, %v1094
      %v1102 = vmul.f32 %v1066, %v1094
      %v1103 = vmul.f32 %v1067, %v1094
      %v1104 = vmul.f32 %v1068, %v1094
      %v1105 = vmul.f32 %v1069, %v1094
      %v1106 = vmul.f32 %v1070, %v1094
      %v1107 = vmul.f32 %v1071, %v1094
      %v1108 = vmul.f32 %v1072, %v1094
      %v1109 = vmul.f32 %v1073, %v1094
      %v1110 = vmul.f32 %v1074, %v1094
      %v1111 = vmul.f32 %v1075, %v1094
      %v1112 = vmul.f32 %v1076, %v1094
      %v1113 = vmul.f32 %v1077, %v1094
      %v1114 = vmul.f32 %v1078, %v1094
      %v1115 = vmul.f32 %v1079, %v1094
      %v1116 = vmul.f32 %v1080, %v1094
      %v1117 = vmul.f32 %v1081, %v1094
      %v1118 = vmul.f32 %v1082, %v1094
      %v1119 = vmul.f32 %v1083, %v1094
      %v1120 = vmul.f32 %v1084, %v1094
      %v1121 = vmul.f32 %v1085, %v1094
      %v1122 = vmul.f32 %v1086, %v1094
      %v1123 = vmul.f32 %v1087, %v1094
      %v1124 = vmul.f32 %v1088, %v1094
      %v1125 = vmul.f32 %v1089, %v1094
      %v1126 = vmul.f32 %v1090, %v1094
      %v1127 = vadd.f32 %v1095, 0.0
      %v1128 = vadd.f32 %v1096, 0.0
      %v1129 = vadd.f32 %v1097, 0.0
      %v1130 = vadd.f32 %v1098, 0.0
      %v1131 = vadd.f32 %v1099, 0.0
      %v1132 = vadd.f32 %v1100, 0.0
      %v1133 = vadd.f32 %v1101, 0.0
      %v1134 = vadd.f32 %v1102, 0.0
      %v1135 = vadd.f32 %v1103, 0.0
      %v1136 = vadd.f32 %v1104, 0.0
      %v1137 = vadd.f32 %v1105, 0.0
      %v1138 = vadd.f32 %v1106, 0.0
      %v1139 = vadd.f32 %v1107, 0.0
      %v1140 = vadd.f32 %v1108, 0.0
      %v1141 = vadd.f32 %v1109, 0.0
      %v1142 = vadd.f32 %v1110, 0.0
      %v1143 = vadd.f32 %v1111, 0.0
      %v1144 = vadd.f32 %v1112, 0.0
      %v1145 = vadd.f32 %v1113, 0.0
      %v1146 = vadd.f32 %v1114, 0.0
      %v1147 = vadd.f32 %v1115, 0.0
      %v1148 = vadd.f32 %v1116, 0.0
      %v1149 = vadd.f32 %v1117, 0.0
      %v1150 = vadd.f32 %v1118, 0.0
      %v1151 = vadd.f32 %v1119, 0.0
      %v1152 = vadd.f32 %v1120, 0.0
      %v1153 = vadd.f32 %v1121, 0.0
      %v1154 = vadd.f32 %v1122, 0.0
      %v1155 = vadd.f32 %v1123, 0.0
      %v1156 = vadd.f32 %v1124, 0.0
      %v1157 = vadd.f32 %v1125, 0.0
      %v1158 = vadd.f32 %v1126, 0.0
      %v1159 = vld [vmem:[#allocation2 + $0x1] sm:$0xff]
      %v1160 = vld [vmem:[#allocation2 + $0x9] sm:$0xff]
      %v1161 = vld [vmem:[#allocation2 + $0x19] sm:$0xff]
      %v1162 = vld [vmem:[#allocation2 + $0x21] sm:$0xff]
      %v1163 = vld [vmem:[#allocation2 + $0x31] sm:$0xff]
      %v1164 = vld [vmem:[#allocation2 + $0x39] sm:$0xff]
      %v1165 = vld [vmem:[#allocation2 + $0x49] sm:$0xff]
      %v1166 = vld [vmem:[#allocation2 + $0x51] sm:$0xff]
      %v1167 = vld [vmem:[#allocation2 + $0x61] sm:$0xff]
      %v1168 = vld [vmem:[#allocation2 + $0x69] sm:$0xff]
      %v1169 = vld [vmem:[#allocation2 + $0x79] sm:$0xff]
      %v1170 = vld [vmem:[#allocation2 + $0x81] sm:$0xff]
      %v1171 = vld [vmem:[#allocation2 + $0x91] sm:$0xff]
      %v1172 = vld [vmem:[#allocation2 + $0x99] sm:$0xff]
      %v1173 = vld [vmem:[#allocation2 + $0xa9] sm:$0xff]
      %v1174 = vld [vmem:[#allocation2 + $0xb1] sm:$0xff]
      %v1175 = vld [vmem:[#allocation2 + $0xc1] sm:$0xff]
      %v1176 = vld [vmem:[#allocation2 + $0xc9] sm:$0xff]
      %v1177 = vld [vmem:[#allocation2 + $0xd9] sm:$0xff]
      %v1178 = vld [vmem:[#allocation2 + $0xe1] sm:$0xff]
      %v1179 = vld [vmem:[#allocation2 + $0xf1] sm:$0xff]
      %v1180 = vld [vmem:[#allocation2 + $0xf9] sm:$0xff]
      %v1181 = vld [vmem:[#allocation2 + $0x109] sm:$0xff]
      %v1182 = vld [vmem:[#allocation2 + $0x111] sm:$0xff]
      %v1183 = vld [vmem:[#allocation2 + $0x121] sm:$0xff]
      %v1184 = vld [vmem:[#allocation2 + $0x129] sm:$0xff]
      %v1185 = vld [vmem:[#allocation2 + $0x139] sm:$0xff]
      %v1186 = vld [vmem:[#allocation2 + $0x141] sm:$0xff]
      %v1187 = vld [vmem:[#allocation2 + $0x151] sm:$0xff]
      %v1188 = vld [vmem:[#allocation2 + $0x159] sm:$0xff]
      %v1189 = vld [vmem:[#allocation2 + $0x169] sm:$0xff]
      %v1190 = vld [vmem:[#allocation2 + $0x171] sm:$0xff]
      %v1191 = vlaneseq
      %v1192 = vshrl.u32 %v1191, 7
      %v1193 = vsub.s32 1, %v1192
      %v1194 = vrot.slane %v969, %v1193
      %v1195 = vmul.f32 %v1159, %v1194
      %v1196 = vmul.f32 %v1160, %v1194
      %v1197 = vmul.f32 %v1161, %v1194
      %v1198 = vmul.f32 %v1162, %v1194
      %v1199 = vmul.f32 %v1163, %v1194
      %v1200 = vmul.f32 %v1164, %v1194
      %v1201 = vmul.f32 %v1165, %v1194
      %v1202 = vmul.f32 %v1166, %v1194
      %v1203 = vmul.f32 %v1167, %v1194
      %v1204 = vmul.f32 %v1168, %v1194
      %v1205 = vmul.f32 %v1169, %v1194
      %v1206 = vmul.f32 %v1170, %v1194
      %v1207 = vmul.f32 %v1171, %v1194
      %v1208 = vmul.f32 %v1172, %v1194
      %v1209 = vmul.f32 %v1173, %v1194
      %v1210 = vmul.f32 %v1174, %v1194
      %v1211 = vmul.f32 %v1175, %v1194
      %v1212 = vmul.f32 %v1176, %v1194
      %v1213 = vmul.f32 %v1177, %v1194
      %v1214 = vmul.f32 %v1178, %v1194
      %v1215 = vmul.f32 %v1179, %v1194
      %v1216 = vmul.f32 %v1180, %v1194
      %v1217 = vmul.f32 %v1181, %v1194
      %v1218 = vmul.f32 %v1182, %v1194
      %v1219 = vmul.f32 %v1183, %v1194
      %v1220 = vmul.f32 %v1184, %v1194
      %v1221 = vmul.f32 %v1185, %v1194
      %v1222 = vmul.f32 %v1186, %v1194
      %v1223 = vmul.f32 %v1187, %v1194
      %v1224 = vmul.f32 %v1188, %v1194
      %v1225 = vmul.f32 %v1189, %v1194
      %v1226 = vmul.f32 %v1190, %v1194
      %v1227 = vadd.f32 %v1127, %v1195
      %v1228 = vadd.f32 %v1128, %v1196
      %v1229 = vadd.f32 %v1129, %v1197
      %v1230 = vadd.f32 %v1130, %v1198
      %v1231 = vadd.f32 %v1131, %v1199
      %v1232 = vadd.f32 %v1132, %v1200
      %v1233 = vadd.f32 %v1133, %v1201
      %v1234 = vadd.f32 %v1134, %v1202
      %v1235 = vadd.f32 %v1135, %v1203
      %v1236 = vadd.f32 %v1136, %v1204
      %v1237 = vadd.f32 %v1137, %v1205
      %v1238 = vadd.f32 %v1138, %v1206
      %v1239 = vadd.f32 %v1139, %v1207
      %v1240 = vadd.f32 %v1140, %v1208
      %v1241 = vadd.f32 %v1141, %v1209
      %v1242 = vadd.f32 %v1142, %v1210
      %v1243 = vadd.f32 %v1143, %v1211
      %v1244 = vadd.f32 %v1144, %v1212
      %v1245 = vadd.f32 %v1145, %v1213
      %v1246 = vadd.f32 %v1146, %v1214
      %v1247 = vadd.f32 %v1147, %v1215
      %v1248 = vadd.f32 %v1148, %v1216
      %v1249 = vadd.f32 %v1149, %v1217
      %v1250 = vadd.f32 %v1150, %v1218
      %v1251 = vadd.f32 %v1151, %v1219
      %v1252 = vadd.f32 %v1152, %v1220
      %v1253 = vadd.f32 %v1153, %v1221
      %v1254 = vadd.f32 %v1154, %v1222
      %v1255 = vadd.f32 %v1155, %v1223
      %v1256 = vadd.f32 %v1156, %v1224
      %v1257 = vadd.f32 %v1157, %v1225
      %v1258 = vadd.f32 %v1158, %v1226
      %v1259 = vld [vmem:[#allocation2 + $0x2] sm:$0xff]
      %v1260 = vld [vmem:[#allocation2 + $0xa] sm:$0xff]
      %v1261 = vld [vmem:[#allocation2 + $0x1a] sm:$0xff]
      %v1262 = vld [vmem:[#allocation2 + $0x22] sm:$0xff]
      %v1263 = vld [vmem:[#allocation2 + $0x32] sm:$0xff]
      %v1264 = vld [vmem:[#allocation2 + $0x3a] sm:$0xff]
      %v1265 = vld [vmem:[#allocation2 + $0x4a] sm:$0xff]
      %v1266 = vld [vmem:[#allocation2 + $0x52] sm:$0xff]
      %v1267 = vld [vmem:[#allocation2 + $0x62] sm:$0xff]
      %v1268 = vld [vmem:[#allocation2 + $0x6a] sm:$0xff]
      %v1269 = vld [vmem:[#allocation2 + $0x7a] sm:$0xff]
      %v1270 = vld [vmem:[#allocation2 + $0x82] sm:$0xff]
      %v1271 = vld [vmem:[#allocation2 + $0x92] sm:$0xff]
      %v1272 = vld [vmem:[#allocation2 + $0x9a] sm:$0xff]
      %v1273 = vld [vmem:[#allocation2 + $0xaa] sm:$0xff]
      %v1274 = vld [vmem:[#allocation2 + $0xb2] sm:$0xff]
      %v1275 = vld [vmem:[#allocation2 + $0xc2] sm:$0xff]
      %v1276 = vld [vmem:[#allocation2 + $0xca] sm:$0xff]
      %v1277 = vld [vmem:[#allocation2 + $0xda] sm:$0xff]
      %v1278 = vld [vmem:[#allocation2 + $0xe2] sm:$0xff]
      %v1279 = vld [vmem:[#allocation2 + $0xf2] sm:$0xff]
      %v1280 = vld [vmem:[#allocation2 + $0xfa] sm:$0xff]
      %v1281 = vld [vmem:[#allocation2 + $0x10a] sm:$0xff]
      %v1282 = vld [vmem:[#allocation2 + $0x112] sm:$0xff]
      %v1283 = vld [vmem:[#allocation2 + $0x122] sm:$0xff]
      %v1284 = vld [vmem:[#allocation2 + $0x12a] sm:$0xff]
      %v1285 = vld [vmem:[#allocation2 + $0x13a] sm:$0xff]
      %v1286 = vld [vmem:[#allocation2 + $0x142] sm:$0xff]
      %v1287 = vld [vmem:[#allocation2 + $0x152] sm:$0xff]
      %v1288 = vld [vmem:[#allocation2 + $0x15a] sm:$0xff]
      %v1289 = vld [vmem:[#allocation2 + $0x16a] sm:$0xff]
      %v1290 = vld [vmem:[#allocation2 + $0x172] sm:$0xff]
      %v1291 = vlaneseq
      %v1292 = vshrl.u32 %v1291, 7
      %v1293 = vsub.s32 2, %v1292
      %v1294 = vrot.slane %v969, %v1293
      %v1295 = vmul.f32 %v1259, %v1294
      %v1296 = vmul.f32 %v1260, %v1294
      %v1297 = vmul.f32 %v1261, %v1294
      %v1298 = vmul.f32 %v1262, %v1294
      %v1299 = vmul.f32 %v1263, %v1294
      %v1300 = vmul.f32 %v1264, %v1294
      %v1301 = vmul.f32 %v1265, %v1294
      %v1302 = vmul.f32 %v1266, %v1294
      %v1303 = vmul.f32 %v1267, %v1294
      %v1304 = vmul.f32 %v1268, %v1294
      %v1305 = vmul.f32 %v1269, %v1294
      %v1306 = vmul.f32 %v1270, %v1294
      %v1307 = vmul.f32 %v1271, %v1294
      %v1308 = vmul.f32 %v1272, %v1294
      %v1309 = vmul.f32 %v1273, %v1294
      %v1310 = vmul.f32 %v1274, %v1294
      %v1311 = vmul.f32 %v1275, %v1294
      %v1312 = vmul.f32 %v1276, %v1294
      %v1313 = vmul.f32 %v1277, %v1294
      %v1314 = vmul.f32 %v1278, %v1294
      %v1315 = vmul.f32 %v1279, %v1294
      %v1316 = vmul.f32 %v1280, %v1294
      %v1317 = vmul.f32 %v1281, %v1294
      %v1318 = vmul.f32 %v1282, %v1294
      %v1319 = vmul.f32 %v1283, %v1294
      %v1320 = vmul.f32 %v1284, %v1294
      %v1321 = vmul.f32 %v1285, %v1294
      %v1322 = vmul.f32 %v1286, %v1294
      %v1323 = vmul.f32 %v1287, %v1294
      %v1324 = vmul.f32 %v1288, %v1294
      %v1325 = vmul.f32 %v1289, %v1294
      %v1326 = vmul.f32 %v1290, %v1294
      %v1327 = vadd.f32 %v1227, %v1295
      %v1328 = vadd.f32 %v1228, %v1296
      %v1329 = vadd.f32 %v1229, %v1297
      %v1330 = vadd.f32 %v1230, %v1298
      %v1331 = vadd.f32 %v1231, %v1299
      %v1332 = vadd.f32 %v1232, %v1300
      %v1333 = vadd.f32 %v1233, %v1301
      %v1334 = vadd.f32 %v1234, %v1302
      %v1335 = vadd.f32 %v1235, %v1303
      %v1336 = vadd.f32 %v1236, %v1304
      %v1337 = vadd.f32 %v1237, %v1305
      %v1338 = vadd.f32 %v1238, %v1306
      %v1339 = vadd.f32 %v1239, %v1307
      %v1340 = vadd.f32 %v1240, %v1308
      %v1341 = vadd.f32 %v1241, %v1309
      %v1342 = vadd.f32 %v1242, %v1310
      %v1343 = vadd.f32 %v1243, %v1311
      %v1344 = vadd.f32 %v1244, %v1312
      %v1345 = vadd.f32 %v1245, %v1313
      %v1346 = vadd.f32 %v1246, %v1314
      %v1347 = vadd.f32 %v1247, %v1315
      %v1348 = vadd.f32 %v1248, %v1316
      %v1349 = vadd.f32 %v1249, %v1317
      %v1350 = vadd.f32 %v1250, %v1318
      %v1351 = vadd.f32 %v1251, %v1319
      %v1352 = vadd.f32 %v1252, %v1320
      %v1353 = vadd.f32 %v1253, %v1321
      %v1354 = vadd.f32 %v1254, %v1322
      %v1355 = vadd.f32 %v1255, %v1323
      %v1356 = vadd.f32 %v1256, %v1324
      %v1357 = vadd.f32 %v1257, %v1325
      %v1358 = vadd.f32 %v1258, %v1326
      %v1359 = vld [vmem:[%s1026] sm:$0xff]
      %v1360 = vld [vmem:[%s1026 + $0x8] sm:$0xff]
      %v1361 = vld [vmem:[%s1026 + $0x18] sm:$0xff]
      %v1362 = vld [vmem:[%s1026 + $0x20] sm:$0xff]
      %v1363 = vld [vmem:[%s1026 + $0x30] sm:$0xff]
      %v1364 = vld [vmem:[%s1026 + $0x38] sm:$0xff]
      %v1365 = vld [vmem:[%s1026 + $0x48] sm:$0xff]
      %v1366 = vld [vmem:[%s1026 + $0x50] sm:$0xff]
      %v1367 = vld [vmem:[%s1026 + $0x60] sm:$0xff]
      %v1368 = vld [vmem:[%s1026 + $0x68] sm:$0xff]
      %v1369 = vld [vmem:[%s1026 + $0x78] sm:$0xff]
      %v1370 = vld [vmem:[%s1026 + $0x80] sm:$0xff]
      %v1371 = vld [vmem:[%s1026 + $0x90] sm:$0xff]
      %v1372 = vld [vmem:[%s1026 + $0x98] sm:$0xff]
      %v1373 = vld [vmem:[%s1026 + $0xa8] sm:$0xff]
      %v1374 = vld [vmem:[%s1026 + $0xb0] sm:$0xff]
      %v1375 = vld [vmem:[%s1026 + $0xc0] sm:$0xff]
      %v1376 = vld [vmem:[%s1026 + $0xc8] sm:$0xff]
      %v1377 = vld [vmem:[%s1026 + $0xd8] sm:$0xff]
      %v1378 = vld [vmem:[%s1026 + $0xe0] sm:$0xff]
      %v1379 = vld [vmem:[%s1026 + $0xf0] sm:$0xff]
      %v1380 = vld [vmem:[%s1026 + $0xf8] sm:$0xff]
      %v1381 = vld [vmem:[%s1026 + $0x108] sm:$0xff]
      %v1382 = vld [vmem:[%s1026 + $0x110] sm:$0xff]
      %v1383 = vld [vmem:[%s1026 + $0x120] sm:$0xff]
      %v1384 = vld [vmem:[%s1026 + $0x128] sm:$0xff]
      %v1385 = vld [vmem:[%s1026 + $0x138] sm:$0xff]
      %v1386 = vld [vmem:[%s1026 + $0x140] sm:$0xff]
      %v1387 = vld [vmem:[%s1026 + $0x150] sm:$0xff]
      %v1388 = vld [vmem:[%s1026 + $0x158] sm:$0xff]
      %v1389 = vld [vmem:[%s1026 + $0x168] sm:$0xff]
      %v1390 = vld [vmem:[%s1026 + $0x170] sm:$0xff]
      %v1391 = vlaneseq
      %v1392 = vshrl.u32 %v1391, 7
      %v1393 = vsub.s32 3, %v1392
      %v1394 = vrot.slane %v969, %v1393
      %v1395 = vmul.f32 %v1359, %v1394
      %v1396 = vmul.f32 %v1360, %v1394
      %v1397 = vmul.f32 %v1361, %v1394
      %v1398 = vmul.f32 %v1362, %v1394
      %v1399 = vmul.f32 %v1363, %v1394
      %v1400 = vmul.f32 %v1364, %v1394
      %v1401 = vmul.f32 %v1365, %v1394
      %v1402 = vmul.f32 %v1366, %v1394
      %v1403 = vmul.f32 %v1367, %v1394
      %v1404 = vmul.f32 %v1368, %v1394
      %v1405 = vmul.f32 %v1369, %v1394
      %v1406 = vmul.f32 %v1370, %v1394
      %v1407 = vmul.f32 %v1371, %v1394
      %v1408 = vmul.f32 %v1372, %v1394
      %v1409 = vmul.f32 %v1373, %v1394
      %v1410 = vmul.f32 %v1374, %v1394
      %v1411 = vmul.f32 %v1375, %v1394
      %v1412 = vmul.f32 %v1376, %v1394
      %v1413 = vmul.f32 %v1377, %v1394
      %v1414 = vmul.f32 %v1378, %v1394
      %v1415 = vmul.f32 %v1379, %v1394
      %v1416 = vmul.f32 %v1380, %v1394
      %v1417 = vmul.f32 %v1381, %v1394
      %v1418 = vmul.f32 %v1382, %v1394
      %v1419 = vmul.f32 %v1383, %v1394
      %v1420 = vmul.f32 %v1384, %v1394
      %v1421 = vmul.f32 %v1385, %v1394
      %v1422 = vmul.f32 %v1386, %v1394
      %v1423 = vmul.f32 %v1387, %v1394
      %v1424 = vmul.f32 %v1388, %v1394
      %v1425 = vmul.f32 %v1389, %v1394
      %v1426 = vmul.f32 %v1390, %v1394
      %v1427 = vadd.f32 %v1327, %v1395
      %v1428 = vadd.f32 %v1328, %v1396
      %v1429 = vadd.f32 %v1329, %v1397
      %v1430 = vadd.f32 %v1330, %v1398
      %v1431 = vadd.f32 %v1331, %v1399
      %v1432 = vadd.f32 %v1332, %v1400
      %v1433 = vadd.f32 %v1333, %v1401
      %v1434 = vadd.f32 %v1334, %v1402
      %v1435 = vadd.f32 %v1335, %v1403
      %v1436 = vadd.f32 %v1336, %v1404
      %v1437 = vadd.f32 %v1337, %v1405
      %v1438 = vadd.f32 %v1338, %v1406
      %v1439 = vadd.f32 %v1339, %v1407
      %v1440 = vadd.f32 %v1340, %v1408
      %v1441 = vadd.f32 %v1341, %v1409
      %v1442 = vadd.f32 %v1342, %v1410
      %v1443 = vadd.f32 %v1343, %v1411
      %v1444 = vadd.f32 %v1344, %v1412
      %v1445 = vadd.f32 %v1345, %v1413
      %v1446 = vadd.f32 %v1346, %v1414
      %v1447 = vadd.f32 %v1347, %v1415
      %v1448 = vadd.f32 %v1348, %v1416
      %v1449 = vadd.f32 %v1349, %v1417
      %v1450 = vadd.f32 %v1350, %v1418
      %v1451 = vadd.f32 %v1351, %v1419
      %v1452 = vadd.f32 %v1352, %v1420
      %v1453 = vadd.f32 %v1353, %v1421
      %v1454 = vadd.f32 %v1354, %v1422
      %v1455 = vadd.f32 %v1355, %v1423
      %v1456 = vadd.f32 %v1356, %v1424
      %v1457 = vadd.f32 %v1357, %v1425
      %v1458 = vadd.f32 %v1358, %v1426
      %v1459 = vld [vmem:[%s1026 + $0x1] sm:$0xff]
      %v1460 = vld [vmem:[%s1026 + $0x9] sm:$0xff]
      %v1461 = vld [vmem:[%s1026 + $0x19] sm:$0xff]
      %v1462 = vld [vmem:[%s1026 + $0x21] sm:$0xff]
      %v1463 = vld [vmem:[%s1026 + $0x31] sm:$0xff]
      %v1464 = vld [vmem:[%s1026 + $0x39] sm:$0xff]
      %v1465 = vld [vmem:[%s1026 + $0x49] sm:$0xff]
      %v1466 = vld [vmem:[%s1026 + $0x51] sm:$0xff]
      %v1467 = vld [vmem:[%s1026 + $0x61] sm:$0xff]
      %v1468 = vld [vmem:[%s1026 + $0x69] sm:$0xff]
      %v1469 = vld [vmem:[%s1026 + $0x79] sm:$0xff]
      %v1470 = vld [vmem:[%s1026 + $0x81] sm:$0xff]
      %v1471 = vld [vmem:[%s1026 + $0x91] sm:$0xff]
      %v1472 = vld [vmem:[%s1026 + $0x99] sm:$0xff]
      %v1473 = vld [vmem:[%s1026 + $0xa9] sm:$0xff]
      %v1474 = vld [vmem:[%s1026 + $0xb1] sm:$0xff]
      %v1475 = vld [vmem:[%s1026 + $0xc1] sm:$0xff]
      %v1476 = vld [vmem:[%s1026 + $0xc9] sm:$0xff]
      %v1477 = vld [vmem:[%s1026 + $0xd9] sm:$0xff]
      %v1478 = vld [vmem:[%s1026 + $0xe1] sm:$0xff]
      %v1479 = vld [vmem:[%s1026 + $0xf1] sm:$0xff]
      %v1480 = vld [vmem:[%s1026 + $0xf9] sm:$0xff]
      %v1481 = vld [vmem:[%s1026 + $0x109] sm:$0xff]
      %v1482 = vld [vmem:[%s1026 + $0x111] sm:$0xff]
      %v1483 = vld [vmem:[%s1026 + $0x121] sm:$0xff]
      %v1484 = vld [vmem:[%s1026 + $0x129] sm:$0xff]
      %v1485 = vld [vmem:[%s1026 + $0x139] sm:$0xff]
      %v1486 = vld [vmem:[%s1026 + $0x141] sm:$0xff]
      %v1487 = vld [vmem:[%s1026 + $0x151] sm:$0xff]
      %v1488 = vld [vmem:[%s1026 + $0x159] sm:$0xff]
      %v1489 = vld [vmem:[%s1026 + $0x169] sm:$0xff]
      %v1490 = vld [vmem:[%s1026 + $0x171] sm:$0xff]
      %v1491 = vlaneseq
      %v1492 = vshrl.u32 %v1491, 7
      %v1493 = vsub.s32 4, %v1492
      %v1494 = vrot.slane %v969, %v1493
      %v1495 = vmul.f32 %v1459, %v1494
      %v1496 = vmul.f32 %v1460, %v1494
      %v1497 = vmul.f32 %v1461, %v1494
      %v1498 = vmul.f32 %v1462, %v1494
      %v1499 = vmul.f32 %v1463, %v1494
      %v1500 = vmul.f32 %v1464, %v1494
      %v1501 = vmul.f32 %v1465, %v1494
      %v1502 = vmul.f32 %v1466, %v1494
      %v1503 = vmul.f32 %v1467, %v1494
      %v1504 = vmul.f32 %v1468, %v1494
      %v1505 = vmul.f32 %v1469, %v1494
      %v1506 = vmul.f32 %v1470, %v1494
      %v1507 = vmul.f32 %v1471, %v1494
      %v1508 = vmul.f32 %v1472, %v1494
      %v1509 = vmul.f32 %v1473, %v1494
      %v1510 = vmul.f32 %v1474, %v1494
      %v1511 = vmul.f32 %v1475, %v1494
      %v1512 = vmul.f32 %v1476, %v1494
      %v1513 = vmul.f32 %v1477, %v1494
      %v1514 = vmul.f32 %v1478, %v1494
      %v1515 = vmul.f32 %v1479, %v1494
      %v1516 = vmul.f32 %v1480, %v1494
      %v1517 = vmul.f32 %v1481, %v1494
      %v1518 = vmul.f32 %v1482, %v1494
      %v1519 = vmul.f32 %v1483, %v1494
      %v1520 = vmul.f32 %v1484, %v1494
      %v1521 = vmul.f32 %v1485, %v1494
      %v1522 = vmul.f32 %v1486, %v1494
      %v1523 = vmul.f32 %v1487, %v1494
      %v1524 = vmul.f32 %v1488, %v1494
      %v1525 = vmul.f32 %v1489, %v1494
      %v1526 = vmul.f32 %v1490, %v1494
      %v1527 = vadd.f32 %v1427, %v1495
      %v1528 = vadd.f32 %v1428, %v1496
      %v1529 = vadd.f32 %v1429, %v1497
      %v1530 = vadd.f32 %v1430, %v1498
      %v1531 = vadd.f32 %v1431, %v1499
      %v1532 = vadd.f32 %v1432, %v1500
      %v1533 = vadd.f32 %v1433, %v1501
      %v1534 = vadd.f32 %v1434, %v1502
      %v1535 = vadd.f32 %v1435, %v1503
      %v1536 = vadd.f32 %v1436, %v1504
      %v1537 = vadd.f32 %v1437, %v1505
      %v1538 = vadd.f32 %v1438, %v1506
      %v1539 = vadd.f32 %v1439, %v1507
      %v1540 = vadd.f32 %v1440, %v1508
      %v1541 = vadd.f32 %v1441, %v1509
      %v1542 = vadd.f32 %v1442, %v1510
      %v1543 = vadd.f32 %v1443, %v1511
      %v1544 = vadd.f32 %v1444, %v1512
      %v1545 = vadd.f32 %v1445, %v1513
      %v1546 = vadd.f32 %v1446, %v1514
      %v1547 = vadd.f32 %v1447, %v1515
      %v1548 = vadd.f32 %v1448, %v1516
      %v1549 = vadd.f32 %v1449, %v1517
      %v1550 = vadd.f32 %v1450, %v1518
      %v1551 = vadd.f32 %v1451, %v1519
      %v1552 = vadd.f32 %v1452, %v1520
      %v1553 = vadd.f32 %v1453, %v1521
      %v1554 = vadd.f32 %v1454, %v1522
      %v1555 = vadd.f32 %v1455, %v1523
      %v1556 = vadd.f32 %v1456, %v1524
      %v1557 = vadd.f32 %v1457, %v1525
      %v1558 = vadd.f32 %v1458, %v1526
      %v1559 = vld [vmem:[%s1026 + $0x2] sm:$0xff]
      %v1560 = vld [vmem:[%s1026 + $0xa] sm:$0xff]
      %v1561 = vld [vmem:[%s1026 + $0x1a] sm:$0xff]
      %v1562 = vld [vmem:[%s1026 + $0x22] sm:$0xff]
      %v1563 = vld [vmem:[%s1026 + $0x32] sm:$0xff]
      %v1564 = vld [vmem:[%s1026 + $0x3a] sm:$0xff]
      %v1565 = vld [vmem:[%s1026 + $0x4a] sm:$0xff]
      %v1566 = vld [vmem:[%s1026 + $0x52] sm:$0xff]
      %v1567 = vld [vmem:[%s1026 + $0x62] sm:$0xff]
      %v1568 = vld [vmem:[%s1026 + $0x6a] sm:$0xff]
      %v1569 = vld [vmem:[%s1026 + $0x7a] sm:$0xff]
      %v1570 = vld [vmem:[%s1026 + $0x82] sm:$0xff]
      %v1571 = vld [vmem:[%s1026 + $0x92] sm:$0xff]
      %v1572 = vld [vmem:[%s1026 + $0x9a] sm:$0xff]
      %v1573 = vld [vmem:[%s1026 + $0xaa] sm:$0xff]
      %v1574 = vld [vmem:[%s1026 + $0xb2] sm:$0xff]
      %v1575 = vld [vmem:[%s1026 + $0xc2] sm:$0xff]
      %v1576 = vld [vmem:[%s1026 + $0xca] sm:$0xff]
      %v1577 = vld [vmem:[%s1026 + $0xda] sm:$0xff]
      %v1578 = vld [vmem:[%s1026 + $0xe2] sm:$0xff]
      %v1579 = vld [vmem:[%s1026 + $0xf2] sm:$0xff]
      %v1580 = vld [vmem:[%s1026 + $0xfa] sm:$0xff]
      %v1581 = vld [vmem:[%s1026 + $0x10a] sm:$0xff]
      %v1582 = vld [vmem:[%s1026 + $0x112] sm:$0xff]
      %v1583 = vld [vmem:[%s1026 + $0x122] sm:$0xff]
      %v1584 = vld [vmem:[%s1026 + $0x12a] sm:$0xff]
      %v1585 = vld [vmem:[%s1026 + $0x13a] sm:$0xff]
      %v1586 = vld [vmem:[%s1026 + $0x142] sm:$0xff]
      %v1587 = vld [vmem:[%s1026 + $0x152] sm:$0xff]
      %v1588 = vld [vmem:[%s1026 + $0x15a] sm:$0xff]
      %v1589 = vld [vmem:[%s1026 + $0x16a] sm:$0xff]
      %v1590 = vld [vmem:[%s1026 + $0x172] sm:$0xff]
      %v1591 = vlaneseq
      %v1592 = vshrl.u32 %v1591, 7
      %v1593 = vsub.s32 5, %v1592
      %v1594 = vrot.slane %v969, %v1593
      %v1595 = vmul.f32 %v1559, %v1594
      %v1596 = vmul.f32 %v1560, %v1594
      %v1597 = vmul.f32 %v1561, %v1594
      %v1598 = vmul.f32 %v1562, %v1594
      %v1599 = vmul.f32 %v1563, %v1594
      %v1600 = vmul.f32 %v1564, %v1594
      %v1601 = vmul.f32 %v1565, %v1594
      %v1602 = vmul.f32 %v1566, %v1594
      %v1603 = vmul.f32 %v1567, %v1594
      %v1604 = vmul.f32 %v1568, %v1594
      %v1605 = vmul.f32 %v1569, %v1594
      %v1606 = vmul.f32 %v1570, %v1594
      %v1607 = vmul.f32 %v1571, %v1594
      %v1608 = vmul.f32 %v1572, %v1594
      %v1609 = vmul.f32 %v1573, %v1594
      %v1610 = vmul.f32 %v1574, %v1594
      %v1611 = vmul.f32 %v1575, %v1594
      %v1612 = vmul.f32 %v1576, %v1594
      %v1613 = vmul.f32 %v1577, %v1594
      %v1614 = vmul.f32 %v1578, %v1594
      %v1615 = vmul.f32 %v1579, %v1594
      %v1616 = vmul.f32 %v1580, %v1594
      %v1617 = vmul.f32 %v1581, %v1594
      %v1618 = vmul.f32 %v1582, %v1594
      %v1619 = vmul.f32 %v1583, %v1594
      %v1620 = vmul.f32 %v1584, %v1594
      %v1621 = vmul.f32 %v1585, %v1594
      %v1622 = vmul.f32 %v1586, %v1594
      %v1623 = vmul.f32 %v1587, %v1594
      %v1624 = vmul.f32 %v1588, %v1594
      %v1625 = vmul.f32 %v1589, %v1594
      %v1626 = vmul.f32 %v1590, %v1594
      %v1627 = vadd.f32 %v1527, %v1595
      %v1628 = vadd.f32 %v1528, %v1596
      %v1629 = vadd.f32 %v1529, %v1597
      %v1630 = vadd.f32 %v1530, %v1598
      %v1631 = vadd.f32 %v1531, %v1599
      %v1632 = vadd.f32 %v1532, %v1600
      %v1633 = vadd.f32 %v1533, %v1601
      %v1634 = vadd.f32 %v1534, %v1602
      %v1635 = vadd.f32 %v1535, %v1603
      %v1636 = vadd.f32 %v1536, %v1604
      %v1637 = vadd.f32 %v1537, %v1605
      %v1638 = vadd.f32 %v1538, %v1606
      %v1639 = vadd.f32 %v1539, %v1607
      %v1640 = vadd.f32 %v1540, %v1608
      %v1641 = vadd.f32 %v1541, %v1609
      %v1642 = vadd.f32 %v1542, %v1610
      %v1643 = vadd.f32 %v1543, %v1611
      %v1644 = vadd.f32 %v1544, %v1612
      %v1645 = vadd.f32 %v1545, %v1613
      %v1646 = vadd.f32 %v1546, %v1614
      %v1647 = vadd.f32 %v1547, %v1615
      %v1648 = vadd.f32 %v1548, %v1616
      %v1649 = vadd.f32 %v1549, %v1617
      %v1650 = vadd.f32 %v1550, %v1618
      %v1651 = vadd.f32 %v1551, %v1619
      %v1652 = vadd.f32 %v1552, %v1620
      %v1653 = vadd.f32 %v1553, %v1621
      %v1654 = vadd.f32 %v1554, %v1622
      %v1655 = vadd.f32 %v1555, %v1623
      %v1656 = vadd.f32 %v1556, %v1624
      %v1657 = vadd.f32 %v1557, %v1625
      %v1658 = vadd.f32 %v1558, %v1626
      %s1659 = scalar_lea.vmem [#allocation2], 48
      %v1660 = vld [vmem:[%s1659] sm:$0xff]
      %v1661 = vld [vmem:[%s1659 + $0x8] sm:$0xff]
      %v1662 = vld [vmem:[%s1659 + $0x18] sm:$0xff]
      %v1663 = vld [vmem:[%s1659 + $0x20] sm:$0xff]
      %v1664 = vld [vmem:[%s1659 + $0x30] sm:$0xff]
      %v1665 = vld [vmem:[%s1659 + $0x38] sm:$0xff]
      %v1666 = vld [vmem:[%s1659 + $0x48] sm:$0xff]
      %v1667 = vld [vmem:[%s1659 + $0x50] sm:$0xff]
      %v1668 = vld [vmem:[%s1659 + $0x60] sm:$0xff]
      %v1669 = vld [vmem:[%s1659 + $0x68] sm:$0xff]
      %v1670 = vld [vmem:[%s1659 + $0x78] sm:$0xff]
      %v1671 = vld [vmem:[%s1659 + $0x80] sm:$0xff]
      %v1672 = vld [vmem:[%s1659 + $0x90] sm:$0xff]
      %v1673 = vld [vmem:[%s1659 + $0x98] sm:$0xff]
      %v1674 = vld [vmem:[%s1659 + $0xa8] sm:$0xff]
      %v1675 = vld [vmem:[%s1659 + $0xb0] sm:$0xff]
      %v1676 = vld [vmem:[%s1659 + $0xc0] sm:$0xff]
      %v1677 = vld [vmem:[%s1659 + $0xc8] sm:$0xff]
      %v1678 = vld [vmem:[%s1659 + $0xd8] sm:$0xff]
      %v1679 = vld [vmem:[%s1659 + $0xe0] sm:$0xff]
      %v1680 = vld [vmem:[%s1659 + $0xf0] sm:$0xff]
      %v1681 = vld [vmem:[%s1659 + $0xf8] sm:$0xff]
      %v1682 = vld [vmem:[%s1659 + $0x108] sm:$0xff]
      %v1683 = vld [vmem:[%s1659 + $0x110] sm:$0xff]
      %v1684 = vld [vmem:[%s1659 + $0x120] sm:$0xff]
      %v1685 = vld [vmem:[%s1659 + $0x128] sm:$0xff]
      %v1686 = vld [vmem:[%s1659 + $0x138] sm:$0xff]
      %v1687 = vld [vmem:[%s1659 + $0x140] sm:$0xff]
      %v1688 = vld [vmem:[%s1659 + $0x150] sm:$0xff]
      %v1689 = vld [vmem:[%s1659 + $0x158] sm:$0xff]
      %v1690 = vld [vmem:[%s1659 + $0x168] sm:$0xff]
      %v1691 = vld [vmem:[%s1659 + $0x170] sm:$0xff]
      %v1692 = vlaneseq
      %v1693 = vshrl.u32 %v1692, 7
      %v1694 = vsub.s32 6, %v1693
      %v1695 = vrot.slane %v969, %v1694
      %v1696 = vmul.f32 %v1660, %v1695
      %v1697 = vmul.f32 %v1661, %v1695
      %v1698 = vmul.f32 %v1662, %v1695
      %v1699 = vmul.f32 %v1663, %v1695
      %v1700 = vmul.f32 %v1664, %v1695
      %v1701 = vmul.f32 %v1665, %v1695
      %v1702 = vmul.f32 %v1666, %v1695
      %v1703 = vmul.f32 %v1667, %v1695
      %v1704 = vmul.f32 %v1668, %v1695
      %v1705 = vmul.f32 %v1669, %v1695
      %v1706 = vmul.f32 %v1670, %v1695
      %v1707 = vmul.f32 %v1671, %v1695
      %v1708 = vmul.f32 %v1672, %v1695
      %v1709 = vmul.f32 %v1673, %v1695
      %v1710 = vmul.f32 %v1674, %v1695
      %v1711 = vmul.f32 %v1675, %v1695
      %v1712 = vmul.f32 %v1676, %v1695
      %v1713 = vmul.f32 %v1677, %v1695
      %v1714 = vmul.f32 %v1678, %v1695
      %v1715 = vmul.f32 %v1679, %v1695
      %v1716 = vmul.f32 %v1680, %v1695
      %v1717 = vmul.f32 %v1681, %v1695
      %v1718 = vmul.f32 %v1682, %v1695
      %v1719 = vmul.f32 %v1683, %v1695
      %v1720 = vmul.f32 %v1684, %v1695
      %v1721 = vmul.f32 %v1685, %v1695
      %v1722 = vmul.f32 %v1686, %v1695
      %v1723 = vmul.f32 %v1687, %v1695
      %v1724 = vmul.f32 %v1688, %v1695
      %v1725 = vmul.f32 %v1689, %v1695
      %v1726 = vmul.f32 %v1690, %v1695
      %v1727 = vmul.f32 %v1691, %v1695
      %v1728 = vadd.f32 %v1627, %v1696
      %v1729 = vadd.f32 %v1628, %v1697
      %v1730 = vadd.f32 %v1629, %v1698
      %v1731 = vadd.f32 %v1630, %v1699
      %v1732 = vadd.f32 %v1631, %v1700
      %v1733 = vadd.f32 %v1632, %v1701
      %v1734 = vadd.f32 %v1633, %v1702
      %v1735 = vadd.f32 %v1634, %v1703
      %v1736 = vadd.f32 %v1635, %v1704
      %v1737 = vadd.f32 %v1636, %v1705
      %v1738 = vadd.f32 %v1637, %v1706
      %v1739 = vadd.f32 %v1638, %v1707
      %v1740 = vadd.f32 %v1639, %v1708
      %v1741 = vadd.f32 %v1640, %v1709
      %v1742 = vadd.f32 %v1641, %v1710
      %v1743 = vadd.f32 %v1642, %v1711
      %v1744 = vadd.f32 %v1643, %v1712
      %v1745 = vadd.f32 %v1644, %v1713
      %v1746 = vadd.f32 %v1645, %v1714
      %v1747 = vadd.f32 %v1646, %v1715
      %v1748 = vadd.f32 %v1647, %v1716
      %v1749 = vadd.f32 %v1648, %v1717
      %v1750 = vadd.f32 %v1649, %v1718
      %v1751 = vadd.f32 %v1650, %v1719
      %v1752 = vadd.f32 %v1651, %v1720
      %v1753 = vadd.f32 %v1652, %v1721
      %v1754 = vadd.f32 %v1653, %v1722
      %v1755 = vadd.f32 %v1654, %v1723
      %v1756 = vadd.f32 %v1655, %v1724
      %v1757 = vadd.f32 %v1656, %v1725
      %v1758 = vadd.f32 %v1657, %v1726
      %v1759 = vadd.f32 %v1658, %v1727
      %v1760 = vld [vmem:[%s1659 + $0x1] sm:$0xff]
      %v1761 = vld [vmem:[%s1659 + $0x9] sm:$0xff]
      %v1762 = vld [vmem:[%s1659 + $0x19] sm:$0xff]
      %v1763 = vld [vmem:[%s1659 + $0x21] sm:$0xff]
      %v1764 = vld [vmem:[%s1659 + $0x31] sm:$0xff]
      %v1765 = vld [vmem:[%s1659 + $0x39] sm:$0xff]
      %v1766 = vld [vmem:[%s1659 + $0x49] sm:$0xff]
      %v1767 = vld [vmem:[%s1659 + $0x51] sm:$0xff]
      %v1768 = vld [vmem:[%s1659 + $0x61] sm:$0xff]
      %v1769 = vld [vmem:[%s1659 + $0x69] sm:$0xff]
      %v1770 = vld [vmem:[%s1659 + $0x79] sm:$0xff]
      %v1771 = vld [vmem:[%s1659 + $0x81] sm:$0xff]
      %v1772 = vld [vmem:[%s1659 + $0x91] sm:$0xff]
      %v1773 = vld [vmem:[%s1659 + $0x99] sm:$0xff]
      %v1774 = vld [vmem:[%s1659 + $0xa9] sm:$0xff]
      %v1775 = vld [vmem:[%s1659 + $0xb1] sm:$0xff]
      %v1776 = vld [vmem:[%s1659 + $0xc1] sm:$0xff]
      %v1777 = vld [vmem:[%s1659 + $0xc9] sm:$0xff]
      %v1778 = vld [vmem:[%s1659 + $0xd9] sm:$0xff]
      %v1779 = vld [vmem:[%s1659 + $0xe1] sm:$0xff]
      %v1780 = vld [vmem:[%s1659 + $0xf1] sm:$0xff]
      %v1781 = vld [vmem:[%s1659 + $0xf9] sm:$0xff]
      %v1782 = vld [vmem:[%s1659 + $0x109] sm:$0xff]
      %v1783 = vld [vmem:[%s1659 + $0x111] sm:$0xff]
      %v1784 = vld [vmem:[%s1659 + $0x121] sm:$0xff]
      %v1785 = vld [vmem:[%s1659 + $0x129] sm:$0xff]
      %v1786 = vld [vmem:[%s1659 + $0x139] sm:$0xff]
      %v1787 = vld [vmem:[%s1659 + $0x141] sm:$0xff]
      %v1788 = vld [vmem:[%s1659 + $0x151] sm:$0xff]
      %v1789 = vld [vmem:[%s1659 + $0x159] sm:$0xff]
      %v1790 = vld [vmem:[%s1659 + $0x169] sm:$0xff]
      %v1791 = vld [vmem:[%s1659 + $0x171] sm:$0xff]
      %v1792 = vlaneseq
      %v1793 = vshrl.u32 %v1792, 7
      %v1794 = vsub.s32 7, %v1793
      %v1795 = vrot.slane %v969, %v1794
      %v1796 = vmul.f32 %v1760, %v1795
      %v1797 = vmul.f32 %v1761, %v1795
      %v1798 = vmul.f32 %v1762, %v1795
      %v1799 = vmul.f32 %v1763, %v1795
      %v1800 = vmul.f32 %v1764, %v1795
      %v1801 = vmul.f32 %v1765, %v1795
      %v1802 = vmul.f32 %v1766, %v1795
      %v1803 = vmul.f32 %v1767, %v1795
      %v1804 = vmul.f32 %v1768, %v1795
      %v1805 = vmul.f32 %v1769, %v1795
      %v1806 = vmul.f32 %v1770, %v1795
      %v1807 = vmul.f32 %v1771, %v1795
      %v1808 = vmul.f32 %v1772, %v1795
      %v1809 = vmul.f32 %v1773, %v1795
      %v1810 = vmul.f32 %v1774, %v1795
      %v1811 = vmul.f32 %v1775, %v1795
      %v1812 = vmul.f32 %v1776, %v1795
      %v1813 = vmul.f32 %v1777, %v1795
      %v1814 = vmul.f32 %v1778, %v1795
      %v1815 = vmul.f32 %v1779, %v1795
      %v1816 = vmul.f32 %v1780, %v1795
      %v1817 = vmul.f32 %v1781, %v1795
      %v1818 = vmul.f32 %v1782, %v1795
      %v1819 = vmul.f32 %v1783, %v1795
      %v1820 = vmul.f32 %v1784, %v1795
      %v1821 = vmul.f32 %v1785, %v1795
      %v1822 = vmul.f32 %v1786, %v1795
      %v1823 = vmul.f32 %v1787, %v1795
      %v1824 = vmul.f32 %v1788, %v1795
      %v1825 = vmul.f32 %v1789, %v1795
      %v1826 = vmul.f32 %v1790, %v1795
      %v1827 = vmul.f32 %v1791, %v1795
      %v1828 = vadd.f32 %v1728, %v1796
      %v1829 = vadd.f32 %v1729, %v1797
      %v1830 = vadd.f32 %v1730, %v1798
      %v1831 = vadd.f32 %v1731, %v1799
      %v1832 = vadd.f32 %v1732, %v1800
      %v1833 = vadd.f32 %v1733, %v1801
      %v1834 = vadd.f32 %v1734, %v1802
      %v1835 = vadd.f32 %v1735, %v1803
      %v1836 = vadd.f32 %v1736, %v1804
      %v1837 = vadd.f32 %v1737, %v1805
      %v1838 = vadd.f32 %v1738, %v1806
      %v1839 = vadd.f32 %v1739, %v1807
      %v1840 = vadd.f32 %v1740, %v1808
      %v1841 = vadd.f32 %v1741, %v1809
      %v1842 = vadd.f32 %v1742, %v1810
      %v1843 = vadd.f32 %v1743, %v1811
      %v1844 = vadd.f32 %v1744, %v1812
      %v1845 = vadd.f32 %v1745, %v1813
      %v1846 = vadd.f32 %v1746, %v1814
      %v1847 = vadd.f32 %v1747, %v1815
      %v1848 = vadd.f32 %v1748, %v1816
      %v1849 = vadd.f32 %v1749, %v1817
      %v1850 = vadd.f32 %v1750, %v1818
      %v1851 = vadd.f32 %v1751, %v1819
      %v1852 = vadd.f32 %v1752, %v1820
      %v1853 = vadd.f32 %v1753, %v1821
      %v1854 = vadd.f32 %v1754, %v1822
      %v1855 = vadd.f32 %v1755, %v1823
      %v1856 = vadd.f32 %v1756, %v1824
      %v1857 = vadd.f32 %v1757, %v1825
      %v1858 = vadd.f32 %v1758, %v1826
      %v1859 = vadd.f32 %v1759, %v1827
      %v1860 = vld [vmem:[%s1659 + $0x2] sm:$0xff]
      %v1861 = vld [vmem:[%s1659 + $0xa] sm:$0xff]
      %v1862 = vld [vmem:[%s1659 + $0x1a] sm:$0xff]
      %v1863 = vld [vmem:[%s1659 + $0x22] sm:$0xff]
      %v1864 = vld [vmem:[%s1659 + $0x32] sm:$0xff]
      %v1865 = vld [vmem:[%s1659 + $0x3a] sm:$0xff]
      %v1866 = vld [vmem:[%s1659 + $0x4a] sm:$0xff]
      %v1867 = vld [vmem:[%s1659 + $0x52] sm:$0xff]
      %v1868 = vld [vmem:[%s1659 + $0x62] sm:$0xff]
      %v1869 = vld [vmem:[%s1659 + $0x6a] sm:$0xff]
      %v1870 = vld [vmem:[%s1659 + $0x7a] sm:$0xff]
      %v1871 = vld [vmem:[%s1659 + $0x82] sm:$0xff]
      %v1872 = vld [vmem:[%s1659 + $0x92] sm:$0xff]
      %v1873 = vld [vmem:[%s1659 + $0x9a] sm:$0xff]
      %v1874 = vld [vmem:[%s1659 + $0xaa] sm:$0xff]
      %v1875 = vld [vmem:[%s1659 + $0xb2] sm:$0xff]
      %v1876 = vld [vmem:[%s1659 + $0xc2] sm:$0xff]
      %v1877 = vld [vmem:[%s1659 + $0xca] sm:$0xff]
      %v1878 = vld [vmem:[%s1659 + $0xda] sm:$0xff]
      %v1879 = vld [vmem:[%s1659 + $0xe2] sm:$0xff]
      %v1880 = vld [vmem:[%s1659 + $0xf2] sm:$0xff]
      %v1881 = vld [vmem:[%s1659 + $0xfa] sm:$0xff]
      %v1882 = vld [vmem:[%s1659 + $0x10a] sm:$0xff]
      %v1883 = vld [vmem:[%s1659 + $0x112] sm:$0xff]
      %v1884 = vld [vmem:[%s1659 + $0x122] sm:$0xff]
      %v1885 = vld [vmem:[%s1659 + $0x12a] sm:$0xff]
      %v1886 = vld [vmem:[%s1659 + $0x13a] sm:$0xff]
      %v1887 = vld [vmem:[%s1659 + $0x142] sm:$0xff]
      %v1888 = vld [vmem:[%s1659 + $0x152] sm:$0xff]
      %v1889 = vld [vmem:[%s1659 + $0x15a] sm:$0xff]
      %v1890 = vld [vmem:[%s1659 + $0x16a] sm:$0xff]
      %v1891 = vld [vmem:[%s1659 + $0x172] sm:$0xff]
      %v1892 = vlaneseq
      %v1893 = vshrl.u32 %v1892, 7
      %v1894 = vsub.s32 0, %v1893
      %v1895 = vrot.slane %v970, %v1894
      %v1896 = vmul.f32 %v1860, %v1895
      %v1897 = vmul.f32 %v1861, %v1895
      %v1898 = vmul.f32 %v1862, %v1895
      %v1899 = vmul.f32 %v1863, %v1895
      %v1900 = vmul.f32 %v1864, %v1895
      %v1901 = vmul.f32 %v1865, %v1895
      %v1902 = vmul.f32 %v1866, %v1895
      %v1903 = vmul.f32 %v1867, %v1895
      %v1904 = vmul.f32 %v1868, %v1895
      %v1905 = vmul.f32 %v1869, %v1895
      %v1906 = vmul.f32 %v1870, %v1895
      %v1907 = vmul.f32 %v1871, %v1895
      %v1908 = vmul.f32 %v1872, %v1895
      %v1909 = vmul.f32 %v1873, %v1895
      %v1910 = vmul.f32 %v1874, %v1895
      %v1911 = vmul.f32 %v1875, %v1895
      %v1912 = vmul.f32 %v1876, %v1895
      %v1913 = vmul.f32 %v1877, %v1895
      %v1914 = vmul.f32 %v1878, %v1895
      %v1915 = vmul.f32 %v1879, %v1895
      %v1916 = vmul.f32 %v1880, %v1895
      %v1917 = vmul.f32 %v1881, %v1895
      %v1918 = vmul.f32 %v1882, %v1895
      %v1919 = vmul.f32 %v1883, %v1895
      %v1920 = vmul.f32 %v1884, %v1895
      %v1921 = vmul.f32 %v1885, %v1895
      %v1922 = vmul.f32 %v1886, %v1895
      %v1923 = vmul.f32 %v1887, %v1895
      %v1924 = vmul.f32 %v1888, %v1895
      %v1925 = vmul.f32 %v1889, %v1895
      %v1926 = vmul.f32 %v1890, %v1895
      %v1927 = vmul.f32 %v1891, %v1895
      %v1928 = vadd.f32 %v1828, %v1896
      %v1929 = vadd.f32 %v1829, %v1897
      %v1930 = vadd.f32 %v1830, %v1898
      %v1931 = vadd.f32 %v1831, %v1899
      %v1932 = vadd.f32 %v1832, %v1900
      %v1933 = vadd.f32 %v1833, %v1901
      %v1934 = vadd.f32 %v1834, %v1902
      %v1935 = vadd.f32 %v1835, %v1903
      %v1936 = vadd.f32 %v1836, %v1904
      %v1937 = vadd.f32 %v1837, %v1905
      %v1938 = vadd.f32 %v1838, %v1906
      %v1939 = vadd.f32 %v1839, %v1907
      %v1940 = vadd.f32 %v1840, %v1908
      %v1941 = vadd.f32 %v1841, %v1909
      %v1942 = vadd.f32 %v1842, %v1910
      %v1943 = vadd.f32 %v1843, %v1911
      %v1944 = vadd.f32 %v1844, %v1912
      %v1945 = vadd.f32 %v1845, %v1913
      %v1946 = vadd.f32 %v1846, %v1914
      %v1947 = vadd.f32 %v1847, %v1915
      %v1948 = vadd.f32 %v1848, %v1916
      %v1949 = vadd.f32 %v1849, %v1917
      %v1950 = vadd.f32 %v1850, %v1918
      %v1951 = vadd.f32 %v1851, %v1919
      %v1952 = vadd.f32 %v1852, %v1920
      %v1953 = vadd.f32 %v1853, %v1921
      %v1954 = vadd.f32 %v1854, %v1922
      %v1955 = vadd.f32 %v1855, %v1923
      %v1956 = vadd.f32 %v1856, %v1924
      %v1957 = vadd.f32 %v1857, %v1925
      %v1958 = vadd.f32 %v1858, %v1926
      %v1959 = vadd.f32 %v1859, %v1927
      %v1960 = vld [vmem:[%s5] sm:$0x1]
      %v1962 = vlaneseq
      %v1963 = vshrl.u32 %v1962, 7
      %v1964 = vsub.s32 0, %v1963
      %v1965 = vrot.slane %v1960, %v1964
      %v1967 = vadd.f32 %v1928, %v1965
      %v1968 = vadd.f32 %v1929, %v1965
      %v1969 = vadd.f32 %v1930, %v1965
      %v1970 = vadd.f32 %v1931, %v1965
      %v1971 = vadd.f32 %v1932, %v1965
      %v1972 = vadd.f32 %v1933, %v1965
      %v1973 = vadd.f32 %v1934, %v1965
      %v1974 = vadd.f32 %v1935, %v1965
      %v1975 = vadd.f32 %v1936, %v1965
      %v1976 = vadd.f32 %v1937, %v1965
      %v1977 = vadd.f32 %v1938, %v1965
      %v1978 = vadd.f32 %v1939, %v1965
      %v1979 = vadd.f32 %v1940, %v1965
      %v1980 = vadd.f32 %v1941, %v1965
      %v1981 = vadd.f32 %v1942, %v1965
      %v1982 = vadd.f32 %v1943, %v1965
      %v1983 = vadd.f32 %v1944, %v1965
      %v1984 = vadd.f32 %v1945, %v1965
      %v1985 = vadd.f32 %v1946, %v1965
      %v1986 = vadd.f32 %v1947, %v1965
      %v1987 = vadd.f32 %v1948, %v1965
      %v1988 = vadd.f32 %v1949, %v1965
      %v1989 = vadd.f32 %v1950, %v1965
      %v1990 = vadd.f32 %v1951, %v1965
      %v1991 = vadd.f32 %v1952, %v1965
      %v1992 = vadd.f32 %v1953, %v1965
      %v1993 = vadd.f32 %v1954, %v1965
      %v1994 = vadd.f32 %v1955, %v1965
      %v1995 = vadd.f32 %v1956, %v1965
      %v1996 = vadd.f32 %v1957, %v1965
      %v1997 = vadd.f32 %v1958, %v1965
      %v1998 = vadd.f32 %v1959, %v1965
      %v1999 = vld [vmem:[%s6] sm:$0xff]
      %v2000 = vld [vmem:[%s7] sm:$0x1]
      %v2002 = vlaneseq
      %v2003 = vshrl.u32 %v2002, 7
      %v2004 = vsub.s32 0, %v2003
      %v2005 = vrot.slane %v2000, %v2004
      %v2008 = vsel %vm487, %v1967, 0
      %v2011 = vsel %vm487, %v1968, 0
      %v2014 = vsel %vm487, %v1969, 0
      %v2017 = vsel %vm487, %v1970, 0
      %v2020 = vsel %vm487, %v1971, 0
      %v2023 = vsel %vm487, %v1972, 0
      %v2026 = vsel %vm487, %v1973, 0
      %v2029 = vsel %vm487, %v1974, 0
      %v2032 = vsel %vm487, %v1975, 0
      %v2035 = vsel %vm487, %v1976, 0
      %v2038 = vsel %vm487, %v1977, 0
      %v2041 = vsel %vm487, %v1978, 0
      %v2044 = vsel %vm487, %v1979, 0
      %v2047 = vsel %vm487, %v1980, 0
      %v2050 = vsel %vm487, %v1981, 0
      %v2053 = vsel %vm487, %v1982, 0
      %v2056 = vsel %vm487, %v1983, 0
      %v2059 = vsel %vm487, %v1984, 0
      %v2062 = vsel %vm487, %v1985, 0
      %v2065 = vsel %vm487, %v1986, 0
      %v2068 = vsel %vm487, %v1987, 0
      %v2071 = vsel %vm487, %v1988, 0
      %v2074 = vsel %vm487, %v1989, 0
      %v2077 = vsel %vm487, %v1990, 0
      %v2080 = vsel %vm487, %v1991, 0
      %v2083 = vsel %vm487, %v1992, 0
      %v2086 = vsel %vm487, %v1993, 0
      %v2089 = vsel %vm487, %v1994, 0
      %v2092 = vsel %vm487, %v1995, 0
      %v2095 = vsel %vm487, %v1996, 0
      %v2098 = vsel %vm487, %v1997, 0
      %v2101 = vsel %vm487, %v1998, 0
      %2103 = vmatprep.subr.mxu0 0.0
      %2104 = vmatpush1.msra.mxu0 %v1999
      %2105 = vmatprep.subr.mxu0 0.0
      %2106 = vmatpush1.msra.mxu0 0.0
      %2107 = vmatprep.subr.mxu0 0.0
      %2108 = vmatpush1.msra.mxu0 0.0
      %2109 = vmatprep.subr.mxu0 0.0
      %2110 = vmatpush1.msra.mxu0 0.0
      %2111 = vmatprep.subr.mxu0 0.0
      %2112 = vmatpush1.msra.mxu0 0.0
      %2113 = vmatprep.subr.mxu0 0.0
      %2114 = vmatpush1.msra.mxu0 0.0
      %2115 = vmatprep.subr.mxu0 0.0
      %2116 = vmatpush1.msra.mxu0 0.0
      %2117 = vmatprep.subr.mxu0 0.0
      %2118 = vmatpush1.msra.mxu0 0.0
      %2119 = vmatprep.subr.mxu0 0.0
      %2120 = vmatpush1.msra.mxu0 0.0
      %2121 = vmatprep.subr.mxu0 0.0
      %2122 = vmatpush1.msra.mxu0 0.0
      %2123 = vmatprep.subr.mxu0 0.0
      %2124 = vmatpush1.msra.mxu0 0.0
      %2125 = vmatprep.subr.mxu0 0.0
      %2126 = vmatpush1.msra.mxu0 0.0
      %2127 = vmatprep.subr.mxu0 0.0
      %2128 = vmatpush1.msra.mxu0 0.0
      %2129 = vmatprep.subr.mxu0 0.0
      %2130 = vmatpush1.msra.mxu0 0.0
      %2131 = vmatprep.subr.mxu0 0.0
      %2132 = vmatpush1.msra.mxu0 0.0
      %2133 = vmatprep.subr.mxu0 0.0
      %2134 = vmatpush1.msra.mxu0 0.0
      %2135 = vmatprep.subr.mxu0 0.0
      %2136 = vmatpush1.msra.mxu0 0.0
      %2137 = vmatprep.subr.mxu0 0.0
      %2138 = vmatpush1.msra.mxu0 0.0
      %2139 = vmatprep.subr.mxu0 0.0
      %2140 = vmatpush1.msra.mxu0 0.0
      %2141 = vmatprep.subr.mxu0 0.0
      %2142 = vmatpush1.msra.mxu0 0.0
      %2143 = vmatprep.subr.mxu0 0.0
      %2144 = vmatpush1.msra.mxu0 0.0
      %2145 = vmatprep.subr.mxu0 0.0
      %2146 = vmatpush1.msra.mxu0 0.0
      %2147 = vmatprep.subr.mxu0 0.0
      %2148 = vmatpush1.msra.mxu0 0.0
      %2149 = vmatprep.subr.mxu0 0.0
      %2150 = vmatpush1.msra.mxu0 0.0
      %2151 = vmatprep.subr.mxu0 0.0
      %2152 = vmatpush1.msra.mxu0 0.0
      %2153 = vmatprep.subr.mxu0 0.0
      %2154 = vmatpush1.msra.mxu0 0.0
      %2155 = vmatprep.subr.mxu0 0.0
      %2156 = vmatpush1.msra.mxu0 0.0
      %2157 = vmatprep.subr.mxu0 0.0
      %2158 = vmatpush1.msra.mxu0 0.0
      %2159 = vmatprep.subr.mxu0 0.0
      %2160 = vmatpush1.msra.mxu0 0.0
      %2161 = vmatprep.subr.mxu0 0.0
      %2162 = vmatpush1.msra.mxu0 0.0
      %2163 = vmatprep.subr.mxu0 0.0
      %2164 = vmatpush1.msra.mxu0 0.0
      %2165 = vmatprep.subr.mxu0 0.0
      %2166 = vmatpush1.msra.mxu0 0.0
      %2167 = vmatprep.mubr.f32.mxu0 0.0
      %2168 = vmatmul.mubr.f32.gmra.mrb[0].mxu0 %v2008
      %v2169 = vpop.f32.mrb[0].mxu0
      %v2170 = vadd.f32 %v2005, %v2169
      %v2171 = vpop.f32.mrb[0].mxu0
      %2172 = vmatprep.mubr.f32.mxu0 0.0
      %2173 = vmatmul.mubr.f32.gmra.mrb[0].mxu0 %v2011
      %v2174 = vpop.f32.mrb[0].mxu0
      %v2175 = vadd.f32 %v2005, %v2174
      %v2176 = vpop.f32.mrb[0].mxu0
      %2177 = vmatprep.mubr.f32.mxu0 0.0
      %2178 = vmatmul.mubr.f32.gmra.mrb[0].mxu0 %v2014
      %v2179 = vpop.f32.mrb[0].mxu0
      %v2180 = vadd.f32 %v2005, %v2179
      %v2181 = vpop.f32.mrb[0].mxu0
      %2182 = vmatprep.mubr.f32.mxu0 0.0
      %2183 = vmatmul.mubr.f32.gmra.mrb[0].mxu0 %v2017
      %v2184 = vpop.f32.mrb[0].mxu0
      %v2185 = vadd.f32 %v2005, %v2184
      %v2186 = vpop.f32.mrb[0].mxu0
      %2187 = vmatprep.mubr.f32.mxu0 0.0
      %2188 = vmatmul.mubr.f32.gmra.mrb[0].mxu0 %v2020
      %v2189 = vpop.f32.mrb[0].mxu0
      %v2190 = vadd.f32 %v2005, %v2189
      %v2191 = vpop.f32.mrb[0].mxu0
      %2192 = vmatprep.mubr.f32.mxu0 0.0
      %2193 = vmatmul.mubr.f32.gmra.mrb[0].mxu0 %v2023
      %v2194 = vpop.f32.mrb[0].mxu0
      %v2195 = vadd.f32 %v2005, %v2194
      %v2196 = vpop.f32.mrb[0].mxu0
      %2197 = vmatprep.mubr.f32.mxu0 0.0
      %2198 = vmatmul.mubr.f32.gmra.mrb[0].mxu0 %v2026
      %v2199 = vpop.f32.mrb[0].mxu0
      %v2200 = vadd.f32 %v2005, %v2199
      %v2201 = vpop.f32.mrb[0].mxu0
      %2202 = vmatprep.mubr.f32.mxu0 0.0
      %2203 = vmatmul.mubr.f32.gmra.mrb[0].mxu0 %v2029
      %v2204 = vpop.f32.mrb[0].mxu0
      %v2205 = vadd.f32 %v2005, %v2204
      %v2206 = vpop.f32.mrb[0].mxu0
      %2207 = vmatprep.mubr.f32.mxu0 0.0
      %2208 = vmatmul.mubr.f32.gmra.mrb[0].mxu0 %v2032
      %v2209 = vpop.f32.mrb[0].mxu0
      %v2210 = vadd.f32 %v2005, %v2209
      %v2211 = vpop.f32.mrb[0].mxu0
      %2212 = vmatprep.mubr.f32.mxu0 0.0
      %2213 = vmatmul.mubr.f32.gmra.mrb[0].mxu0 %v2035
      %v2214 = vpop.f32.mrb[0].mxu0
      %v2215 = vadd.f32 %v2005, %v2214
      %v2216 = vpop.f32.mrb[0].mxu0
      %2217 = vmatprep.mubr.f32.mxu0 0.0
      %2218 = vmatmul.mubr.f32.gmra.mrb[0].mxu0 %v2038
      %v2219 = vpop.f32.mrb[0].mxu0
      %v2220 = vadd.f32 %v2005, %v2219
      %v2221 = vpop.f32.mrb[0].mxu0
      %2222 = vmatprep.mubr.f32.mxu0 0.0
      %2223 = vmatmul.mubr.f32.gmra.mrb[0].mxu0 %v2041
      %v2224 = vpop.f32.mrb[0].mxu0
      %v2225 = vadd.f32 %v2005, %v2224
      %v2226 = vpop.f32.mrb[0].mxu0
      %2227 = vmatprep.mubr.f32.mxu0 0.0
      %2228 = vmatmul.mubr.f32.gmra.mrb[0].mxu0 %v2044
      %v2229 = vpop.f32.mrb[0].mxu0
      %v2230 = vadd.f32 %v2005, %v2229
      %v2231 = vpop.f32.mrb[0].mxu0
      %2232 = vmatprep.mubr.f32.mxu0 0.0
      %2233 = vmatmul.mubr.f32.gmra.mrb[0].mxu0 %v2047
      %v2234 = vpop.f32.mrb[0].mxu0
      %v2235 = vadd.f32 %v2005, %v2234
      %v2236 = vpop.f32.mrb[0].mxu0
      %2237 = vmatprep.mubr.f32.mxu0 0.0
      %2238 = vmatmul.mubr.f32.gmra.mrb[0].mxu0 %v2050
      %v2239 = vpop.f32.mrb[0].mxu0
      %v2240 = vadd.f32 %v2005, %v2239
      %v2241 = vpop.f32.mrb[0].mxu0
      %2242 = vmatprep.mubr.f32.mxu0 0.0
      %2243 = vmatmul.mubr.f32.gmra.mrb[0].mxu0 %v2053
      %v2244 = vpop.f32.mrb[0].mxu0
      %v2245 = vadd.f32 %v2005, %v2244
      %v2246 = vpop.f32.mrb[0].mxu0
      %2247 = vmatprep.mubr.f32.mxu0 0.0
      %2248 = vmatmul.mubr.f32.gmra.mrb[0].mxu0 %v2056
      %v2249 = vpop.f32.mrb[0].mxu0
      %v2250 = vadd.f32 %v2005, %v2249
      %v2251 = vpop.f32.mrb[0].mxu0
      %2252 = vmatprep.mubr.f32.mxu0 0.0
      %2253 = vmatmul.mubr.f32.gmra.mrb[0].mxu0 %v2059
      %v2254 = vpop.f32.mrb[0].mxu0
      %v2255 = vadd.f32 %v2005, %v2254
      %v2256 = vpop.f32.mrb[0].mxu0
      %2257 = vmatprep.mubr.f32.mxu0 0.0
      %2258 = vmatmul.mubr.f32.gmra.mrb[0].mxu0 %v2062
      %v2259 = vpop.f32.mrb[0].mxu0
      %v2260 = vadd.f32 %v2005, %v2259
      %v2261 = vpop.f32.mrb[0].mxu0
      %2262 = vmatprep.mubr.f32.mxu0 0.0
      %2263 = vmatmul.mubr.f32.gmra.mrb[0].mxu0 %v2065
      %v2264 = vpop.f32.mrb[0].mxu0
      %v2265 = vadd.f32 %v2005, %v2264
      %v2266 = vpop.f32.mrb[0].mxu0
      %2267 = vmatprep.mubr.f32.mxu0 0.0
      %2268 = vmatmul.mubr.f32.gmra.mrb[0].mxu0 %v2068
      %v2269 = vpop.f32.mrb[0].mxu0
      %v2270 = vadd.f32 %v2005, %v2269
      %v2271 = vpop.f32.mrb[0].mxu0
      %2272 = vmatprep.mubr.f32.mxu0 0.0
      %2273 = vmatmul.mubr.f32.gmra.mrb[0].mxu0 %v2071
      %v2274 = vpop.f32.mrb[0].mxu0
      %v2275 = vadd.f32 %v2005, %v2274
      %v2276 = vpop.f32.mrb[0].mxu0
      %2277 = vmatprep.mubr.f32.mxu0 0.0
      %2278 = vmatmul.mubr.f32.gmra.mrb[0].mxu0 %v2074
      %v2279 = vpop.f32.mrb[0].mxu0
      %v2280 = vadd.f32 %v2005, %v2279
      %v2281 = vpop.f32.mrb[0].mxu0
      %2282 = vmatprep.mubr.f32.mxu0 0.0
      %2283 = vmatmul.mubr.f32.gmra.mrb[0].mxu0 %v2077
      %v2284 = vpop.f32.mrb[0].mxu0
      %v2285 = vadd.f32 %v2005, %v2284
      %v2286 = vpop.f32.mrb[0].mxu0
      %2287 = vmatprep.mubr.f32.mxu0 0.0
      %2288 = vmatmul.mubr.f32.gmra.mrb[0].mxu0 %v2080
      %v2289 = vpop.f32.mrb[0].mxu0
      %v2290 = vadd.f32 %v2005, %v2289
      %v2291 = vpop.f32.mrb[0].mxu0
      %2292 = vmatprep.mubr.f32.mxu0 0.0
      %2293 = vmatmul.mubr.f32.gmra.mrb[0].mxu0 %v2083
      %v2294 = vpop.f32.mrb[0].mxu0
      %v2295 = vadd.f32 %v2005, %v2294
      %v2296 = vpop.f32.mrb[0].mxu0
      %2297 = vmatprep.mubr.f32.mxu0 0.0
      %2298 = vmatmul.mubr.f32.gmra.mrb[0].mxu0 %v2086
      %v2299 = vpop.f32.mrb[0].mxu0
      %v2300 = vadd.f32 %v2005, %v2299
      %v2301 = vpop.f32.mrb[0].mxu0
      %2302 = vmatprep.mubr.f32.mxu0 0.0
      %2303 = vmatmul.mubr.f32.gmra.mrb[0].mxu0 %v2089
      %v2304 = vpop.f32.mrb[0].mxu0
      %v2305 = vadd.f32 %v2005, %v2304
      %v2306 = vpop.f32.mrb[0].mxu0
      %2307 = vmatprep.mubr.f32.mxu0 0.0
      %2308 = vmatmul.mubr.f32.gmra.mrb[0].mxu0 %v2092
      %v2309 = vpop.f32.mrb[0].mxu0
      %v2310 = vadd.f32 %v2005, %v2309
      %v2311 = vpop.f32.mrb[0].mxu0
      %2312 = vmatprep.mubr.f32.mxu0 0.0
      %2313 = vmatmul.mubr.f32.gmra.mrb[0].mxu0 %v2095
      %v2314 = vpop.f32.mrb[0].mxu0
      %v2315 = vadd.f32 %v2005, %v2314
      %v2316 = vpop.f32.mrb[0].mxu0
      %2317 = vmatprep.mubr.f32.mxu0 0.0
      %2318 = vmatmul.mubr.f32.gmra.mrb[0].mxu0 %v2098
      %v2319 = vpop.f32.mrb[0].mxu0
      %v2320 = vadd.f32 %v2005, %v2319
      %v2321 = vpop.f32.mrb[0].mxu0
      %2322 = vmatprep.mubr.f32.mxu0 0.0
      %2323 = vmatmul.mubr.f32.gmra.mrb[0].mxu0 %v2101
      %v2324 = vpop.f32.mrb[0].mxu0
      %v2325 = vadd.f32 %v2005, %v2324
      %v2326 = vpop.f32.mrb[0].mxu0
      %2327 = vdwg.mxu0
      %v2328 = vsel %vm487, %v2170, 0.0
      %v2329 = vsel %vm487, %v2175, 0.0
      %v2330 = vadd.f32 %v2328, %v2329
      %v2331 = vsel %vm487, %v2180, 0.0
      %v2332 = vadd.f32 %v2330, %v2331
      %v2333 = vsel %vm487, %v2185, 0.0
      %v2334 = vadd.f32 %v2332, %v2333
      %v2335 = vsel %vm487, %v2190, 0.0
      %v2336 = vadd.f32 %v2334, %v2335
      %v2337 = vsel %vm487, %v2195, 0.0
      %v2338 = vadd.f32 %v2336, %v2337
      %v2339 = vsel %vm487, %v2200, 0.0
      %v2340 = vadd.f32 %v2338, %v2339
      %v2341 = vsel %vm487, %v2205, 0.0
      %v2342 = vadd.f32 %v2340, %v2341
      %v2343 = vsel %vm487, %v2210, 0.0
      %v2344 = vadd.f32 %v2342, %v2343
      %v2345 = vsel %vm487, %v2215, 0.0
      %v2346 = vadd.f32 %v2344, %v2345
      %v2347 = vsel %vm487, %v2220, 0.0
      %v2348 = vadd.f32 %v2346, %v2347
      %v2349 = vsel %vm487, %v2225, 0.0
      %v2350 = vadd.f32 %v2348, %v2349
      %v2351 = vsel %vm487, %v2230, 0.0
      %v2352 = vadd.f32 %v2350, %v2351
      %v2353 = vsel %vm487, %v2235, 0.0
      %v2354 = vadd.f32 %v2352, %v2353
      %v2355 = vsel %vm487, %v2240, 0.0
      %v2356 = vadd.f32 %v2354, %v2355
      %v2357 = vsel %vm487, %v2245, 0.0
      %v2358 = vadd.f32 %v2356, %v2357
      %v2359 = vsel %vm487, %v2250, 0.0
      %v2360 = vadd.f32 %v2358, %v2359
      %v2361 = vsel %vm487, %v2255, 0.0
      %v2362 = vadd.f32 %v2360, %v2361
      %v2363 = vsel %vm487, %v2260, 0.0
      %v2364 = vadd.f32 %v2362, %v2363
      %v2365 = vsel %vm487, %v2265, 0.0
      %v2366 = vadd.f32 %v2364, %v2365
      %v2367 = vsel %vm487, %v2270, 0.0
      %v2368 = vadd.f32 %v2366, %v2367
      %v2369 = vsel %vm487, %v2275, 0.0
      %v2370 = vadd.f32 %v2368, %v2369
      %v2371 = vsel %vm487, %v2280, 0.0
      %v2372 = vadd.f32 %v2370, %v2371
      %v2373 = vsel %vm487, %v2285, 0.0
      %v2374 = vadd.f32 %v2372, %v2373
      %v2375 = vsel %vm487, %v2290, 0.0
      %v2376 = vadd.f32 %v2374, %v2375
      %v2377 = vsel %vm487, %v2295, 0.0
      %v2378 = vadd.f32 %v2376, %v2377
      %v2379 = vsel %vm487, %v2300, 0.0
      %v2380 = vadd.f32 %v2378, %v2379
      %v2381 = vsel %vm487, %v2305, 0.0
      %v2382 = vadd.f32 %v2380, %v2381
      %v2383 = vsel %vm487, %v2310, 0.0
      %v2384 = vadd.f32 %v2382, %v2383
      %v2385 = vsel %vm487, %v2315, 0.0
      %v2386 = vadd.f32 %v2384, %v2385
      %v2387 = vsel %vm487, %v2320, 0.0
      %v2388 = vadd.f32 %v2386, %v2387
      %v2389 = vsel %vm487, %v2325, 0.0
      %v2390 = vadd.f32 %v2388, %v2389
      %v2391 = vrot.slane %v2390, 4
      %v2392 = vadd.f32 %v2390, %v2391
      %v2393 = vrot.slane %v2392, 2
      %v2394 = vadd.f32 %v2392, %v2393
      %v2395 = vrot.slane %v2394, 1
      %v2396 = vadd.f32 %v2394, %v2395
      %v2397 = vrcp.pop 256.0
      %v2398 = vmul.f32 %v2396, %v2397
      %v2399 = vsub.f32 %v2170, %v2398
      %v2400 = vsub.f32 %v2175, %v2398
      %v2401 = vsub.f32 %v2180, %v2398
      %v2402 = vsub.f32 %v2185, %v2398
      %v2403 = vsub.f32 %v2190, %v2398
      %v2404 = vsub.f32 %v2195, %v2398
      %v2405 = vsub.f32 %v2200, %v2398
      %v2406 = vsub.f32 %v2205, %v2398
      %v2407 = vsub.f32 %v2210, %v2398
      %v2408 = vsub.f32 %v2215, %v2398
      %v2409 = vsub.f32 %v2220, %v2398
      %v2410 = vsub.f32 %v2225, %v2398
      %v2411 = vsub.f32 %v2230, %v2398
      %v2412 = vsub.f32 %v2235, %v2398
      %v2413 = vsub.f32 %v2240, %v2398
      %v2414 = vsub.f32 %v2245, %v2398
      %v2415 = vsub.f32 %v2250, %v2398
      %v2416 = vsub.f32 %v2255, %v2398
      %v2417 = vsub.f32 %v2260, %v2398
      %v2418 = vsub.f32 %v2265, %v2398
      %v2419 = vsub.f32 %v2270, %v2398
      %v2420 = vsub.f32 %v2275, %v2398
      %v2421 = vsub.f32 %v2280, %v2398
      %v2422 = vsub.f32 %v2285, %v2398
      %v2423 = vsub.f32 %v2290, %v2398
      %v2424 = vsub.f32 %v2295, %v2398
      %v2425 = vsub.f32 %v2300, %v2398
      %v2426 = vsub.f32 %v2305, %v2398
      %v2427 = vsub.f32 %v2310, %v2398
      %v2428 = vsub.f32 %v2315, %v2398
      %v2429 = vsub.f32 %v2320, %v2398
      %v2430 = vsub.f32 %v2325, %v2398
      %v2431 = vmul.f32 %v2399, %v2399
      %v2432 = vmul.f32 %v2400, %v2400
      %v2433 = vmul.f32 %v2401, %v2401
      %v2434 = vmul.f32 %v2402, %v2402
      %v2435 = vmul.f32 %v2403, %v2403
      %v2436 = vmul.f32 %v2404, %v2404
      %v2437 = vmul.f32 %v2405, %v2405
      %v2438 = vmul.f32 %v2406, %v2406
      %v2439 = vmul.f32 %v2407, %v2407
      %v2440 = vmul.f32 %v2408, %v2408
      %v2441 = vmul.f32 %v2409, %v2409
      %v2442 = vmul.f32 %v2410, %v2410
      %v2443 = vmul.f32 %v2411, %v2411
      %v2444 = vmul.f32 %v2412, %v2412
      %v2445 = vmul.f32 %v2413, %v2413
      %v2446 = vmul.f32 %v2414, %v2414
      %v2447 = vmul.f32 %v2415, %v2415
      %v2448 = vmul.f32 %v2416, %v2416
      %v2449 = vmul.f32 %v2417, %v2417
      %v2450 = vmul.f32 %v2418, %v2418
      %v2451 = vmul.f32 %v2419, %v2419
      %v2452 = vmul.f32 %v2420, %v2420
      %v2453 = vmul.f32 %v2421, %v2421
      %v2454 = vmul.f32 %v2422, %v2422
      %v2455 = vmul.f32 %v2423, %v2423
      %v2456 = vmul.f32 %v2424, %v2424
      %v2457 = vmul.f32 %v2425, %v2425
      %v2458 = vmul.f32 %v2426, %v2426
      %v2459 = vmul.f32 %v2427, %v2427
      %v2460 = vmul.f32 %v2428, %v2428
      %v2461 = vmul.f32 %v2429, %v2429
      %v2462 = vmul.f32 %v2430, %v2430
      %v2463 = vsel %vm487, %v2431, 0.0
      %v2464 = vsel %vm487, %v2432, 0.0
      %v2465 = vadd.f32 %v2463, %v2464
      %v2466 = vsel %vm487, %v2433, 0.0
      %v2467 = vadd.f32 %v2465, %v2466
      %v2468 = vsel %vm487, %v2434, 0.0
      %v2469 = vadd.f32 %v2467, %v2468
      %v2470 = vsel %vm487, %v2435, 0.0
      %v2471 = vadd.f32 %v2469, %v2470
      %v2472 = vsel %vm487, %v2436, 0.0
      %v2473 = vadd.f32 %v2471, %v2472
      %v2474 = vsel %vm487, %v2437, 0.0
      %v2475 = vadd.f32 %v2473, %v2474
      %v2476 = vsel %vm487, %v2438, 0.0
      %v2477 = vadd.f32 %v2475, %v2476
      %v2478 = vsel %vm487, %v2439, 0.0
      %v2479 = vadd.f32 %v2477, %v2478
      %v2480 = vsel %vm487, %v2440, 0.0
      %v2481 = vadd.f32 %v2479, %v2480
      %v2482 = vsel %vm487, %v2441, 0.0
      %v2483 = vadd.f32 %v2481, %v2482
      %v2484 = vsel %vm487, %v2442, 0.0
      %v2485 = vadd.f32 %v2483, %v2484
      %v2486 = vsel %vm487, %v2443, 0.0
      %v2487 = vadd.f32 %v2485, %v2486
      %v2488 = vsel %vm487, %v2444, 0.0
      %v2489 = vadd.f32 %v2487, %v2488
      %v2490 = vsel %vm487, %v2445, 0.0
      %v2491 = vadd.f32 %v2489, %v2490
      %v2492 = vsel %vm487, %v2446, 0.0
      %v2493 = vadd.f32 %v2491, %v2492
      %v2494 = vsel %vm487, %v2447, 0.0
      %v2495 = vadd.f32 %v2493, %v2494
      %v2496 = vsel %vm487, %v2448, 0.0
      %v2497 = vadd.f32 %v2495, %v2496
      %v2498 = vsel %vm487, %v2449, 0.0
      %v2499 = vadd.f32 %v2497, %v2498
      %v2500 = vsel %vm487, %v2450, 0.0
      %v2501 = vadd.f32 %v2499, %v2500
      %v2502 = vsel %vm487, %v2451, 0.0
      %v2503 = vadd.f32 %v2501, %v2502
      %v2504 = vsel %vm487, %v2452, 0.0
      %v2505 = vadd.f32 %v2503, %v2504
      %v2506 = vsel %vm487, %v2453, 0.0
      %v2507 = vadd.f32 %v2505, %v2506
      %v2508 = vsel %vm487, %v2454, 0.0
      %v2509 = vadd.f32 %v2507, %v2508
      %v2510 = vsel %vm487, %v2455, 0.0
      %v2511 = vadd.f32 %v2509, %v2510
      %v2512 = vsel %vm487, %v2456, 0.0
      %v2513 = vadd.f32 %v2511, %v2512
      %v2514 = vsel %vm487, %v2457, 0.0
      %v2515 = vadd.f32 %v2513, %v2514
      %v2516 = vsel %vm487, %v2458, 0.0
      %v2517 = vadd.f32 %v2515, %v2516
      %v2518 = vsel %vm487, %v2459, 0.0
      %v2519 = vadd.f32 %v2517, %v2518
      %v2520 = vsel %vm487, %v2460, 0.0
      %v2521 = vadd.f32 %v2519, %v2520
      %v2522 = vsel %vm487, %v2461, 0.0
      %v2523 = vadd.f32 %v2521, %v2522
      %v2524 = vsel %vm487, %v2462, 0.0
      %v2525 = vadd.f32 %v2523, %v2524
      %v2526 = vrot.slane %v2525, 4
      %v2527 = vadd.f32 %v2525, %v2526
      %v2528 = vrot.slane %v2527, 2
      %v2529 = vadd.f32 %v2527, %v2528
      %v2530 = vrot.slane %v2529, 1
      %v2531 = vadd.f32 %v2529, %v2530
      %v2532 = vmul.f32 %v2531, %v2397
      %v2533 = vadd.f32 %v2532, 1e-05
      %v2534 = vrsqrt.pop %v2533
      %v2535 = vmul.f32 %v2399, %v2534
      %v2536 = vmul.f32 %v2400, %v2534
      %v2537 = vmul.f32 %v2401, %v2534
      %v2538 = vmul.f32 %v2402, %v2534
      %v2539 = vmul.f32 %v2403, %v2534
      %v2540 = vmul.f32 %v2404, %v2534
      %v2541 = vmul.f32 %v2405, %v2534
      %v2542 = vmul.f32 %v2406, %v2534
      %v2543 = vmul.f32 %v2407, %v2534
      %v2544 = vmul.f32 %v2408, %v2534
      %v2545 = vmul.f32 %v2409, %v2534
      %v2546 = vmul.f32 %v2410, %v2534
      %v2547 = vmul.f32 %v2411, %v2534
      %v2548 = vmul.f32 %v2412, %v2534
      %v2549 = vmul.f32 %v2413, %v2534
      %v2550 = vmul.f32 %v2414, %v2534
      %v2551 = vmul.f32 %v2415, %v2534
      %v2552 = vmul.f32 %v2416, %v2534
      %v2553 = vmul.f32 %v2417, %v2534
      %v2554 = vmul.f32 %v2418, %v2534
      %v2555 = vmul.f32 %v2419, %v2534
      %v2556 = vmul.f32 %v2420, %v2534
      %v2557 = vmul.f32 %v2421, %v2534
      %v2558 = vmul.f32 %v2422, %v2534
      %v2559 = vmul.f32 %v2423, %v2534
      %v2560 = vmul.f32 %v2424, %v2534
      %v2561 = vmul.f32 %v2425, %v2534
      %v2562 = vmul.f32 %v2426, %v2534
      %v2563 = vmul.f32 %v2427, %v2534
      %v2564 = vmul.f32 %v2428, %v2534
      %v2565 = vmul.f32 %v2429, %v2534
      %v2566 = vmul.f32 %v2430, %v2534
      %v2567 = vadd.f32 %v2535, 3.0
      %v2568 = vadd.f32 %v2536, 3.0
      %v2569 = vadd.f32 %v2537, 3.0
      %v2570 = vadd.f32 %v2538, 3.0
      %v2571 = vadd.f32 %v2539, 3.0
      %v2572 = vadd.f32 %v2540, 3.0
      %v2573 = vadd.f32 %v2541, 3.0
      %v2574 = vadd.f32 %v2542, 3.0
      %v2575 = vadd.f32 %v2543, 3.0
      %v2576 = vadd.f32 %v2544, 3.0
      %v2577 = vadd.f32 %v2545, 3.0
      %v2578 = vadd.f32 %v2546, 3.0
      %v2579 = vadd.f32 %v2547, 3.0
      %v2580 = vadd.f32 %v2548, 3.0
      %v2581 = vadd.f32 %v2549, 3.0
      %v2582 = vadd.f32 %v2550, 3.0
      %v2583 = vadd.f32 %v2551, 3.0
      %v2584 = vadd.f32 %v2552, 3.0
      %v2585 = vadd.f32 %v2553, 3.0
      %v2586 = vadd.f32 %v2554, 3.0
      %v2587 = vadd.f32 %v2555, 3.0
      %v2588 = vadd.f32 %v2556, 3.0
      %v2589 = vadd.f32 %v2557, 3.0
      %v2590 = vadd.f32 %v2558, 3.0
      %v2591 = vadd.f32 %v2559, 3.0
      %v2592 = vadd.f32 %v2560, 3.0
      %v2593 = vadd.f32 %v2561, 3.0
      %v2594 = vadd.f32 %v2562, 3.0
      %v2595 = vadd.f32 %v2563, 3.0
      %v2596 = vadd.f32 %v2564, 3.0
      %v2597 = vadd.f32 %v2565, 3.0
      %v2598 = vadd.f32 %v2566, 3.0
      %v2599 = vmax.f32 %v2567, 0.0
      %v2600 = vmax.f32 %v2568, 0.0
      %v2601 = vmax.f32 %v2569, 0.0
      %v2602 = vmax.f32 %v2570, 0.0
      %v2603 = vmax.f32 %v2571, 0.0
      %v2604 = vmax.f32 %v2572, 0.0
      %v2605 = vmax.f32 %v2573, 0.0
      %v2606 = vmax.f32 %v2574, 0.0
      %v2607 = vmax.f32 %v2575, 0.0
      %v2608 = vmax.f32 %v2576, 0.0
      %v2609 = vmax.f32 %v2577, 0.0
      %v2610 = vmax.f32 %v2578, 0.0
      %v2611 = vmax.f32 %v2579, 0.0
      %v2612 = vmax.f32 %v2580, 0.0
      %v2613 = vmax.f32 %v2581, 0.0
      %v2614 = vmax.f32 %v2582, 0.0
      %v2615 = vmax.f32 %v2583, 0.0
      %v2616 = vmax.f32 %v2584, 0.0
      %v2617 = vmax.f32 %v2585, 0.0
      %v2618 = vmax.f32 %v2586, 0.0
      %v2619 = vmax.f32 %v2587, 0.0
      %v2620 = vmax.f32 %v2588, 0.0
      %v2621 = vmax.f32 %v2589, 0.0
      %v2622 = vmax.f32 %v2590, 0.0
      %v2623 = vmax.f32 %v2591, 0.0
      %v2624 = vmax.f32 %v2592, 0.0
      %v2625 = vmax.f32 %v2593, 0.0
      %v2626 = vmax.f32 %v2594, 0.0
      %v2627 = vmax.f32 %v2595, 0.0
      %v2628 = vmax.f32 %v2596, 0.0
      %v2629 = vmax.f32 %v2597, 0.0
      %v2630 = vmax.f32 %v2598, 0.0
      %v2631 = vmin.f32 %v2599, 6.0
      %v2632 = vmin.f32 %v2600, 6.0
      %v2633 = vmin.f32 %v2601, 6.0
      %v2634 = vmin.f32 %v2602, 6.0
      %v2635 = vmin.f32 %v2603, 6.0
      %v2636 = vmin.f32 %v2604, 6.0
      %v2637 = vmin.f32 %v2605, 6.0
      %v2638 = vmin.f32 %v2606, 6.0
      %v2639 = vmin.f32 %v2607, 6.0
      %v2640 = vmin.f32 %v2608, 6.0
      %v2641 = vmin.f32 %v2609, 6.0
      %v2642 = vmin.f32 %v2610, 6.0
      %v2643 = vmin.f32 %v2611, 6.0
      %v2644 = vmin.f32 %v2612, 6.0
      %v2645 = vmin.f32 %v2613, 6.0
      %v2646 = vmin.f32 %v2614, 6.0
      %v2647 = vmin.f32 %v2615, 6.0
      %v2648 = vmin.f32 %v2616, 6.0
      %v2649 = vmin.f32 %v2617, 6.0
      %v2650 = vmin.f32 %v2618, 6.0
      %v2651 = vmin.f32 %v2619, 6.0
      %v2652 = vmin.f32 %v2620, 6.0
      %v2653 = vmin.f32 %v2621, 6.0
      %v2654 = vmin.f32 %v2622, 6.0
      %v2655 = vmin.f32 %v2623, 6.0
      %v2656 = vmin.f32 %v2624, 6.0
      %v2657 = vmin.f32 %v2625, 6.0
      %v2658 = vmin.f32 %v2626, 6.0
      %v2659 = vmin.f32 %v2627, 6.0
      %v2660 = vmin.f32 %v2628, 6.0
      %v2661 = vmin.f32 %v2629, 6.0
      %v2662 = vmin.f32 %v2630, 6.0
      %v2663 = vmul.f32 %v2631, 0.16666667
      %v2664 = vmul.f32 %v2632, 0.16666667
      %v2665 = vmul.f32 %v2633, 0.16666667
      %v2666 = vmul.f32 %v2634, 0.16666667
      %v2667 = vmul.f32 %v2635, 0.16666667
      %v2668 = vmul.f32 %v2636, 0.16666667
      %v2669 = vmul.f32 %v2637, 0.16666667
      %v2670 = vmul.f32 %v2638, 0.16666667
      %v2671 = vmul.f32 %v2639, 0.16666667
      %v2672 = vmul.f32 %v2640, 0.16666667
      %v2673 = vmul.f32 %v2641, 0.16666667
      %v2674 = vmul.f32 %v2642, 0.16666667
      %v2675 = vmul.f32 %v2643, 0.16666667
      %v2676 = vmul.f32 %v2644, 0.16666667
      %v2677 = vmul.f32 %v2645, 0.16666667
      %v2678 = vmul.f32 %v2646, 0.16666667
      %v2679 = vmul.f32 %v2647, 0.16666667
      %v2680 = vmul.f32 %v2648, 0.16666667
      %v2681 = vmul.f32 %v2649, 0.16666667
      %v2682 = vmul.f32 %v2650, 0.16666667
      %v2683 = vmul.f32 %v2651, 0.16666667
      %v2684 = vmul.f32 %v2652, 0.16666667
      %v2685 = vmul.f32 %v2653, 0.16666667
      %v2686 = vmul.f32 %v2654, 0.16666667
      %v2687 = vmul.f32 %v2655, 0.16666667
      %v2688 = vmul.f32 %v2656, 0.16666667
      %v2689 = vmul.f32 %v2657, 0.16666667
      %v2690 = vmul.f32 %v2658, 0.16666667
      %v2691 = vmul.f32 %v2659, 0.16666667
      %v2692 = vmul.f32 %v2660, 0.16666667
      %v2693 = vmul.f32 %v2661, 0.16666667
      %v2694 = vmul.f32 %v2662, 0.16666667
      %v2695 = vmul.f32 %v2535, %v2663
      %v2696 = vmul.f32 %v2536, %v2664
      %v2697 = vmul.f32 %v2537, %v2665
      %v2698 = vmul.f32 %v2538, %v2666
      %v2699 = vmul.f32 %v2539, %v2667
      %v2700 = vmul.f32 %v2540, %v2668
      %v2701 = vmul.f32 %v2541, %v2669
      %v2702 = vmul.f32 %v2542, %v2670
      %v2703 = vmul.f32 %v2543, %v2671
      %v2704 = vmul.f32 %v2544, %v2672
      %v2705 = vmul.f32 %v2545, %v2673
      %v2706 = vmul.f32 %v2546, %v2674
      %v2707 = vmul.f32 %v2547, %v2675
      %v2708 = vmul.f32 %v2548, %v2676
      %v2709 = vmul.f32 %v2549, %v2677
      %v2710 = vmul.f32 %v2550, %v2678
      %v2711 = vmul.f32 %v2551, %v2679
      %v2712 = vmul.f32 %v2552, %v2680
      %v2713 = vmul.f32 %v2553, %v2681
      %v2714 = vmul.f32 %v2554, %v2682
      %v2715 = vmul.f32 %v2555, %v2683
      %v2716 = vmul.f32 %v2556, %v2684
      %v2717 = vmul.f32 %v2557, %v2685
      %v2718 = vmul.f32 %v2558, %v2686
      %v2719 = vmul.f32 %v2559, %v2687
      %v2720 = vmul.f32 %v2560, %v2688
      %v2721 = vmul.f32 %v2561, %v2689
      %v2722 = vmul.f32 %v2562, %v2690
      %v2723 = vmul.f32 %v2563, %v2691
      %v2724 = vmul.f32 %v2564, %v2692
      %v2725 = vmul.f32 %v2565, %v2693
      %v2726 = vmul.f32 %v2566, %v2694
      %v2727 = vsel %vm487, %v2695, 0.0
      %v2728 = vsel %vm487, %v2696, 0.0
      %v2729 = vadd.f32 %v2727, %v2728
      %v2730 = vsel %vm487, %v2697, 0.0
      %v2731 = vadd.f32 %v2729, %v2730
      %v2732 = vsel %vm487, %v2698, 0.0
      %v2733 = vadd.f32 %v2731, %v2732
      %v2734 = vsel %vm487, %v2699, 0.0
      %v2735 = vadd.f32 %v2733, %v2734
      %v2736 = vsel %vm487, %v2700, 0.0
      %v2737 = vadd.f32 %v2735, %v2736
      %v2738 = vsel %vm487, %v2701, 0.0
      %v2739 = vadd.f32 %v2737, %v2738
      %v2740 = vsel %vm487, %v2702, 0.0
      %v2741 = vadd.f32 %v2739, %v2740
      %v2742 = vsel %vm487, %v2703, 0.0
      %v2743 = vadd.f32 %v2741, %v2742
      %v2744 = vsel %vm487, %v2704, 0.0
      %v2745 = vadd.f32 %v2743, %v2744
      %v2746 = vsel %vm487, %v2705, 0.0
      %v2747 = vadd.f32 %v2745, %v2746
      %v2748 = vsel %vm487, %v2706, 0.0
      %v2749 = vadd.f32 %v2747, %v2748
      %v2750 = vsel %vm487, %v2707, 0.0
      %v2751 = vadd.f32 %v2749, %v2750
      %v2752 = vsel %vm487, %v2708, 0.0
      %v2753 = vadd.f32 %v2751, %v2752
      %v2754 = vsel %vm487, %v2709, 0.0
      %v2755 = vadd.f32 %v2753, %v2754
      %v2756 = vsel %vm487, %v2710, 0.0
      %v2757 = vadd.f32 %v2755, %v2756
      %v2758 = vsel %vm487, %v2711, 0.0
      %v2759 = vadd.f32 %v2757, %v2758
      %v2760 = vsel %vm487, %v2712, 0.0
      %v2761 = vadd.f32 %v2759, %v2760
      %v2762 = vsel %vm487, %v2713, 0.0
      %v2763 = vadd.f32 %v2761, %v2762
      %v2764 = vsel %vm487, %v2714, 0.0
      %v2765 = vadd.f32 %v2763, %v2764
      %v2766 = vsel %vm487, %v2715, 0.0
      %v2767 = vadd.f32 %v2765, %v2766
      %v2768 = vsel %vm487, %v2716, 0.0
      %v2769 = vadd.f32 %v2767, %v2768
      %v2770 = vsel %vm487, %v2717, 0.0
      %v2771 = vadd.f32 %v2769, %v2770
      %v2772 = vsel %vm487, %v2718, 0.0
      %v2773 = vadd.f32 %v2771, %v2772
      %v2774 = vsel %vm487, %v2719, 0.0
      %v2775 = vadd.f32 %v2773, %v2774
      %v2776 = vsel %vm487, %v2720, 0.0
      %v2777 = vadd.f32 %v2775, %v2776
      %v2778 = vsel %vm487, %v2721, 0.0
      %v2779 = vadd.f32 %v2777, %v2778
      %v2780 = vsel %vm487, %v2722, 0.0
      %v2781 = vadd.f32 %v2779, %v2780
      %v2782 = vsel %vm487, %v2723, 0.0
      %v2783 = vadd.f32 %v2781, %v2782
      %v2784 = vsel %vm487, %v2724, 0.0
      %v2785 = vadd.f32 %v2783, %v2784
      %v2786 = vsel %vm487, %v2725, 0.0
      %v2787 = vadd.f32 %v2785, %v2786
      %v2788 = vsel %vm487, %v2726, 0.0
      %v2789 = vadd.f32 %v2787, %v2788
      %v2790 = vrot.slane %v2789, 4
      %v2791 = vadd.f32 %v2789, %v2790
      %v2792 = vrot.slane %v2791, 2
      %v2793 = vadd.f32 %v2791, %v2792
      %v2794 = vrot.slane %v2793, 1
      %v2795 = vadd.f32 %v2793, %v2794
      %v2796 = vmul.f32 %v2795, %v2397
      %v2797 = vld [vmem:[%s8] sm:$0xff]
      %v2798 = vld [vmem:[%s9] sm:$0x1]
      %v2800 = vsel %vm487, %v2796, 0
      %2802 = vmatprep.subr.mxu0 0.0
      %2803 = vmatpush1.msra.mxu0 %v2797
      %2804 = vmatprep.subr.mxu0 0.0
      %2805 = vmatpush1.msra.mxu0 0.0
      %2806 = vmatprep.subr.mxu0 0.0
      %2807 = vmatpush1.msra.mxu0 0.0
      %2808 = vmatprep.subr.mxu0 0.0
      %2809 = vmatpush1.msra.mxu0 0.0
      %2810 = vmatprep.subr.mxu0 0.0
      %2811 = vmatpush1.msra.mxu0 0.0
      %2812 = vmatprep.subr.mxu0 0.0
      %2813 = vmatpush1.msra.mxu0 0.0
      %2814 = vmatprep.subr.mxu0 0.0
      %2815 = vmatpush1.msra.mxu0 0.0
      %2816 = vmatprep.subr.mxu0 0.0
      %2817 = vmatpush1.msra.mxu0 0.0
      %2818 = vmatprep.subr.mxu0 0.0
      %2819 = vmatpush1.msra.mxu0 0.0
      %2820 = vmatprep.subr.mxu0 0.0
      %2821 = vmatpush1.msra.mxu0 0.0
      %2822 = vmatprep.subr.mxu0 0.0
      %2823 = vmatpush1.msra.mxu0 0.0
      %2824 = vmatprep.subr.mxu0 0.0
      %2825 = vmatpush1.msra.mxu0 0.0
      %2826 = vmatprep.subr.mxu0 0.0
      %2827 = vmatpush1.msra.mxu0 0.0
      %2828 = vmatprep.subr.mxu0 0.0
      %2829 = vmatpush1.msra.mxu0 0.0
      %2830 = vmatprep.subr.mxu0 0.0
      %2831 = vmatpush1.msra.mxu0 0.0
      %2832 = vmatprep.subr.mxu0 0.0
      %2833 = vmatpush1.msra.mxu0 0.0
      %2834 = vmatprep.subr.mxu0 0.0
      %2835 = vmatpush1.msra.mxu0 0.0
      %2836 = vmatprep.subr.mxu0 0.0
      %2837 = vmatpush1.msra.mxu0 0.0
      %2838 = vmatprep.subr.mxu0 0.0
      %2839 = vmatpush1.msra.mxu0 0.0
      %2840 = vmatprep.subr.mxu0 0.0
      %2841 = vmatpush1.msra.mxu0 0.0
      %2842 = vmatprep.subr.mxu0 0.0
      %2843 = vmatpush1.msra.mxu0 0.0
      %2844 = vmatprep.subr.mxu0 0.0
      %2845 = vmatpush1.msra.mxu0 0.0
      %2846 = vmatprep.subr.mxu0 0.0
      %2847 = vmatpush1.msra.mxu0 0.0
      %2848 = vmatprep.subr.mxu0 0.0
      %2849 = vmatpush1.msra.mxu0 0.0
      %2850 = vmatprep.subr.mxu0 0.0
      %2851 = vmatpush1.msra.mxu0 0.0
      %2852 = vmatprep.subr.mxu0 0.0
      %2853 = vmatpush1.msra.mxu0 0.0
      %2854 = vmatprep.subr.mxu0 0.0
      %2855 = vmatpush1.msra.mxu0 0.0
      %2856 = vmatprep.subr.mxu0 0.0
      %2857 = vmatpush1.msra.mxu0 0.0
      %2858 = vmatprep.subr.mxu0 0.0
      %2859 = vmatpush1.msra.mxu0 0.0
      %2860 = vmatprep.subr.mxu0 0.0
      %2861 = vmatpush1.msra.mxu0 0.0
      %2862 = vmatprep.subr.mxu0 0.0
      %2863 = vmatpush1.msra.mxu0 0.0
      %2864 = vmatprep.subr.mxu0 0.0
      %2865 = vmatpush1.msra.mxu0 0.0
      %2866 = vmatprep.mubr.f32.mxu0 0.0
      %2867 = vmatmul.mubr.f32.gmra.mrb[0].mxu0 %v2800
      %v2868 = vpop.f32.mrb[0].mxu0
      %v2869 = vadd.f32 %v2798, %v2868
      %v2870 = vpop.f32.mrb[0].mxu0
      %2871 = vdwg.mxu0
      %v2872 = vmax.f32 %v2869, 0.0
      %v2873 = vld [vmem:[%s10] sm:$0x3]
      %vm2874 = vcmask 15360
      %v2876 = vsel %vm2874, %v2872, 0
      %vm2878 = vcmask 1041408
      %v2880 = vsel %vm2878, %v2873, 0
      %2882 = vmatprep.subr.mxu0 0.0
      %2883 = vmatpush1.msra.mxu0 %v2880
      %2884 = vmatprep.subr.mxu0 0.0
      %2885 = vmatpush1.msra.mxu0 0.0
      %2886 = vmatprep.subr.mxu0 0.0
      %2887 = vmatpush1.msra.mxu0 0.0
      %2888 = vmatprep.subr.mxu0 0.0
      %2889 = vmatpush1.msra.mxu0 0.0
      %2890 = vmatprep.subr.mxu0 0.0
      %2891 = vmatpush1.msra.mxu0 0.0
      %2892 = vmatprep.subr.mxu0 0.0
      %2893 = vmatpush1.msra.mxu0 0.0
      %2894 = vmatprep.subr.mxu0 0.0
      %2895 = vmatpush1.msra.mxu0 0.0
      %2896 = vmatprep.subr.mxu0 0.0
      %2897 = vmatpush1.msra.mxu0 0.0
      %2898 = vmatprep.subr.mxu0 0.0
      %2899 = vmatpush1.msra.mxu0 0.0
      %2900 = vmatprep.subr.mxu0 0.0
      %2901 = vmatpush1.msra.mxu0 0.0
      %2902 = vmatprep.subr.mxu0 0.0
      %2903 = vmatpush1.msra.mxu0 0.0
      %2904 = vmatprep.subr.mxu0 0.0
      %2905 = vmatpush1.msra.mxu0 0.0
      %2906 = vmatprep.subr.mxu0 0.0
      %2907 = vmatpush1.msra.mxu0 0.0
      %2908 = vmatprep.subr.mxu0 0.0
      %2909 = vmatpush1.msra.mxu0 0.0
      %2910 = vmatprep.subr.mxu0 0.0
      %2911 = vmatpush1.msra.mxu0 0.0
      %2912 = vmatprep.subr.mxu0 0.0
      %2913 = vmatpush1.msra.mxu0 0.0
      %2914 = vmatprep.subr.mxu0 0.0
      %2915 = vmatpush1.msra.mxu0 0.0
      %2916 = vmatprep.subr.mxu0 0.0
      %2917 = vmatpush1.msra.mxu0 0.0
      %2918 = vmatprep.subr.mxu0 0.0
      %2919 = vmatpush1.msra.mxu0 0.0
      %2920 = vmatprep.subr.mxu0 0.0
      %2921 = vmatpush1.msra.mxu0 0.0
      %2922 = vmatprep.subr.mxu0 0.0
      %2923 = vmatpush1.msra.mxu0 0.0
      %2924 = vmatprep.subr.mxu0 0.0
      %2925 = vmatpush1.msra.mxu0 0.0
      %2926 = vmatprep.subr.mxu0 0.0
      %2927 = vmatpush1.msra.mxu0 0.0
      %2928 = vmatprep.subr.mxu0 0.0
      %2929 = vmatpush1.msra.mxu0 0.0
      %2930 = vmatprep.subr.mxu0 0.0
      %2931 = vmatpush1.msra.mxu0 0.0
      %2932 = vmatprep.subr.mxu0 0.0
      %2933 = vmatpush1.msra.mxu0 0.0
      %2934 = vmatprep.subr.mxu0 0.0
      %2935 = vmatpush1.msra.mxu0 0.0
      %2936 = vmatprep.subr.mxu0 0.0
      %2937 = vmatpush1.msra.mxu0 0.0
      %2938 = vmatprep.subr.mxu0 0.0
      %2939 = vmatpush1.msra.mxu0 0.0
      %2940 = vmatprep.subr.mxu0 0.0
      %2941 = vmatpush1.msra.mxu0 0.0
      %2942 = vmatprep.subr.mxu0 0.0
      %2943 = vmatpush1.msra.mxu0 0.0
      %2944 = vmatprep.subr.mxu0 0.0
      %2945 = vmatpush1.msra.mxu0 0.0
      %2946 = vmatprep.mubr.f32.mxu0 0.0
      %2947 = vmatmul.mubr.f32.gmra.mrb[0].mxu0 %v2876
      %v2948 = vpop.f32.mrb[0].mxu0
      %v2949 = vadd.f32 3.0, %v2948
      %v2950 = vpop.f32.mrb[0].mxu0
      %2951 = vdwg.mxu0
      %v2952 = vmax.f32 %v2949, 0.0
      %v2953 = vmin.f32 %v2952, 6.0
      %v2954 = vmul.f32 %v2953, 0.16666667
      %v2955 = vlaneseq
      %v2956 = vshrl.u32 %v2955, 7
      %v2957 = vsub.s32 0, %v2956
      %v2958 = vrot.slane %v2954, %v2957
      %v2959 = vmul.f32 %v2695, %v2958
      %v2960 = vmul.f32 %v2696, %v2958
      %v2961 = vmul.f32 %v2697, %v2958
      %v2962 = vmul.f32 %v2698, %v2958
      %v2963 = vmul.f32 %v2699, %v2958
      %v2964 = vmul.f32 %v2700, %v2958
      %v2965 = vmul.f32 %v2701, %v2958
      %v2966 = vmul.f32 %v2702, %v2958
      %v2967 = vmul.f32 %v2703, %v2958
      %v2968 = vmul.f32 %v2704, %v2958
      %v2969 = vmul.f32 %v2705, %v2958
      %v2970 = vmul.f32 %v2706, %v2958
      %v2971 = vmul.f32 %v2707, %v2958
      %v2972 = vmul.f32 %v2708, %v2958
      %v2973 = vmul.f32 %v2709, %v2958
      %v2974 = vmul.f32 %v2710, %v2958
      %v2975 = vmul.f32 %v2711, %v2958
      %v2976 = vmul.f32 %v2712, %v2958
      %v2977 = vmul.f32 %v2713, %v2958
      %v2978 = vmul.f32 %v2714, %v2958
      %v2979 = vmul.f32 %v2715, %v2958
      %v2980 = vmul.f32 %v2716, %v2958
      %v2981 = vmul.f32 %v2717, %v2958
      %v2982 = vmul.f32 %v2718, %v2958
      %v2983 = vmul.f32 %v2719, %v2958
      %v2984 = vmul.f32 %v2720, %v2958
      %v2985 = vmul.f32 %v2721, %v2958
      %v2986 = vmul.f32 %v2722, %v2958
      %v2987 = vmul.f32 %v2723, %v2958
      %v2988 = vmul.f32 %v2724, %v2958
      %v2989 = vmul.f32 %v2725, %v2958
      %v2990 = vmul.f32 %v2726, %v2958
      %2991 = vst.msk [vmem:[%s446] sm:$0xff] %vm487, %v2959
      %2992 = vst.msk [vmem:[%s446 + $0x8] sm:$0xff] %vm487, %v2960
      %2993 = vst.msk [vmem:[%s446 + $0x10] sm:$0xff] %vm487, %v2961
      %2994 = vst.msk [vmem:[%s446 + $0x18] sm:$0xff] %vm487, %v2962
      %2995 = vst.msk [vmem:[%s446 + $0x20] sm:$0xff] %vm487, %v2963
      %2996 = vst.msk [vmem:[%s446 + $0x28] sm:$0xff] %vm487, %v2964
      %2997 = vst.msk [vmem:[%s446 + $0x30] sm:$0xff] %vm487, %v2965
      %2998 = vst.msk [vmem:[%s446 + $0x38] sm:$0xff] %vm487, %v2966
      %2999 = vst.msk [vmem:[%s446 + $0x40] sm:$0xff] %vm487, %v2967
      %3000 = vst.msk [vmem:[%s446 + $0x48] sm:$0xff] %vm487, %v2968
      %3001 = vst.msk [vmem:[%s446 + $0x50] sm:$0xff] %vm487, %v2969
      %3002 = vst.msk [vmem:[%s446 + $0x58] sm:$0xff] %vm487, %v2970
      %3003 = vst.msk [vmem:[%s446 + $0x60] sm:$0xff] %vm487, %v2971
      %3004 = vst.msk [vmem:[%s446 + $0x68] sm:$0xff] %vm487, %v2972
      %3005 = vst.msk [vmem:[%s446 + $0x70] sm:$0xff] %vm487, %v2973
      %3006 = vst.msk [vmem:[%s446 + $0x78] sm:$0xff] %vm487, %v2974
      %3007 = vst.msk [vmem:[%s446 + $0x80] sm:$0xff] %vm487, %v2975
      %3008 = vst.msk [vmem:[%s446 + $0x88] sm:$0xff] %vm487, %v2976
      %3009 = vst.msk [vmem:[%s446 + $0x90] sm:$0xff] %vm487, %v2977
      %3010 = vst.msk [vmem:[%s446 + $0x98] sm:$0xff] %vm487, %v2978
      %3011 = vst.msk [vmem:[%s446 + $0xa0] sm:$0xff] %vm487, %v2979
      %3012 = vst.msk [vmem:[%s446 + $0xa8] sm:$0xff] %vm487, %v2980
      %3013 = vst.msk [vmem:[%s446 + $0xb0] sm:$0xff] %vm487, %v2981
      %3014 = vst.msk [vmem:[%s446 + $0xb8] sm:$0xff] %vm487, %v2982
      %3015 = vst.msk [vmem:[%s446 + $0xc0] sm:$0xff] %vm487, %v2983
      %3016 = vst.msk [vmem:[%s446 + $0xc8] sm:$0xff] %vm487, %v2984
      %3017 = vst.msk [vmem:[%s446 + $0xd0] sm:$0xff] %vm487, %v2985
      %3018 = vst.msk [vmem:[%s446 + $0xd8] sm:$0xff] %vm487, %v2986
      %3019 = vst.msk [vmem:[%s446 + $0xe0] sm:$0xff] %vm487, %v2987
      %3020 = vst.msk [vmem:[%s446 + $0xe8] sm:$0xff] %vm487, %v2988
      %3021 = vst.msk [vmem:[%s446 + $0xf0] sm:$0xff] %vm487, %v2989
      %3022 = vst.msk [vmem:[%s446 + $0xf8] sm:$0xff] %vm487, %v2990
      %v3023 = vld [vmem:[%s431] sm:$0xff]
      %v3024 = vld [vmem:[%s431 + $0x8] sm:$0xff]
      %v3025 = vld [vmem:[%s431 + $0x10] sm:$0xff]
      %v3026 = vld [vmem:[%s431 + $0x18] sm:$0xff]
      %v3027 = vld [vmem:[%s431 + $0x20] sm:$0xff]
      %v3028 = vld [vmem:[%s431 + $0x28] sm:$0xff]
      %v3029 = vld [vmem:[%s431 + $0x30] sm:$0xff]
      %v3030 = vld [vmem:[%s431 + $0x38] sm:$0xff]
      %v3031 = vld [vmem:[%s431 + $0x40] sm:$0xff]
      %v3032 = vld [vmem:[%s431 + $0x48] sm:$0xff]
      %v3033 = vld [vmem:[%s431 + $0x50] sm:$0xff]
      %v3034 = vld [vmem:[%s431 + $0x58] sm:$0xff]
      %v3035 = vld [vmem:[%s431 + $0x60] sm:$0xff]
      %v3036 = vld [vmem:[%s431 + $0x68] sm:$0xff]
      %v3037 = vld [vmem:[%s431 + $0x70] sm:$0xff]
      %v3038 = vld [vmem:[%s431 + $0x78] sm:$0xff]
      %v3039 = vld [vmem:[%s431 + $0x80] sm:$0xff]
      %v3040 = vld [vmem:[%s431 + $0x88] sm:$0xff]
      %v3041 = vld [vmem:[%s431 + $0x90] sm:$0xff]
      %v3042 = vld [vmem:[%s431 + $0x98] sm:$0xff]
      %v3043 = vld [vmem:[%s431 + $0xa0] sm:$0xff]
      %v3044 = vld [vmem:[%s431 + $0xa8] sm:$0xff]
      %v3045 = vld [vmem:[%s431 + $0xb0] sm:$0xff]
      %v3046 = vld [vmem:[%s431 + $0xb8] sm:$0xff]
      %v3047 = vld [vmem:[%s431 + $0xc0] sm:$0xff]
      %v3048 = vld [vmem:[%s431 + $0xc8] sm:$0xff]
      %v3049 = vld [vmem:[%s431 + $0xd0] sm:$0xff]
      %v3050 = vld [vmem:[%s431 + $0xd8] sm:$0xff]
      %v3051 = vld [vmem:[%s431 + $0xe0] sm:$0xff]
      %v3052 = vld [vmem:[%s431 + $0xe8] sm:$0xff]
      %v3053 = vld [vmem:[%s431 + $0xf0] sm:$0xff]
      %v3054 = vld [vmem:[%s431 + $0xf8] sm:$0xff]
      %3055 = vst.msk [vmem:[%s441] sm:$0xff] %vm487, %v3023
      %3056 = vst.msk [vmem:[%s441 + $0x8] sm:$0xff] %vm487, %v3024
      %3057 = vst.msk [vmem:[%s441 + $0x10] sm:$0xff] %vm487, %v3025
      %3058 = vst.msk [vmem:[%s441 + $0x18] sm:$0xff] %vm487, %v3026
      %3059 = vst.msk [vmem:[%s441 + $0x20] sm:$0xff] %vm487, %v3027
      %3060 = vst.msk [vmem:[%s441 + $0x28] sm:$0xff] %vm487, %v3028
      %3061 = vst.msk [vmem:[%s441 + $0x30] sm:$0xff] %vm487, %v3029
      %3062 = vst.msk [vmem:[%s441 + $0x38] sm:$0xff] %vm487, %v3030
      %3063 = vst.msk [vmem:[%s441 + $0x40] sm:$0xff] %vm487, %v3031
      %3064 = vst.msk [vmem:[%s441 + $0x48] sm:$0xff] %vm487, %v3032
      %3065 = vst.msk [vmem:[%s441 + $0x50] sm:$0xff] %vm487, %v3033
      %3066 = vst.msk [vmem:[%s441 + $0x58] sm:$0xff] %vm487, %v3034
      %3067 = vst.msk [vmem:[%s441 + $0x60] sm:$0xff] %vm487, %v3035
      %3068 = vst.msk [vmem:[%s441 + $0x68] sm:$0xff] %vm487, %v3036
      %3069 = vst.msk [vmem:[%s441 + $0x70] sm:$0xff] %vm487, %v3037
      %3070 = vst.msk [vmem:[%s441 + $0x78] sm:$0xff] %vm487, %v3038
      %3071 = vst.msk [vmem:[%s441 + $0x80] sm:$0xff] %vm487, %v3039
      %3072 = vst.msk [vmem:[%s441 + $0x88] sm:$0xff] %vm487, %v3040
      %3073 = vst.msk [vmem:[%s441 + $0x90] sm:$0xff] %vm487, %v3041
      %3074 = vst.msk [vmem:[%s441 + $0x98] sm:$0xff] %vm487, %v3042
      %3075 = vst.msk [vmem:[%s441 + $0xa0] sm:$0xff] %vm487, %v3043
      %3076 = vst.msk [vmem:[%s441 + $0xa8] sm:$0xff] %vm487, %v3044
      %3077 = vst.msk [vmem:[%s441 + $0xb0] sm:$0xff] %vm487, %v3045
      %3078 = vst.msk [vmem:[%s441 + $0xb8] sm:$0xff] %vm487, %v3046
      %3079 = vst.msk [vmem:[%s441 + $0xc0] sm:$0xff] %vm487, %v3047
      %3080 = vst.msk [vmem:[%s441 + $0xc8] sm:$0xff] %vm487, %v3048
      %3081 = vst.msk [vmem:[%s441 + $0xd0] sm:$0xff] %vm487, %v3049
      %3082 = vst.msk [vmem:[%s441 + $0xd8] sm:$0xff] %vm487, %v3050
      %3083 = vst.msk [vmem:[%s441 + $0xe0] sm:$0xff] %vm487, %v3051
      %3084 = vst.msk [vmem:[%s441 + $0xe8] sm:$0xff] %vm487, %v3052
      %3085 = vst.msk [vmem:[%s441 + $0xf0] sm:$0xff] %vm487, %v3053
      %3086 = vst.msk [vmem:[%s441 + $0xf8] sm:$0xff] %vm487, %v3054
      %p3087 = scmp.lt.s32.totalorder %s24, 1
      %s3088 = scalar_select %p3087, %s24, 1
      %s3089 = smul.addr %s3088, 32
      %s3090 = smul.addr %s3089, 8
      %s3091 = scalar_lea.vmem %s11, %s3090
      %p3092 = scmp.lt.s32.totalorder %s24, 1
      %s3093 = scalar_select %p3092, %s24, 1
      %s3094 = smul.addr %s3093, 32
      %s3095 = smul.addr %s3094, 8
      %s3096 = scalar_lea.vmem %s12, %s3095
      // Predicated region
      $region65: #{ibn_shufflenet_forward.1} parent=63 // pred_check
        %p3097 = pneg %p283
      $region66: #{ibn_shufflenet_forward.1} parent=63 // pred_check_branch
        %3099 = sbr.rel (%p3097) target = $region68
      $region67: #{ibn_shufflenet_forward.1} parent=63 // pred_region
        _
      $region68: #{ibn_shufflenet_forward.1} parent=63 // pred_fallthru
        _
      // Predicated region
      $region69: #{ibn_shufflenet_forward.1} parent=63 // pred_check
        %p3100 = pneg %p309
      $region70: #{ibn_shufflenet_forward.1} parent=63 // pred_check_branch
        %3102 = sbr.rel (%p3100) target = $region72
      $region71: #{ibn_shufflenet_forward.1} parent=63 // pred_region
        _
      $region72: #{ibn_shufflenet_forward.1} parent=63 // pred_fallthru
        _
    $region64: #{ibn_shufflenet_forward.1} parent=5 // pred_fallthru
      _
    %p3103 = scmp.le.s32.totalorder 2, %s19
    // Predicated region
    $region73: #{ibn_shufflenet_forward.1} parent=5 // pred_check
      %p3104 = pneg %p3103
    $region74: #{ibn_shufflenet_forward.1} parent=5 // pred_check_branch
      %3106 = sbr.rel (%p3104) target = $region76
    $region75: #{ibn_shufflenet_forward.1} parent=5 // pred_region
      %s3107 = ssub.s32 %s19, 2
      // Predicated region
      $region77: #{ibn_shufflenet_forward.1} parent=75 // pred_check
        %p3108 = pneg %p289
      $region78: #{ibn_shufflenet_forward.1} parent=75 // pred_check_branch
        %3110 = sbr.rel (%p3108) target = $region80
      $region79: #{ibn_shufflenet_forward.1} parent=75 // pred_region
        %p3111 = scmp.lt.s32.totalorder %s25, 1
        %s3112 = scalar_select %p3111, %s25, 1
        %s3113 = smul.addr %s3112, 32
        %s3114 = smul.addr %s3113, 8
        %s3115 = scalar_lea.vmem %s11, %s3114
      $region80: #{ibn_shufflenet_forward.1} parent=75 // pred_fallthru
        _
      // Predicated region
      $region81: #{ibn_shufflenet_forward.1} parent=75 // pred_check
        %p3116 = pneg %p315
      $region82: #{ibn_shufflenet_forward.1} parent=75 // pred_check_branch
        %3118 = sbr.rel (%p3116) target = $region84
      $region83: #{ibn_shufflenet_forward.1} parent=75 // pred_region
        %p3119 = scmp.lt.s32.totalorder %s25, 1
        %s3120 = scalar_select %p3119, %s25, 1
        %s3121 = smul.addr %s3120, 32
        %s3122 = smul.addr %s3121, 8
        %s3123 = scalar_lea.vmem %s12, %s3122
      $region84: #{ibn_shufflenet_forward.1} parent=75 // pred_fallthru
        _
    $region76: #{ibn_shufflenet_forward.1} parent=5 // pred_fallthru
      _
  $region6: #{ibn_shufflenet_forward.1} parent=0 // loop_footer
    %s23 = sadd.s32 1, %s19
  $region7: #{ibn_shufflenet_forward.1} parent=0 // loop_footer_branch
    %18 = sbr.rel target = $region3
  $region8: #{ibn_shufflenet_forward.1} parent=0 // loop_exit
    _

</llo_original>
